<compile_context>
chip_gen: v5e
topology: v5e:2x2
jax: 0.10.0
libtpu: 0.0.40
codegen_flags: <defaults>
</compile_context>

<pallas_src>
import functools
import math

import jax
import jax.numpy as jnp
from jax import lax
from jax.experimental import pallas as pl
from jax.experimental.pallas import tpu as pltpu


# ---------------------------------------------------------------------------
# Fused Pallas kernels
# ---------------------------------------------------------------------------

def _attn_block_kernel(qb_ref, qpe_ref, kvb_ref, kpe_ref, skip_ref,
                       wq_ref, wk_ref, wv_ref, wo_ref, g_ref, b_ref, o_ref,
                       *, num_heads, scale, eps):
    """PE-add + QKV proj + multi-head attention + out proj + residual + LayerNorm."""
    D = qb_ref.shape[-1]
    hd = D // num_heads

    q_in = qb_ref[...] + qpe_ref[...]          # (Lq, D)  query input (+ its PE)
    k_in = kvb_ref[...] + kpe_ref[...]         # (Lk, D)  key input  (+ its PE)
    v_in = kvb_ref[...]                        # (Lk, D)  value input (no PE)

    # Fold the 1/sqrt(head_dim) scale into q (saves a full-tile vmul on the scores).
    q = jnp.dot(q_in, wq_ref[...], preferred_element_type=jnp.float32) * scale
    k = jnp.dot(k_in, wk_ref[...], preferred_element_type=jnp.float32)
    v = jnp.dot(v_in, wv_ref[...], preferred_element_type=jnp.float32)

    # All heads inside one kernel body (static unrolled loop, packed (L, D) layout).
    head_outs = []
    for h in range(num_heads):
        sl = slice(h * hd, (h + 1) * hd)
        qh, kh, vh = q[:, sl], k[:, sl], v[:, sl]
        s = lax.dot_general(qh, kh, (((1,), (1,)), ((), ())),
                            preferred_element_type=jnp.float32)   # (Lq, Lk)
        m = jnp.max(s, axis=-1, keepdims=True)
        p = jnp.exp(s - m)
        denom = jnp.sum(p, axis=-1, keepdims=True)
        p = p * pl.reciprocal(denom, approx=True)                 # EUP reciprocal
        head_outs.append(jnp.dot(p, vh, preferred_element_type=jnp.float32))
    attn = jnp.concatenate(head_outs, axis=-1)                    # (Lq, D)
    attn = jnp.dot(attn, wo_ref[...], preferred_element_type=jnp.float32)

    # ResidualConnection: LayerNorm(attention_output[0] + skip).
    # The reference's `[0]` batch slice is preserved: `attn` is the batch-0 result
    # and is broadcast against the full-batch skip.
    hres = attn[None, :, :] + skip_ref[...]                       # (B, Lq, D)
    mu = jnp.mean(hres, axis=-1, keepdims=True)
    var = jnp.mean((hres - mu) ** 2, axis=-1, keepdims=True)
    y = (hres - mu) * lax.rsqrt(var + eps)
    o_ref[...] = y * g_ref[...][None] + b_ref[...][None]


def _ffn_block_kernel(x_ref, w1_ref, b1_ref, w2_ref, b2_ref, g_ref, b_ref, o_ref,
                      *, eps):
    """Linear + ReLU + Linear + residual + LayerNorm, fully fused."""
    x = x_ref[...]                                                # (M, D)
    h = jnp.dot(x, w1_ref[...], preferred_element_type=jnp.float32) + b1_ref[...]
    h = jnp.maximum(h, 0.0)
    y = jnp.dot(h, w2_ref[...], preferred_element_type=jnp.float32) + b2_ref[...]
    z = y + x                                                     # residual
    mu = jnp.mean(z, axis=-1, keepdims=True)
    var = jnp.mean((z - mu) ** 2, axis=-1, keepdims=True)
    out = (z - mu) * lax.rsqrt(var + eps)
    o_ref[...] = out * g_ref[...] + b_ref[...]


# ---------------------------------------------------------------------------
# pallas_call wrappers
# ---------------------------------------------------------------------------

_COMPILER_PARAMS = pltpu.CompilerParams(dimension_semantics=("arbitrary",))


def pallas_attn_block(q_base, q_pe, kv_base, k_pe, skip, p_attn, gamma, beta,
                      num_heads, eps=1e-5):
    # q_base, q_pe: (Lq, D); kv_base, k_pe: (Lk, D); skip: (B, Lq, D)
    Lq, D = q_base.shape
    Lk = kv_base.shape[0]
    B = skip.shape[0]
    scale = 1.0 / math.sqrt(D // num_heads)
    kernel = functools.partial(_attn_block_kernel, num_heads=num_heads,
                               scale=scale, eps=eps)
    return pl.pallas_call(
        kernel,
        grid=(1,),
        in_specs=[
            pl.BlockSpec((Lq, D), lambda i: (0, 0)),          # q_base
            pl.BlockSpec((Lq, D), lambda i: (0, 0)),          # q_pe
            pl.BlockSpec((Lk, D), lambda i: (0, 0)),          # kv_base
            pl.BlockSpec((Lk, D), lambda i: (0, 0)),          # k_pe
            pl.BlockSpec((B, Lq, D), lambda i: (0, 0, 0)),    # skip
            pl.BlockSpec((D, D), lambda i: (0, 0)),           # wq
            pl.BlockSpec((D, D), lambda i: (0, 0)),           # wk
            pl.BlockSpec((D, D), lambda i: (0, 0)),           # wv
            pl.BlockSpec((D, D), lambda i: (0, 0)),           # wo
            pl.BlockSpec((1, D), lambda i: (0, 0)),           # gamma
            pl.BlockSpec((1, D), lambda i: (0, 0)),           # beta
        ],
        out_specs=pl.BlockSpec((B, Lq, D), lambda i: (0, 0, 0)),
        out_shape=jax.ShapeDtypeStruct((B, Lq, D), jnp.float32),
        compiler_params=_COMPILER_PARAMS,
    )(q_base, q_pe, kv_base, k_pe, skip,
      p_attn["wq"], p_attn["wk"], p_attn["wv"], p_attn["wo"],
      gamma.reshape(1, D), beta.reshape(1, D))


def pallas_ffn_block(x, p_ffn, gamma, beta, eps=1e-5):
    B, L, D = x.shape
    latent = p_ffn["w1"].shape[1]
    M = B * L
    y = pl.pallas_call(
        functools.partial(_ffn_block_kernel, eps=eps),
        grid=(1,),
        in_specs=[
            pl.BlockSpec((M, D), lambda i: (0, 0)),           # x (flattened)
            pl.BlockSpec((D, latent), lambda i: (0, 0)),      # w1
            pl.BlockSpec((1, latent), lambda i: (0, 0)),      # b1
            pl.BlockSpec((latent, D), lambda i: (0, 0)),      # w2
            pl.BlockSpec((1, D), lambda i: (0, 0)),           # b2
            pl.BlockSpec((1, D), lambda i: (0, 0)),           # gamma
            pl.BlockSpec((1, D), lambda i: (0, 0)),           # beta
        ],
        out_specs=pl.BlockSpec((M, D), lambda i: (0, 0)),
        out_shape=jax.ShapeDtypeStruct((M, D), jnp.float32),
        compiler_params=_COMPILER_PARAMS,
    )(x.reshape(M, D), p_ffn["w1"], p_ffn["b1"].reshape(1, latent),
      p_ffn["w2"], p_ffn["b2"].reshape(1, D),
      gamma.reshape(1, D), beta.reshape(1, D))
    return y.reshape(B, L, D)


# ---------------------------------------------------------------------------
# Model glue (plain JAX: PE table, layer loops, parameter plumbing)
# ---------------------------------------------------------------------------

def positional_encoding(L, D):
    pos = jnp.arange(L, dtype=jnp.float32)[:, None]
    i = jnp.arange(D // 2, dtype=jnp.float32)[None, :]
    angle = pos / jnp.power(10000.0, 2.0 * i / D)
    pe = jnp.zeros((L, D), jnp.float32)
    pe = pe.at[:, 0::2].set(jnp.sin(angle))
    pe = pe.at[:, 1::2].set(jnp.cos(angle))
    return pe


def encoder_layer(p, x, pe, num_heads):
    # self-attention (q=k=x+pe, v=x) + residual + LN, fused; only batch-0 attention
    # is needed because the reference takes `...attention(...)[0]`.
    x0 = x[0]
    x1 = pallas_attn_block(x0, pe, x0, pe, x, p["self_attn"],
                           p["ln1"]["gamma"], p["ln1"]["beta"], num_heads)
    # feedforward + residual + LN, fused.
    x2 = pallas_ffn_block(x1, p["ffn"], p["ln2"]["gamma"], p["ln2"]["beta"])
    return x2


def decoder_layer(p, x, out_pe, memory, pe_mem, num_heads):
    out_pe0 = out_pe[0]
    # self-attention (q=k=x+out_pe, v=x) + residual + LN  (batch-0 slice semantics)
    x0 = x[0]
    x1 = pallas_attn_block(x0, out_pe0, x0, out_pe0, x, p["self_attn"],
                           p["ln1"]["gamma"], p["ln1"]["beta"], num_heads)
    # encoder-decoder attention (q=x1+out_pe, k=mem+pe_mem, v=mem) + residual + LN
    x2 = pallas_attn_block(x1[0], out_pe0, memory[0], pe_mem, x1, p["cross_attn"],
                           p["ln2"]["gamma"], p["ln2"]["beta"], num_heads)
    # feedforward + residual + LN
    x3 = pallas_ffn_block(x2, p["ffn"], p["ln3"]["gamma"], p["ln3"]["beta"])
    return x3


def transformer_forward(params, image_features, q, output_positional_encoding,
                        num_heads):
    B, L_enc, D = image_features.shape
    # PE hoisted: computed once per forward (encoder layers and the decoder's
    # memory PE both use sequence length L_enc).
    pe_enc = positional_encoding(L_enc, D)
    mem = image_features
    for lp in params["encoder"]:
        mem = encoder_layer(lp, mem, pe_enc, num_heads)
    x = q
    for lp in params["decoder"]:
        x = decoder_layer(lp, x, output_positional_encoding, mem, pe_enc, num_heads)
    return x


# ---------------------------------------------------------------------------
# Deterministic parameter initialization
# ---------------------------------------------------------------------------

def init_params(key, D, n_enc, n_dec, latent):
    def attn_params(k):
        ks = jax.random.split(k, 4)
        return {"wq": jax.random.normal(ks[0], (D, D), jnp.float32) * 0.02,
                "wk": jax.random.normal(ks[1], (D, D), jnp.float32) * 0.02,
                "wv": jax.random.normal(ks[2], (D, D), jnp.float32) * 0.02,
                "wo": jax.random.normal(ks[3], (D, D), jnp.float32) * 0.02}

    def ffn_params(k):
        k1, k2 = jax.random.split(k)
        return {"w1": jax.random.normal(k1, (D, latent), jnp.float32) * 0.02,
                "b1": jnp.zeros((latent,), jnp.float32),
                "w2": jax.random.normal(k2, (latent, D), jnp.float32) * 0.02,
                "b2": jnp.zeros((D,), jnp.float32)}

    def ln_params():
        return {"gamma": jnp.ones((D,), jnp.float32),
                "beta": jnp.zeros((D,), jnp.float32)}

    keys = jax.random.split(key, n_enc + n_dec)
    enc = []
    for i in range(n_enc):
        ka, kf = jax.random.split(keys[i])
        enc.append({"self_attn": attn_params(ka), "ffn": ffn_params(kf),
                    "ln1": ln_params(), "ln2": ln_params()})
    dec = []
    for i in range(n_dec):
        ka, kc, kf = jax.random.split(keys[n_enc + i], 3)
        dec.append({"self_attn": attn_params(ka), "cross_attn": attn_params(kc),
                    "ffn": ffn_params(kf),
                    "ln1": ln_params(), "ln2": ln_params(), "ln3": ln_params()})
    return {"encoder": enc, "decoder": dec}


# ---------------------------------------------------------------------------
# Main
# ---------------------------------------------------------------------------

if __name__ == "__main__":
    B, L_enc, L_dec, D = 2, 16, 8, 32
    num_heads = 4
    num_enc_layers = 2
    num_dec_layers = 2
    # TODO(synk): the original Transformer passes `dropout` positionally into
    # Encoder/Decoder's `latent_dim` slot, which would create a 0-width FFN and
    # crash in PyTorch; we use the intended DETR default latent_dim = 4*embed_dim.
    latent_dim = 4 * D

    key = jax.random.PRNGKey(0)
    k1, k2, k3, kp = jax.random.split(key, 4)
    image_features = jax.random.normal(k1, (B, L_enc, D), jnp.float32)
    q = jax.random.normal(k2, (B, L_dec, D), jnp.float32)
    out_pe = jax.random.normal(k3, (B, L_dec, D), jnp.float32)

    params = init_params(kp, D, num_enc_layers, num_dec_layers, latent_dim)

    fwd = jax.jit(functools.partial(transformer_forward, num_heads=num_heads))
    out = fwd(params, image_features, q, out_pe)
    jax.block_until_ready(out)
    assert out.shape == (B, L_dec, D) and out.dtype == jnp.float32
    assert bool(jnp.all(jnp.isfinite(out)))
    print("KERNEL_OK")
</pallas_src>

<mosaic_0001>
module attributes {stable_mosaic.version = 11 : i64} {
  func.func @_ffn_block_kernel(%arg0: i32, %arg1: memref<32x32xf32, #tpu.memory_space<vmem>>, %arg2: memref<32x128xf32, #tpu.memory_space<vmem>>, %arg3: memref<1x128xf32, #tpu.memory_space<vmem>>, %arg4: memref<128x32xf32, #tpu.memory_space<vmem>>, %arg5: memref<1x32xf32, #tpu.memory_space<vmem>>, %arg6: memref<1x32xf32, #tpu.memory_space<vmem>>, %arg7: memref<1x32xf32, #tpu.memory_space<vmem>>, %arg8: memref<32x32xf32, #tpu.memory_space<vmem>>) attributes {dimension_semantics = [#tpu.dimension_semantics<arbitrary>], iteration_bounds = array<i64: 1>, scalar_prefetch = 0 : i64, scratch_operands = 0 : i64, tpu.core_type = #tpu.core_type<tc>, window_params = [{pipeline_mode = #tpu.pipeline_mode<synchronous>, transform_indices = @transform_0, window_bounds = array<i64: 32, 32>}, {pipeline_mode = #tpu.pipeline_mode<synchronous>, transform_indices = @transform_1, window_bounds = array<i64: 32, 128>}, {pipeline_mode = #tpu.pipeline_mode<synchronous>, transform_indices = @transform_2, window_bounds = array<i64: 1, 128>}, {pipeline_mode = #tpu.pipeline_mode<synchronous>, transform_indices = @transform_3, window_bounds = array<i64: 128, 32>}, {pipeline_mode = #tpu.pipeline_mode<synchronous>, transform_indices = @transform_4, window_bounds = array<i64: 1, 32>}, {pipeline_mode = #tpu.pipeline_mode<synchronous>, transform_indices = @transform_5, window_bounds = array<i64: 1, 32>}, {pipeline_mode = #tpu.pipeline_mode<synchronous>, transform_indices = @transform_6, window_bounds = array<i64: 1, 32>}, {pipeline_mode = #tpu.pipeline_mode<synchronous>, transform_indices = @transform_7, window_bounds = array<i64: 32, 32>}]} {
    %c0 = arith.constant 0 : index
    %c0_0 = arith.constant 0 : index
    %0 = vector.load %arg1[%c0, %c0_0] : memref<32x32xf32, #tpu.memory_space<vmem>>, vector<32x32xf32>
    %c0_1 = arith.constant 0 : index
    %c0_2 = arith.constant 0 : index
    %1 = vector.load %arg2[%c0_1, %c0_2] : memref<32x128xf32, #tpu.memory_space<vmem>>, vector<32x128xf32>
    %cst = arith.constant dense<0.000000e+00> : vector<32x128xf32>
    %2 = tpu.matmul %0, %1, %cst {dimension_numbers = #tpu.dot_dimension_numbers<[1], [0], [0], [1], [0, 0, 1, 1], [], []>} : vector<32x32xf32>, vector<32x128xf32>, vector<32x128xf32> -> vector<32x128xf32>
    %c0_3 = arith.constant 0 : index
    %c0_4 = arith.constant 0 : index
    %3 = vector.load %arg3[%c0_3, %c0_4] : memref<1x128xf32, #tpu.memory_space<vmem>>, vector<1x128xf32>
    %4 = vector.broadcast %3 : vector<1x128xf32> to vector<32x128xf32>
    %5 = arith.addf %2, %4 : vector<32x128xf32>
    %cst_5 = arith.constant 0.000000e+00 : f32
    %6 = vector.broadcast %cst_5 : f32 to vector<32x128xf32>
    %7 = arith.maximumf %5, %6 : vector<32x128xf32>
    %c0_6 = arith.constant 0 : index
    %c0_7 = arith.constant 0 : index
    %8 = vector.load %arg4[%c0_6, %c0_7] : memref<128x32xf32, #tpu.memory_space<vmem>>, vector<128x32xf32>
    %cst_8 = arith.constant dense<0.000000e+00> : vector<32x32xf32>
    %9 = tpu.matmul %7, %8, %cst_8 {dimension_numbers = #tpu.dot_dimension_numbers<[1], [0], [0], [1], [0, 0, 1, 1], [], []>} : vector<32x128xf32>, vector<128x32xf32>, vector<32x32xf32> -> vector<32x32xf32>
    %c0_9 = arith.constant 0 : index
    %c0_10 = arith.constant 0 : index
    %10 = vector.load %arg5[%c0_9, %c0_10] : memref<1x32xf32, #tpu.memory_space<vmem>>, vector<1x32xf32>
    %11 = vector.broadcast %10 : vector<1x32xf32> to vector<32x32xf32>
    %12 = arith.addf %9, %11 : vector<32x32xf32>
    %13 = arith.addf %12, %0 : vector<32x32xf32>
    %cst_11 = arith.constant dense<0.000000e+00> : vector<32xf32>
    %14 = vector.multi_reduction <add>, %13, %cst_11 [1] : vector<32x32xf32> to vector<32xf32>
    %15 = vector.shape_cast %14 : vector<32xf32> to vector<32x1xf32>
    %cst_12 = arith.constant 3.200000e+01 : f32
    %16 = vector.broadcast %cst_12 : f32 to vector<32x1xf32>
    %17 = arith.divf %15, %16 : vector<32x1xf32>
    %18 = vector.broadcast %17 : vector<32x1xf32> to vector<32x32xf32>
    %19 = arith.subf %13, %18 : vector<32x32xf32>
    %20 = arith.mulf %19, %19 : vector<32x32xf32>
    %cst_13 = arith.constant dense<0.000000e+00> : vector<32xf32>
    %21 = vector.multi_reduction <add>, %20, %cst_13 [1] : vector<32x32xf32> to vector<32xf32>
    %22 = vector.shape_cast %21 : vector<32xf32> to vector<32x1xf32>
    %cst_14 = arith.constant 3.200000e+01 : f32
    %23 = vector.broadcast %cst_14 : f32 to vector<32x1xf32>
    %24 = arith.divf %22, %23 : vector<32x1xf32>
    %25 = vector.broadcast %17 : vector<32x1xf32> to vector<32x32xf32>
    %26 = arith.subf %13, %25 : vector<32x32xf32>
    %cst_15 = arith.constant 9.99999974E-6 : f32
    %27 = vector.broadcast %cst_15 : f32 to vector<32x1xf32>
    %28 = arith.addf %24, %27 : vector<32x1xf32>
    %29 = math.rsqrt %28 : vector<32x1xf32>
    %30 = vector.broadcast %29 : vector<32x1xf32> to vector<32x32xf32>
    %31 = arith.mulf %26, %30 : vector<32x32xf32>
    %c0_16 = arith.constant 0 : index
    %c0_17 = arith.constant 0 : index
    %32 = vector.load %arg6[%c0_16, %c0_17] : memref<1x32xf32, #tpu.memory_space<vmem>>, vector<1x32xf32>
    %33 = vector.broadcast %32 : vector<1x32xf32> to vector<32x32xf32>
    %34 = arith.mulf %31, %33 : vector<32x32xf32>
    %c0_18 = arith.constant 0 : index
    %c0_19 = arith.constant 0 : index
    %35 = vector.load %arg7[%c0_18, %c0_19] : memref<1x32xf32, #tpu.memory_space<vmem>>, vector<1x32xf32>
    %36 = vector.broadcast %35 : vector<1x32xf32> to vector<32x32xf32>
    %37 = arith.addf %34, %36 : vector<32x32xf32>
    %c0_20 = arith.constant 0 : index
    %c0_21 = arith.constant 0 : index
    %38 = vector.load %arg8[%c0_20, %c0_21] : memref<32x32xf32, #tpu.memory_space<vmem>>, vector<32x32xf32>
    tpu.vector_store %arg8[%c0_20, %c0_21], %37 {strides = array<i32>} : memref<32x32xf32, #tpu.memory_space<vmem>>, vector<32x32xf32>,
    return
  }
  func.func @transform_0(%arg0: i32) -> (i32, i32) {
    %c0_i32 = arith.constant 0 : i32
    %c0_i32_0 = arith.constant 0 : i32
    %c0_i32_1 = arith.constant 0 : i32
    return %c0_i32, %c0_i32_0 : i32, i32
  }
  func.func @transform_1(%arg0: i32) -> (i32, i32) {
    %c0_i32 = arith.constant 0 : i32
    %c0_i32_0 = arith.constant 0 : i32
    %c0_i32_1 = arith.constant 0 : i32
    return %c0_i32, %c0_i32_0 : i32, i32
  }
  func.func @transform_2(%arg0: i32) -> (i32, i32) {
    %c0_i32 = arith.constant 0 : i32
    %c0_i32_0 = arith.constant 0 : i32
    %c0_i32_1 = arith.constant 0 : i32
    return %c0_i32, %c0_i32_0 : i32, i32
  }
  func.func @transform_3(%arg0: i32) -> (i32, i32) {
    %c0_i32 = arith.constant 0 : i32
    %c0_i32_0 = arith.constant 0 : i32
    %c0_i32_1 = arith.constant 0 : i32
    return %c0_i32, %c0_i32_0 : i32, i32
  }
  func.func @transform_4(%arg0: i32) -> (i32, i32) {
    %c0_i32 = arith.constant 0 : i32
    %c0_i32_0 = arith.constant 0 : i32
    %c0_i32_1 = arith.constant 0 : i32
    return %c0_i32, %c0_i32_0 : i32, i32
  }
  func.func @transform_5(%arg0: i32) -> (i32, i32) {
    %c0_i32 = arith.constant 0 : i32
    %c0_i32_0 = arith.constant 0 : i32
    %c0_i32_1 = arith.constant 0 : i32
    return %c0_i32, %c0_i32_0 : i32, i32
  }
  func.func @transform_6(%arg0: i32) -> (i32, i32) {
    %c0_i32 = arith.constant 0 : i32
    %c0_i32_0 = arith.constant 0 : i32
    %c0_i32_1 = arith.constant 0 : i32
    return %c0_i32, %c0_i32_0 : i32, i32
  }
  func.func @transform_7(%arg0: i32) -> (i32, i32) {
    %c0_i32 = arith.constant 0 : i32
    %c0_i32_0 = arith.constant 0 : i32
    %c0_i32_1 = arith.constant 0 : i32
    return %c0_i32, %c0_i32_0 : i32, i32
  }
}

module attributes {stable_mosaic.version = 11 : i64} {
  func.func @_attn_block_kernel(%arg0: i32, %arg1: memref<16x32xf32, #tpu.memory_space<vmem>>, %arg2: memref<16x32xf32, #tpu.memory_space<vmem>>, %arg3: memref<16x32xf32, #tpu.memory_space<vmem>>, %arg4: memref<16x32xf32, #tpu.memory_space<vmem>>, %arg5: memref<2x16x32xf32, #tpu.memory_space<vmem>>, %arg6: memref<32x32xf32, #tpu.memory_space<vmem>>, %arg7: memref<32x32xf32, #tpu.memory_space<vmem>>, %arg8: memref<32x32xf32, #tpu.memory_space<vmem>>, %arg9: memref<32x32xf32, #tpu.memory_space<vmem>>, %arg10: memref<1x32xf32, #tpu.memory_space<vmem>>, %arg11: memref<1x32xf32, #tpu.memory_space<vmem>>, %arg12: memref<2x16x32xf32, #tpu.memory_space<vmem>>) attributes {dimension_semantics = [#tpu.dimension_semantics<arbitrary>], iteration_bounds = array<i64: 1>, scalar_prefetch = 0 : i64, scratch_operands = 0 : i64, tpu.core_type = #tpu.core_type<tc>, window_params = [{pipeline_mode = #tpu.pipeline_mode<synchronous>, transform_indices = @transform_0, window_bounds = array<i64: 16, 32>}, {pipeline_mode = #tpu.pipeline_mode<synchronous>, transform_indices = @transform_1, window_bounds = array<i64: 16, 32>}, {pipeline_mode = #tpu.pipeline_mode<synchronous>, transform_indices = @transform_2, window_bounds = array<i64: 16, 32>}, {pipeline_mode = #tpu.pipeline_mode<synchronous>, transform_indices = @transform_3, window_bounds = array<i64: 16, 32>}, {pipeline_mode = #tpu.pipeline_mode<synchronous>, transform_indices = @transform_4, window_bounds = array<i64: 2, 16, 32>}, {pipeline_mode = #tpu.pipeline_mode<synchronous>, transform_indices = @transform_5, window_bounds = array<i64: 32, 32>}, {pipeline_mode = #tpu.pipeline_mode<synchronous>, transform_indices = @transform_6, window_bounds = array<i64: 32, 32>}, {pipeline_mode = #tpu.pipeline_mode<synchronous>, transform_indices = @transform_7, window_bounds = array<i64: 32, 32>}, {pipeline_mode = #tpu.pipeline_mode<synchronous>, transform_indices = @transform_8, window_bounds = array<i64: 32, 32>}, {pipeline_mode = #tpu.pipeline_mode<synchronous>, transform_indices = @transform_9, window_bounds = array<i64: 1, 32>}, {pipeline_mode = #tpu.pipeline_mode<synchronous>, transform_indices = @transform_10, window_bounds = array<i64: 1, 32>}, {pipeline_mode = #tpu.pipeline_mode<synchronous>, transform_indices = @transform_11, window_bounds = array<i64: 2, 16, 32>}]} {
    %c0 = arith.constant 0 : index
    %c0_0 = arith.constant 0 : index
    %0 = vector.load %arg1[%c0, %c0_0] : memref<16x32xf32, #tpu.memory_space<vmem>>, vector<16x32xf32>
    %c0_1 = arith.constant 0 : index
    %c0_2 = arith.constant 0 : index
    %1 = vector.load %arg2[%c0_1, %c0_2] : memref<16x32xf32, #tpu.memory_space<vmem>>, vector<16x32xf32>
    %2 = arith.addf %0, %1 : vector<16x32xf32>
    %c0_3 = arith.constant 0 : index
    %c0_4 = arith.constant 0 : index
    %3 = vector.load %arg3[%c0_3, %c0_4] : memref<16x32xf32, #tpu.memory_space<vmem>>, vector<16x32xf32>
    %c0_5 = arith.constant 0 : index
    %c0_6 = arith.constant 0 : index
    %4 = vector.load %arg4[%c0_5, %c0_6] : memref<16x32xf32, #tpu.memory_space<vmem>>, vector<16x32xf32>
    %5 = arith.addf %3, %4 : vector<16x32xf32>
    %c0_7 = arith.constant 0 : index
    %c0_8 = arith.constant 0 : index
    %6 = vector.load %arg3[%c0_7, %c0_8] : memref<16x32xf32, #tpu.memory_space<vmem>>, vector<16x32xf32>
    %c0_9 = arith.constant 0 : index
    %c0_10 = arith.constant 0 : index
    %7 = vector.load %arg6[%c0_9, %c0_10] : memref<32x32xf32, #tpu.memory_space<vmem>>, vector<32x32xf32>
    %cst = arith.constant dense<0.000000e+00> : vector<16x32xf32>
    %8 = tpu.matmul %2, %7, %cst {dimension_numbers = #tpu.dot_dimension_numbers<[1], [0], [0], [1], [0, 0, 1, 1], [], []>} : vector<16x32xf32>, vector<32x32xf32>, vector<16x32xf32> -> vector<16x32xf32>
    %cst_11 = arith.constant 0.353553385 : f32
    %9 = vector.broadcast %cst_11 : f32 to vector<16x32xf32>
    %10 = arith.mulf %8, %9 : vector<16x32xf32>
    %c0_12 = arith.constant 0 : index
    %c0_13 = arith.constant 0 : index
    %11 = vector.load %arg7[%c0_12, %c0_13] : memref<32x32xf32, #tpu.memory_space<vmem>>, vector<32x32xf32>
    %cst_14 = arith.constant dense<0.000000e+00> : vector<16x32xf32>
    %12 = tpu.matmul %5, %11, %cst_14 {dimension_numbers = #tpu.dot_dimension_numbers<[1], [0], [0], [1], [0, 0, 1, 1], [], []>} : vector<16x32xf32>, vector<32x32xf32>, vector<16x32xf32> -> vector<16x32xf32>
    %c0_15 = arith.constant 0 : index
    %c0_16 = arith.constant 0 : index
    %13 = vector.load %arg8[%c0_15, %c0_16] : memref<32x32xf32, #tpu.memory_space<vmem>>, vector<32x32xf32>
    %cst_17 = arith.constant dense<0.000000e+00> : vector<16x32xf32>
    %14 = tpu.matmul %6, %13, %cst_17 {dimension_numbers = #tpu.dot_dimension_numbers<[1], [0], [0], [1], [0, 0, 1, 1], [], []>} : vector<16x32xf32>, vector<32x32xf32>, vector<16x32xf32> -> vector<16x32xf32>
    %15 = vector.extract_strided_slice %10 {offsets = [0, 0], sizes = [16, 8], strides = [1, 1]} : vector<16x32xf32> to vector<16x8xf32>
    %16 = vector.extract_strided_slice %12 {offsets = [0, 0], sizes = [16, 8], strides = [1, 1]} : vector<16x32xf32> to vector<16x8xf32>
    %17 = vector.extract_strided_slice %14 {offsets = [0, 0], sizes = [16, 8], strides = [1, 1]} : vector<16x32xf32> to vector<16x8xf32>
    %cst_18 = arith.constant dense<0.000000e+00> : vector<16x16xf32>
    %18 = tpu.matmul %15, %16, %cst_18 {dimension_numbers = #tpu.dot_dimension_numbers<[1], [1], [0], [0], [0, 0, 1, 0], [], []>} : vector<16x8xf32>, vector<16x8xf32>, vector<16x16xf32> -> vector<16x16xf32>
    %cst_19 = arith.constant dense<0xFF800000> : vector<16xf32>
    %19 = vector.multi_reduction <maximumf>, %18, %cst_19 [1] : vector<16x16xf32> to vector<16xf32>
    %20 = vector.shape_cast %19 : vector<16xf32> to vector<16x1xf32>
    %21 = vector.broadcast %20 : vector<16x1xf32> to vector<16x16xf32>
    %22 = arith.subf %18, %21 : vector<16x16xf32>
    %23 = math.exp %22 : vector<16x16xf32>
    %cst_20 = arith.constant dense<0.000000e+00> : vector<16xf32>
    %24 = vector.multi_reduction <add>, %23, %cst_20 [1] : vector<16x16xf32> to vector<16xf32>
    %25 = vector.shape_cast %24 : vector<16xf32> to vector<16x1xf32>
    %26 = tpu.reciprocal %25 {approx = true} : vector<16x1xf32> -> vector<16x1xf32>
    %27 = vector.broadcast %26 : vector<16x1xf32> to vector<16x16xf32>
    %28 = arith.mulf %23, %27 : vector<16x16xf32>
    %cst_21 = arith.constant dense<0.000000e+00> : vector<16x8xf32>
    %29 = tpu.matmul %28, %17, %cst_21 {dimension_numbers = #tpu.dot_dimension_numbers<[1], [0], [0], [1], [0, 0, 1, 1], [], []>} : vector<16x16xf32>, vector<16x8xf32>, vector<16x8xf32> -> vector<16x8xf32>
    %30 = vector.extract_strided_slice %10 {offsets = [0, 8], sizes = [16, 8], strides = [1, 1]} : vector<16x32xf32> to vector<16x8xf32>
    %31 = vector.extract_strided_slice %12 {offsets = [0, 8], sizes = [16, 8], strides = [1, 1]} : vector<16x32xf32> to vector<16x8xf32>
    %32 = vector.extract_strided_slice %14 {offsets = [0, 8], sizes = [16, 8], strides = [1, 1]} : vector<16x32xf32> to vector<16x8xf32>
    %cst_22 = arith.constant dense<0.000000e+00> : vector<16x16xf32>
    %33 = tpu.matmul %30, %31, %cst_22 {dimension_numbers = #tpu.dot_dimension_numbers<[1], [1], [0], [0], [0, 0, 1, 0], [], []>} : vector<16x8xf32>, vector<16x8xf32>, vector<16x16xf32> -> vector<16x16xf32>
    %cst_23 = arith.constant dense<0xFF800000> : vector<16xf32>
    %34 = vector.multi_reduction <maximumf>, %33, %cst_23 [1] : vector<16x16xf32> to vector<16xf32>
    %35 = vector.shape_cast %34 : vector<16xf32> to vector<16x1xf32>
    %36 = vector.broadcast %35 : vector<16x1xf32> to vector<16x16xf32>
    %37 = arith.subf %33, %36 : vector<16x16xf32>
    %38 = math.exp %37 : vector<16x16xf32>
    %cst_24 = arith.constant dense<0.000000e+00> : vector<16xf32>
    %39 = vector.multi_reduction <add>, %38, %cst_24 [1] : vector<16x16xf32> to vector<16xf32>
    %40 = vector.shape_cast %39 : vector<16xf32> to vector<16x1xf32>
    %41 = tpu.reciprocal %40 {approx = true} : vector<16x1xf32> -> vector<16x1xf32>
    %42 = vector.broadcast %41 : vector<16x1xf32> to vector<16x16xf32>
    %43 = arith.mulf %38, %42 : vector<16x16xf32>
    %cst_25 = arith.constant dense<0.000000e+00> : vector<16x8xf32>
    %44 = tpu.matmul %43, %32, %cst_25 {dimension_numbers = #tpu.dot_dimension_numbers<[1], [0], [0], [1], [0, 0, 1, 1], [], []>} : vector<16x16xf32>, vector<16x8xf32>, vector<16x8xf32> -> vector<16x8xf32>
    %45 = vector.extract_strided_slice %10 {offsets = [0, 16], sizes = [16, 8], strides = [1, 1]} : vector<16x32xf32> to vector<16x8xf32>
    %46 = vector.extract_strided_slice %12 {offsets = [0, 16], sizes = [16, 8], strides = [1, 1]} : vector<16x32xf32> to vector<16x8xf32>
    %47 = vector.extract_strided_slice %14 {offsets = [0, 16], sizes = [16, 8], strides = [1, 1]} : vector<16x32xf32> to vector<16x8xf32>
    %cst_26 = arith.constant dense<0.000000e+00> : vector<16x16xf32>
    %48 = tpu.matmul %45, %46, %cst_26 {dimension_numbers = #tpu.dot_dimension_numbers<[1], [1], [0], [0], [0, 0, 1, 0], [], []>} : vector<16x8xf32>, vector<16x8xf32>, vector<16x16xf32> -> vector<16x16xf32>
    %cst_27 = arith.constant dense<0xFF800000> : vector<16xf32>
    %49 = vector.multi_reduction <maximumf>, %48, %cst_27 [1] : vector<16x16xf32> to vector<16xf32>
    %50 = vector.shape_cast %49 : vector<16xf32> to vector<16x1xf32>
    %51 = vector.broadcast %50 : vector<16x1xf32> to vector<16x16xf32>
    %52 = arith.subf %48, %51 : vector<16x16xf32>
    %53 = math.exp %52 : vector<16x16xf32>
    %cst_28 = arith.constant dense<0.000000e+00> : vector<16xf32>
    %54 = vector.multi_reduction <add>, %53, %cst_28 [1] : vector<16x16xf32> to vector<16xf32>
    %55 = vector.shape_cast %54 : vector<16xf32> to vector<16x1xf32>
    %56 = tpu.reciprocal %55 {approx = true} : vector<16x1xf32> -> vector<16x1xf32>
    %57 = vector.broadcast %56 : vector<16x1xf32> to vector<16x16xf32>
    %58 = arith.mulf %53, %57 : vector<16x16xf32>
    %cst_29 = arith.constant dense<0.000000e+00> : vector<16x8xf32>
    %59 = tpu.matmul %58, %47, %cst_29 {dimension_numbers = #tpu.dot_dimension_numbers<[1], [0], [0], [1], [0, 0, 1, 1], [], []>} : vector<16x16xf32>, vector<16x8xf32>, vector<16x8xf32> -> vector<16x8xf32>
    %60 = vector.extract_strided_slice %10 {offsets = [0, 24], sizes = [16, 8], strides = [1, 1]} : vector<16x32xf32> to vector<16x8xf32>
    %61 = vector.extract_strided_slice %12 {offsets = [0, 24], sizes = [16, 8], strides = [1, 1]} : vector<16x32xf32> to vector<16x8xf32>
    %62 = vector.extract_strided_slice %14 {offsets = [0, 24], sizes = [16, 8], strides = [1, 1]} : vector<16x32xf32> to vector<16x8xf32>
    %cst_30 = arith.constant dense<0.000000e+00> : vector<16x16xf32>
    %63 = tpu.matmul %60, %61, %cst_30 {dimension_numbers = #tpu.dot_dimension_numbers<[1], [1], [0], [0], [0, 0, 1, 0], [], []>} : vector<16x8xf32>, vector<16x8xf32>, vector<16x16xf32> -> vector<16x16xf32>
    %cst_31 = arith.constant dense<0xFF800000> : vector<16xf32>
    %64 = vector.multi_reduction <maximumf>, %63, %cst_31 [1] : vector<16x16xf32> to vector<16xf32>
    %65 = vector.shape_cast %64 : vector<16xf32> to vector<16x1xf32>
    %66 = vector.broadcast %65 : vector<16x1xf32> to vector<16x16xf32>
    %67 = arith.subf %63, %66 : vector<16x16xf32>
    %68 = math.exp %67 : vector<16x16xf32>
    %cst_32 = arith.constant dense<0.000000e+00> : vector<16xf32>
    %69 = vector.multi_reduction <add>, %68, %cst_32 [1] : vector<16x16xf32> to vector<16xf32>
    %70 = vector.shape_cast %69 : vector<16xf32> to vector<16x1xf32>
    %71 = tpu.reciprocal %70 {approx = true} : vector<16x1xf32> -> vector<16x1xf32>
    %72 = vector.broadcast %71 : vector<16x1xf32> to vector<16x16xf32>
    %73 = arith.mulf %68, %72 : vector<16x16xf32>
    %cst_33 = arith.constant dense<0.000000e+00> : vector<16x8xf32>
    %74 = tpu.matmul %73, %62, %cst_33 {dimension_numbers = #tpu.dot_dimension_numbers<[1], [0], [0], [1], [0, 0, 1, 1], [], []>} : vector<16x16xf32>, vector<16x8xf32>, vector<16x8xf32> -> vector<16x8xf32>
    %75 = tpu.concatenate %29, %44, %59, %74 in 1 : vector<16x8xf32>, vector<16x8xf32>, vector<16x8xf32>, vector<16x8xf32> -> vector<16x32xf32>
    %c0_34 = arith.constant 0 : index
    %c0_35 = arith.constant 0 : index
    %76 = vector.load %arg9[%c0_34, %c0_35] : memref<32x32xf32, #tpu.memory_space<vmem>>, vector<32x32xf32>
    %cst_36 = arith.constant dense<0.000000e+00> : vector<16x32xf32>
    %77 = tpu.matmul %75, %76, %cst_36 {dimension_numbers = #tpu.dot_dimension_numbers<[1], [0], [0], [1], [0, 0, 1, 1], [], []>} : vector<16x32xf32>, vector<32x32xf32>, vector<16x32xf32> -> vector<16x32xf32>
    %78 = vector.shape_cast %77 : vector<16x32xf32> to vector<1x16x32xf32>
    %c0_37 = arith.constant 0 : index
    %c0_38 = arith.constant 0 : index
    %c0_39 = arith.constant 0 : index
    %79 = vector.load %arg5[%c0_37, %c0_38, %c0_39] : memref<2x16x32xf32, #tpu.memory_space<vmem>>, vector<2x16x32xf32>
    %80 = vector.broadcast %78 : vector<1x16x32xf32> to vector<2x16x32xf32>
    %81 = arith.addf %80, %79 : vector<2x16x32xf32>
    %cst_40 = arith.constant dense<0.000000e+00> : vector<2x16xf32>
    %82 = vector.multi_reduction <add>, %81, %cst_40 [2] : vector<2x16x32xf32> to vector<2x16xf32>
    %83 = vector.shape_cast %82 : vector<2x16xf32> to vector<2x16x1xf32>
    %cst_41 = arith.constant 3.200000e+01 : f32
    %84 = vector.broadcast %cst_41 : f32 to vector<2x16x1xf32>
    %85 = arith.divf %83, %84 : vector<2x16x1xf32>
    %86 = vector.broadcast %85 : vector<2x16x1xf32> to vector<2x16x32xf32>
    %87 = arith.subf %81, %86 : vector<2x16x32xf32>
    %88 = arith.mulf %87, %87 : vector<2x16x32xf32>
    %cst_42 = arith.constant dense<0.000000e+00> : vector<2x16xf32>
    %89 = vector.multi_reduction <add>, %88, %cst_42 [2] : vector<2x16x32xf32> to vector<2x16xf32>
    %90 = vector.shape_cast %89 : vector<2x16xf32> to vector<2x16x1xf32>
    %cst_43 = arith.constant 3.200000e+01 : f32
    %91 = vector.broadcast %cst_43 : f32 to vector<2x16x1xf32>
    %92 = arith.divf %90, %91 : vector<2x16x1xf32>
    %93 = vector.broadcast %85 : vector<2x16x1xf32> to vector<2x16x32xf32>
    %94 = arith.subf %81, %93 : vector<2x16x32xf32>
    %cst_44 = arith.constant 9.99999974E-6 : f32
    %95 = vector.broadcast %cst_44 : f32 to vector<2x16x1xf32>
    %96 = arith.addf %92, %95 : vector<2x16x1xf32>
    %97 = math.rsqrt %96 : vector<2x16x1xf32>
    %98 = vector.broadcast %97 : vector<2x16x1xf32> to vector<2x16x32xf32>
    %99 = arith.mulf %94, %98 : vector<2x16x32xf32>
    %c0_45 = arith.constant 0 : index
    %c0_46 = arith.constant 0 : index
    %100 = vector.load %arg10[%c0_45, %c0_46] : memref<1x32xf32, #tpu.memory_space<vmem>>, vector<1x32xf32>
    %101 = vector.shape_cast %100 : vector<1x32xf32> to vector<1x1x32xf32>
    %102 = vector.broadcast %101 : vector<1x1x32xf32> to vector<2x16x32xf32>
    %103 = arith.mulf %99, %102 : vector<2x16x32xf32>
    %c0_47 = arith.constant 0 : index
    %c0_48 = arith.constant 0 : index
    %104 = vector.load %arg11[%c0_47, %c0_48] : memref<1x32xf32, #tpu.memory_space<vmem>>, vector<1x32xf32>
    %105 = vector.shape_cast %104 : vector<1x32xf32> to vector<1x1x32xf32>
    %106 = vector.broadcast %105 : vector<1x1x32xf32> to vector<2x16x32xf32>
    %107 = arith.addf %103, %106 : vector<2x16x32xf32>
    %c0_49 = arith.constant 0 : index
    %c0_50 = arith.constant 0 : index
    %c0_51 = arith.constant 0 : index
    %108 = vector.load %arg12[%c0_49, %c0_50, %c0_51] : memref<2x16x32xf32, #tpu.memory_space<vmem>>, vector<2x16x32xf32>
    tpu.vector_store %arg12[%c0_49, %c0_50, %c0_51], %107 {strides = array<i32>} : memref<2x16x32xf32, #tpu.memory_space<vmem>>, vector<2x16x32xf32>,
    return
  }
  func.func @transform_0(%arg0: i32) -> (i32, i32) {
    %c0_i32 = arith.constant 0 : i32
    %c0_i32_0 = arith.constant 0 : i32
    %c0_i32_1 = arith.constant 0 : i32
    return %c0_i32, %c0_i32_0 : i32, i32
  }
  func.func @transform_1(%arg0: i32) -> (i32, i32) {
    %c0_i32 = arith.constant 0 : i32
    %c0_i32_0 = arith.constant 0 : i32
    %c0_i32_1 = arith.constant 0 : i32
    return %c0_i32, %c0_i32_0 : i32, i32
  }
  func.func @transform_2(%arg0: i32) -> (i32, i32) {
    %c0_i32 = arith.constant 0 : i32
    %c0_i32_0 = arith.constant 0 : i32
    %c0_i32_1 = arith.constant 0 : i32
    return %c0_i32, %c0_i32_0 : i32, i32
  }
  func.func @transform_3(%arg0: i32) -> (i32, i32) {
    %c0_i32 = arith.constant 0 : i32
    %c0_i32_0 = arith.constant 0 : i32
    %c0_i32_1 = arith.constant 0 : i32
    return %c0_i32, %c0_i32_0 : i32, i32
  }
  func.func @transform_4(%arg0: i32) -> (i32, i32, i32) {
    %c0_i32 = arith.constant 0 : i32
    %c0_i32_0 = arith.constant 0 : i32
    %c0_i32_1 = arith.constant 0 : i32
    %c0_i32_2 = arith.constant 0 : i32
    return %c0_i32, %c0_i32_0, %c0_i32_1 : i32, i32, i32
  }
  func.func @transform_5(%arg0: i32) -> (i32, i32) {
    %c0_i32 = arith.constant 0 : i32
    %c0_i32_0 = arith.constant 0 : i32
    %c0_i32_1 = arith.constant 0 : i32
    return %c0_i32, %c0_i32_0 : i32, i32
  }
  func.func @transform_6(%arg0: i32) -> (i32, i32) {
    %c0_i32 = arith.constant 0 : i32
    %c0_i32_0 = arith.constant 0 : i32
    %c0_i32_1 = arith.constant 0 : i32
    return %c0_i32, %c0_i32_0 : i32, i32
  }
  func.func @transform_7(%arg0: i32) -> (i32, i32) {
    %c0_i32 = arith.constant 0 : i32
    %c0_i32_0 = arith.constant 0 : i32
    %c0_i32_1 = arith.constant 0 : i32
    return %c0_i32, %c0_i32_0 : i32, i32
  }
  func.func @transform_8(%arg0: i32) -> (i32, i32) {
    %c0_i32 = arith.constant 0 : i32
    %c0_i32_0 = arith.constant 0 : i32
    %c0_i32_1 = arith.constant 0 : i32
    return %c0_i32, %c0_i32_0 : i32, i32
  }
  func.func @transform_9(%arg0: i32) -> (i32, i32) {
    %c0_i32 = arith.constant 0 : i32
    %c0_i32_0 = arith.constant 0 : i32
    %c0_i32_1 = arith.constant 0 : i32
    return %c0_i32, %c0_i32_0 : i32, i32
  }
  func.func @transform_10(%arg0: i32) -> (i32, i32) {
    %c0_i32 = arith.constant 0 : i32
    %c0_i32_0 = arith.constant 0 : i32
    %c0_i32_1 = arith.constant 0 : i32
    return %c0_i32, %c0_i32_0 : i32, i32
  }
  func.func @transform_11(%arg0: i32) -> (i32, i32, i32) {
    %c0_i32 = arith.constant 0 : i32
    %c0_i32_0 = arith.constant 0 : i32
    %c0_i32_1 = arith.constant 0 : i32
    %c0_i32_2 = arith.constant 0 : i32
    return %c0_i32, %c0_i32_0, %c0_i32_1 : i32, i32, i32
  }
}

module attributes {stable_mosaic.version = 11 : i64} {
  func.func @_attn_block_kernel(%arg0: i32, %arg1: memref<8x32xf32, #tpu.memory_space<vmem>>, %arg2: memref<8x32xf32, #tpu.memory_space<vmem>>, %arg3: memref<8x32xf32, #tpu.memory_space<vmem>>, %arg4: memref<8x32xf32, #tpu.memory_space<vmem>>, %arg5: memref<2x8x32xf32, #tpu.memory_space<vmem>>, %arg6: memref<32x32xf32, #tpu.memory_space<vmem>>, %arg7: memref<32x32xf32, #tpu.memory_space<vmem>>, %arg8: memref<32x32xf32, #tpu.memory_space<vmem>>, %arg9: memref<32x32xf32, #tpu.memory_space<vmem>>, %arg10: memref<1x32xf32, #tpu.memory_space<vmem>>, %arg11: memref<1x32xf32, #tpu.memory_space<vmem>>, %arg12: memref<2x8x32xf32, #tpu.memory_space<vmem>>) attributes {dimension_semantics = [#tpu.dimension_semantics<arbitrary>], iteration_bounds = array<i64: 1>, scalar_prefetch = 0 : i64, scratch_operands = 0 : i64, tpu.core_type = #tpu.core_type<tc>, window_params = [{pipeline_mode = #tpu.pipeline_mode<synchronous>, transform_indices = @transform_0, window_bounds = array<i64: 8, 32>}, {pipeline_mode = #tpu.pipeline_mode<synchronous>, transform_indices = @transform_1, window_bounds = array<i64: 8, 32>}, {pipeline_mode = #tpu.pipeline_mode<synchronous>, transform_indices = @transform_2, window_bounds = array<i64: 8, 32>}, {pipeline_mode = #tpu.pipeline_mode<synchronous>, transform_indices = @transform_3, window_bounds = array<i64: 8, 32>}, {pipeline_mode = #tpu.pipeline_mode<synchronous>, transform_indices = @transform_4, window_bounds = array<i64: 2, 8, 32>}, {pipeline_mode = #tpu.pipeline_mode<synchronous>, transform_indices = @transform_5, window_bounds = array<i64: 32, 32>}, {pipeline_mode = #tpu.pipeline_mode<synchronous>, transform_indices = @transform_6, window_bounds = array<i64: 32, 32>}, {pipeline_mode = #tpu.pipeline_mode<synchronous>, transform_indices = @transform_7, window_bounds = array<i64: 32, 32>}, {pipeline_mode = #tpu.pipeline_mode<synchronous>, transform_indices = @transform_8, window_bounds = array<i64: 32, 32>}, {pipeline_mode = #tpu.pipeline_mode<synchronous>, transform_indices = @transform_9, window_bounds = array<i64: 1, 32>}, {pipeline_mode = #tpu.pipeline_mode<synchronous>, transform_indices = @transform_10, window_bounds = array<i64: 1, 32>}, {pipeline_mode = #tpu.pipeline_mode<synchronous>, transform_indices = @transform_11, window_bounds = array<i64: 2, 8, 32>}]} {
    %c0 = arith.constant 0 : index
    %c0_0 = arith.constant 0 : index
    %0 = vector.load %arg1[%c0, %c0_0] : memref<8x32xf32, #tpu.memory_space<vmem>>, vector<8x32xf32>
    %c0_1 = arith.constant 0 : index
    %c0_2 = arith.constant 0 : index
    %1 = vector.load %arg2[%c0_1, %c0_2] : memref<8x32xf32, #tpu.memory_space<vmem>>, vector<8x32xf32>
    %2 = arith.addf %0, %1 : vector<8x32xf32>
    %c0_3 = arith.constant 0 : index
    %c0_4 = arith.constant 0 : index
    %3 = vector.load %arg3[%c0_3, %c0_4] : memref<8x32xf32, #tpu.memory_space<vmem>>, vector<8x32xf32>
    %c0_5 = arith.constant 0 : index
    %c0_6 = arith.constant 0 : index
    %4 = vector.load %arg4[%c0_5, %c0_6] : memref<8x32xf32, #tpu.memory_space<vmem>>, vector<8x32xf32>
    %5 = arith.addf %3, %4 : vector<8x32xf32>
    %c0_7 = arith.constant 0 : index
    %c0_8 = arith.constant 0 : index
    %6 = vector.load %arg3[%c0_7, %c0_8] : memref<8x32xf32, #tpu.memory_space<vmem>>, vector<8x32xf32>
    %c0_9 = arith.constant 0 : index
    %c0_10 = arith.constant 0 : index
    %7 = vector.load %arg6[%c0_9, %c0_10] : memref<32x32xf32, #tpu.memory_space<vmem>>, vector<32x32xf32>
    %cst = arith.constant dense<0.000000e+00> : vector<8x32xf32>
    %8 = tpu.matmul %2, %7, %cst {dimension_numbers = #tpu.dot_dimension_numbers<[1], [0], [0], [1], [0, 0, 1, 1], [], []>} : vector<8x32xf32>, vector<32x32xf32>, vector<8x32xf32> -> vector<8x32xf32>
    %cst_11 = arith.constant 0.353553385 : f32
    %9 = vector.broadcast %cst_11 : f32 to vector<8x32xf32>
    %10 = arith.mulf %8, %9 : vector<8x32xf32>
    %c0_12 = arith.constant 0 : index
    %c0_13 = arith.constant 0 : index
    %11 = vector.load %arg7[%c0_12, %c0_13] : memref<32x32xf32, #tpu.memory_space<vmem>>, vector<32x32xf32>
    %cst_14 = arith.constant dense<0.000000e+00> : vector<8x32xf32>
    %12 = tpu.matmul %5, %11, %cst_14 {dimension_numbers = #tpu.dot_dimension_numbers<[1], [0], [0], [1], [0, 0, 1, 1], [], []>} : vector<8x32xf32>, vector<32x32xf32>, vector<8x32xf32> -> vector<8x32xf32>
    %c0_15 = arith.constant 0 : index
    %c0_16 = arith.constant 0 : index
    %13 = vector.load %arg8[%c0_15, %c0_16] : memref<32x32xf32, #tpu.memory_space<vmem>>, vector<32x32xf32>
    %cst_17 = arith.constant dense<0.000000e+00> : vector<8x32xf32>
    %14 = tpu.matmul %6, %13, %cst_17 {dimension_numbers = #tpu.dot_dimension_numbers<[1], [0], [0], [1], [0, 0, 1, 1], [], []>} : vector<8x32xf32>, vector<32x32xf32>, vector<8x32xf32> -> vector<8x32xf32>
    %15 = vector.extract_strided_slice %10 {offsets = [0, 0], sizes = [8, 8], strides = [1, 1]} : vector<8x32xf32> to vector<8x8xf32>
    %16 = vector.extract_strided_slice %12 {offsets = [0, 0], sizes = [8, 8], strides = [1, 1]} : vector<8x32xf32> to vector<8x8xf32>
    %17 = vector.extract_strided_slice %14 {offsets = [0, 0], sizes = [8, 8], strides = [1, 1]} : vector<8x32xf32> to vector<8x8xf32>
    %cst_18 = arith.constant dense<0.000000e+00> : vector<8x8xf32>
    %18 = tpu.matmul %15, %16, %cst_18 {dimension_numbers = #tpu.dot_dimension_numbers<[1], [1], [0], [0], [0, 0, 1, 0], [], []>} : vector<8x8xf32>, vector<8x8xf32>, vector<8x8xf32> -> vector<8x8xf32>
    %cst_19 = arith.constant dense<0xFF800000> : vector<8xf32>
    %19 = vector.multi_reduction <maximumf>, %18, %cst_19 [1] : vector<8x8xf32> to vector<8xf32>
    %20 = vector.shape_cast %19 : vector<8xf32> to vector<8x1xf32>
    %21 = vector.broadcast %20 : vector<8x1xf32> to vector<8x8xf32>
    %22 = arith.subf %18, %21 : vector<8x8xf32>
    %23 = math.exp %22 : vector<8x8xf32>
    %cst_20 = arith.constant dense<0.000000e+00> : vector<8xf32>
    %24 = vector.multi_reduction <add>, %23, %cst_20 [1] : vector<8x8xf32> to vector<8xf32>
    %25 = vector.shape_cast %24 : vector<8xf32> to vector<8x1xf32>
    %26 = tpu.reciprocal %25 {approx = true} : vector<8x1xf32> -> vector<8x1xf32>
    %27 = vector.broadcast %26 : vector<8x1xf32> to vector<8x8xf32>
    %28 = arith.mulf %23, %27 : vector<8x8xf32>
    %cst_21 = arith.constant dense<0.000000e+00> : vector<8x8xf32>
    %29 = tpu.matmul %28, %17, %cst_21 {dimension_numbers = #tpu.dot_dimension_numbers<[1], [0], [0], [1], [0, 0, 1, 1], [], []>} : vector<8x8xf32>, vector<8x8xf32>, vector<8x8xf32> -> vector<8x8xf32>
    %30 = vector.extract_strided_slice %10 {offsets = [0, 8], sizes = [8, 8], strides = [1, 1]} : vector<8x32xf32> to vector<8x8xf32>
    %31 = vector.extract_strided_slice %12 {offsets = [0, 8], sizes = [8, 8], strides = [1, 1]} : vector<8x32xf32> to vector<8x8xf32>
    %32 = vector.extract_strided_slice %14 {offsets = [0, 8], sizes = [8, 8], strides = [1, 1]} : vector<8x32xf32> to vector<8x8xf32>
    %cst_22 = arith.constant dense<0.000000e+00> : vector<8x8xf32>
    %33 = tpu.matmul %30, %31, %cst_22 {dimension_numbers = #tpu.dot_dimension_numbers<[1], [1], [0], [0], [0, 0, 1, 0], [], []>} : vector<8x8xf32>, vector<8x8xf32>, vector<8x8xf32> -> vector<8x8xf32>
    %cst_23 = arith.constant dense<0xFF800000> : vector<8xf32>
    %34 = vector.multi_reduction <maximumf>, %33, %cst_23 [1] : vector<8x8xf32> to vector<8xf32>
    %35 = vector.shape_cast %34 : vector<8xf32> to vector<8x1xf32>
    %36 = vector.broadcast %35 : vector<8x1xf32> to vector<8x8xf32>
    %37 = arith.subf %33, %36 : vector<8x8xf32>
    %38 = math.exp %37 : vector<8x8xf32>
    %cst_24 = arith.constant dense<0.000000e+00> : vector<8xf32>
    %39 = vector.multi_reduction <add>, %38, %cst_24 [1] : vector<8x8xf32> to vector<8xf32>
    %40 = vector.shape_cast %39 : vector<8xf32> to vector<8x1xf32>
    %41 = tpu.reciprocal %40 {approx = true} : vector<8x1xf32> -> vector<8x1xf32>
    %42 = vector.broadcast %41 : vector<8x1xf32> to vector<8x8xf32>
    %43 = arith.mulf %38, %42 : vector<8x8xf32>
    %cst_25 = arith.constant dense<0.000000e+00> : vector<8x8xf32>
    %44 = tpu.matmul %43, %32, %cst_25 {dimension_numbers = #tpu.dot_dimension_numbers<[1], [0], [0], [1], [0, 0, 1, 1], [], []>} : vector<8x8xf32>, vector<8x8xf32>, vector<8x8xf32> -> vector<8x8xf32>
    %45 = vector.extract_strided_slice %10 {offsets = [0, 16], sizes = [8, 8], strides = [1, 1]} : vector<8x32xf32> to vector<8x8xf32>
    %46 = vector.extract_strided_slice %12 {offsets = [0, 16], sizes = [8, 8], strides = [1, 1]} : vector<8x32xf32> to vector<8x8xf32>
    %47 = vector.extract_strided_slice %14 {offsets = [0, 16], sizes = [8, 8], strides = [1, 1]} : vector<8x32xf32> to vector<8x8xf32>
    %cst_26 = arith.constant dense<0.000000e+00> : vector<8x8xf32>
    %48 = tpu.matmul %45, %46, %cst_26 {dimension_numbers = #tpu.dot_dimension_numbers<[1], [1], [0], [0], [0, 0, 1, 0], [], []>} : vector<8x8xf32>, vector<8x8xf32>, vector<8x8xf32> -> vector<8x8xf32>
    %cst_27 = arith.constant dense<0xFF800000> : vector<8xf32>
    %49 = vector.multi_reduction <maximumf>, %48, %cst_27 [1] : vector<8x8xf32> to vector<8xf32>
    %50 = vector.shape_cast %49 : vector<8xf32> to vector<8x1xf32>
    %51 = vector.broadcast %50 : vector<8x1xf32> to vector<8x8xf32>
    %52 = arith.subf %48, %51 : vector<8x8xf32>
    %53 = math.exp %52 : vector<8x8xf32>
    %cst_28 = arith.constant dense<0.000000e+00> : vector<8xf32>
    %54 = vector.multi_reduction <add>, %53, %cst_28 [1] : vector<8x8xf32> to vector<8xf32>
    %55 = vector.shape_cast %54 : vector<8xf32> to vector<8x1xf32>
    %56 = tpu.reciprocal %55 {approx = true} : vector<8x1xf32> -> vector<8x1xf32>
    %57 = vector.broadcast %56 : vector<8x1xf32> to vector<8x8xf32>
    %58 = arith.mulf %53, %57 : vector<8x8xf32>
    %cst_29 = arith.constant dense<0.000000e+00> : vector<8x8xf32>
    %59 = tpu.matmul %58, %47, %cst_29 {dimension_numbers = #tpu.dot_dimension_numbers<[1], [0], [0], [1], [0, 0, 1, 1], [], []>} : vector<8x8xf32>, vector<8x8xf32>, vector<8x8xf32> -> vector<8x8xf32>
    %60 = vector.extract_strided_slice %10 {offsets = [0, 24], sizes = [8, 8], strides = [1, 1]} : vector<8x32xf32> to vector<8x8xf32>
    %61 = vector.extract_strided_slice %12 {offsets = [0, 24], sizes = [8, 8], strides = [1, 1]} : vector<8x32xf32> to vector<8x8xf32>
    %62 = vector.extract_strided_slice %14 {offsets = [0, 24], sizes = [8, 8], strides = [1, 1]} : vector<8x32xf32> to vector<8x8xf32>
    %cst_30 = arith.constant dense<0.000000e+00> : vector<8x8xf32>
    %63 = tpu.matmul %60, %61, %cst_30 {dimension_numbers = #tpu.dot_dimension_numbers<[1], [1], [0], [0], [0, 0, 1, 0], [], []>} : vector<8x8xf32>, vector<8x8xf32>, vector<8x8xf32> -> vector<8x8xf32>
    %cst_31 = arith.constant dense<0xFF800000> : vector<8xf32>
    %64 = vector.multi_reduction <maximumf>, %63, %cst_31 [1] : vector<8x8xf32> to vector<8xf32>
    %65 = vector.shape_cast %64 : vector<8xf32> to vector<8x1xf32>
    %66 = vector.broadcast %65 : vector<8x1xf32> to vector<8x8xf32>
    %67 = arith.subf %63, %66 : vector<8x8xf32>
    %68 = math.exp %67 : vector<8x8xf32>
    %cst_32 = arith.constant dense<0.000000e+00> : vector<8xf32>
    %69 = vector.multi_reduction <add>, %68, %cst_32 [1] : vector<8x8xf32> to vector<8xf32>
    %70 = vector.shape_cast %69 : vector<8xf32> to vector<8x1xf32>
    %71 = tpu.reciprocal %70 {approx = true} : vector<8x1xf32> -> vector<8x1xf32>
    %72 = vector.broadcast %71 : vector<8x1xf32> to vector<8x8xf32>
    %73 = arith.mulf %68, %72 : vector<8x8xf32>
    %cst_33 = arith.constant dense<0.000000e+00> : vector<8x8xf32>
    %74 = tpu.matmul %73, %62, %cst_33 {dimension_numbers = #tpu.dot_dimension_numbers<[1], [0], [0], [1], [0, 0, 1, 1], [], []>} : vector<8x8xf32>, vector<8x8xf32>, vector<8x8xf32> -> vector<8x8xf32>
    %75 = tpu.concatenate %29, %44, %59, %74 in 1 : vector<8x8xf32>, vector<8x8xf32>, vector<8x8xf32>, vector<8x8xf32> -> vector<8x32xf32>
    %c0_34 = arith.constant 0 : index
    %c0_35 = arith.constant 0 : index
    %76 = vector.load %arg9[%c0_34, %c0_35] : memref<32x32xf32, #tpu.memory_space<vmem>>, vector<32x32xf32>
    %cst_36 = arith.constant dense<0.000000e+00> : vector<8x32xf32>
    %77 = tpu.matmul %75, %76, %cst_36 {dimension_numbers = #tpu.dot_dimension_numbers<[1], [0], [0], [1], [0, 0, 1, 1], [], []>} : vector<8x32xf32>, vector<32x32xf32>, vector<8x32xf32> -> vector<8x32xf32>
    %78 = vector.shape_cast %77 : vector<8x32xf32> to vector<1x8x32xf32>
    %c0_37 = arith.constant 0 : index
    %c0_38 = arith.constant 0 : index
    %c0_39 = arith.constant 0 : index
    %79 = vector.load %arg5[%c0_37, %c0_38, %c0_39] : memref<2x8x32xf32, #tpu.memory_space<vmem>>, vector<2x8x32xf32>
    %80 = vector.broadcast %78 : vector<1x8x32xf32> to vector<2x8x32xf32>
    %81 = arith.addf %80, %79 : vector<2x8x32xf32>
    %cst_40 = arith.constant dense<0.000000e+00> : vector<2x8xf32>
    %82 = vector.multi_reduction <add>, %81, %cst_40 [2] : vector<2x8x32xf32> to vector<2x8xf32>
    %83 = vector.shape_cast %82 : vector<2x8xf32> to vector<2x8x1xf32>
    %cst_41 = arith.constant 3.200000e+01 : f32
    %84 = vector.broadcast %cst_41 : f32 to vector<2x8x1xf32>
    %85 = arith.divf %83, %84 : vector<2x8x1xf32>
    %86 = vector.broadcast %85 : vector<2x8x1xf32> to vector<2x8x32xf32>
    %87 = arith.subf %81, %86 : vector<2x8x32xf32>
    %88 = arith.mulf %87, %87 : vector<2x8x32xf32>
    %cst_42 = arith.constant dense<0.000000e+00> : vector<2x8xf32>
    %89 = vector.multi_reduction <add>, %88, %cst_42 [2] : vector<2x8x32xf32> to vector<2x8xf32>
    %90 = vector.shape_cast %89 : vector<2x8xf32> to vector<2x8x1xf32>
    %cst_43 = arith.constant 3.200000e+01 : f32
    %91 = vector.broadcast %cst_43 : f32 to vector<2x8x1xf32>
    %92 = arith.divf %90, %91 : vector<2x8x1xf32>
    %93 = vector.broadcast %85 : vector<2x8x1xf32> to vector<2x8x32xf32>
    %94 = arith.subf %81, %93 : vector<2x8x32xf32>
    %cst_44 = arith.constant 9.99999974E-6 : f32
    %95 = vector.broadcast %cst_44 : f32 to vector<2x8x1xf32>
    %96 = arith.addf %92, %95 : vector<2x8x1xf32>
    %97 = math.rsqrt %96 : vector<2x8x1xf32>
    %98 = vector.broadcast %97 : vector<2x8x1xf32> to vector<2x8x32xf32>
    %99 = arith.mulf %94, %98 : vector<2x8x32xf32>
    %c0_45 = arith.constant 0 : index
    %c0_46 = arith.constant 0 : index
    %100 = vector.load %arg10[%c0_45, %c0_46] : memref<1x32xf32, #tpu.memory_space<vmem>>, vector<1x32xf32>
    %101 = vector.shape_cast %100 : vector<1x32xf32> to vector<1x1x32xf32>
    %102 = vector.broadcast %101 : vector<1x1x32xf32> to vector<2x8x32xf32>
    %103 = arith.mulf %99, %102 : vector<2x8x32xf32>
    %c0_47 = arith.constant 0 : index
    %c0_48 = arith.constant 0 : index
    %104 = vector.load %arg11[%c0_47, %c0_48] : memref<1x32xf32, #tpu.memory_space<vmem>>, vector<1x32xf32>
    %105 = vector.shape_cast %104 : vector<1x32xf32> to vector<1x1x32xf32>
    %106 = vector.broadcast %105 : vector<1x1x32xf32> to vector<2x8x32xf32>
    %107 = arith.addf %103, %106 : vector<2x8x32xf32>
    %c0_49 = arith.constant 0 : index
    %c0_50 = arith.constant 0 : index
    %c0_51 = arith.constant 0 : index
    %108 = vector.load %arg12[%c0_49, %c0_50, %c0_51] : memref<2x8x32xf32, #tpu.memory_space<vmem>>, vector<2x8x32xf32>
    tpu.vector_store %arg12[%c0_49, %c0_50, %c0_51], %107 {strides = array<i32>} : memref<2x8x32xf32, #tpu.memory_space<vmem>>, vector<2x8x32xf32>,
    return
  }
  func.func @transform_0(%arg0: i32) -> (i32, i32) {
    %c0_i32 = arith.constant 0 : i32
    %c0_i32_0 = arith.constant 0 : i32
    %c0_i32_1 = arith.constant 0 : i32
    return %c0_i32, %c0_i32_0 : i32, i32
  }
  func.func @transform_1(%arg0: i32) -> (i32, i32) {
    %c0_i32 = arith.constant 0 : i32
    %c0_i32_0 = arith.constant 0 : i32
    %c0_i32_1 = arith.constant 0 : i32
    return %c0_i32, %c0_i32_0 : i32, i32
  }
  func.func @transform_2(%arg0: i32) -> (i32, i32) {
    %c0_i32 = arith.constant 0 : i32
    %c0_i32_0 = arith.constant 0 : i32
    %c0_i32_1 = arith.constant 0 : i32
    return %c0_i32, %c0_i32_0 : i32, i32
  }
  func.func @transform_3(%arg0: i32) -> (i32, i32) {
    %c0_i32 = arith.constant 0 : i32
    %c0_i32_0 = arith.constant 0 : i32
    %c0_i32_1 = arith.constant 0 : i32
    return %c0_i32, %c0_i32_0 : i32, i32
  }
  func.func @transform_4(%arg0: i32) -> (i32, i32, i32) {
    %c0_i32 = arith.constant 0 : i32
    %c0_i32_0 = arith.constant 0 : i32
    %c0_i32_1 = arith.constant 0 : i32
    %c0_i32_2 = arith.constant 0 : i32
    return %c0_i32, %c0_i32_0, %c0_i32_1 : i32, i32, i32
  }
  func.func @transform_5(%arg0: i32) -> (i32, i32) {
    %c0_i32 = arith.constant 0 : i32
    %c0_i32_0 = arith.constant 0 : i32
    %c0_i32_1 = arith.constant 0 : i32
    return %c0_i32, %c0_i32_0 : i32, i32
  }
  func.func @transform_6(%arg0: i32) -> (i32, i32) {
    %c0_i32 = arith.constant 0 : i32
    %c0_i32_0 = arith.constant 0 : i32
    %c0_i32_1 = arith.constant 0 : i32
    return %c0_i32, %c0_i32_0 : i32, i32
  }
  func.func @transform_7(%arg0: i32) -> (i32, i32) {
    %c0_i32 = arith.constant 0 : i32
    %c0_i32_0 = arith.constant 0 : i32
    %c0_i32_1 = arith.constant 0 : i32
    return %c0_i32, %c0_i32_0 : i32, i32
  }
  func.func @transform_8(%arg0: i32) -> (i32, i32) {
    %c0_i32 = arith.constant 0 : i32
    %c0_i32_0 = arith.constant 0 : i32
    %c0_i32_1 = arith.constant 0 : i32
    return %c0_i32, %c0_i32_0 : i32, i32
  }
  func.func @transform_9(%arg0: i32) -> (i32, i32) {
    %c0_i32 = arith.constant 0 : i32
    %c0_i32_0 = arith.constant 0 : i32
    %c0_i32_1 = arith.constant 0 : i32
    return %c0_i32, %c0_i32_0 : i32, i32
  }
  func.func @transform_10(%arg0: i32) -> (i32, i32) {
    %c0_i32 = arith.constant 0 : i32
    %c0_i32_0 = arith.constant 0 : i32
    %c0_i32_1 = arith.constant 0 : i32
    return %c0_i32, %c0_i32_0 : i32, i32
  }
  func.func @transform_11(%arg0: i32) -> (i32, i32, i32) {
    %c0_i32 = arith.constant 0 : i32
    %c0_i32_0 = arith.constant 0 : i32
    %c0_i32_1 = arith.constant 0 : i32
    %c0_i32_2 = arith.constant 0 : i32
    return %c0_i32, %c0_i32_0, %c0_i32_1 : i32, i32, i32
  }
}

module attributes {stable_mosaic.version = 11 : i64} {
  func.func @_attn_block_kernel(%arg0: i32, %arg1: memref<8x32xf32, #tpu.memory_space<vmem>>, %arg2: memref<8x32xf32, #tpu.memory_space<vmem>>, %arg3: memref<16x32xf32, #tpu.memory_space<vmem>>, %arg4: memref<16x32xf32, #tpu.memory_space<vmem>>, %arg5: memref<2x8x32xf32, #tpu.memory_space<vmem>>, %arg6: memref<32x32xf32, #tpu.memory_space<vmem>>, %arg7: memref<32x32xf32, #tpu.memory_space<vmem>>, %arg8: memref<32x32xf32, #tpu.memory_space<vmem>>, %arg9: memref<32x32xf32, #tpu.memory_space<vmem>>, %arg10: memref<1x32xf32, #tpu.memory_space<vmem>>, %arg11: memref<1x32xf32, #tpu.memory_space<vmem>>, %arg12: memref<2x8x32xf32, #tpu.memory_space<vmem>>) attributes {dimension_semantics = [#tpu.dimension_semantics<arbitrary>], iteration_bounds = array<i64: 1>, scalar_prefetch = 0 : i64, scratch_operands = 0 : i64, tpu.core_type = #tpu.core_type<tc>, window_params = [{pipeline_mode = #tpu.pipeline_mode<synchronous>, transform_indices = @transform_0, window_bounds = array<i64: 8, 32>}, {pipeline_mode = #tpu.pipeline_mode<synchronous>, transform_indices = @transform_1, window_bounds = array<i64: 8, 32>}, {pipeline_mode = #tpu.pipeline_mode<synchronous>, transform_indices = @transform_2, window_bounds = array<i64: 16, 32>}, {pipeline_mode = #tpu.pipeline_mode<synchronous>, transform_indices = @transform_3, window_bounds = array<i64: 16, 32>}, {pipeline_mode = #tpu.pipeline_mode<synchronous>, transform_indices = @transform_4, window_bounds = array<i64: 2, 8, 32>}, {pipeline_mode = #tpu.pipeline_mode<synchronous>, transform_indices = @transform_5, window_bounds = array<i64: 32, 32>}, {pipeline_mode = #tpu.pipeline_mode<synchronous>, transform_indices = @transform_6, window_bounds = array<i64: 32, 32>}, {pipeline_mode = #tpu.pipeline_mode<synchronous>, transform_indices = @transform_7, window_bounds = array<i64: 32, 32>}, {pipeline_mode = #tpu.pipeline_mode<synchronous>, transform_indices = @transform_8, window_bounds = array<i64: 32, 32>}, {pipeline_mode = #tpu.pipeline_mode<synchronous>, transform_indices = @transform_9, window_bounds = array<i64: 1, 32>}, {pipeline_mode = #tpu.pipeline_mode<synchronous>, transform_indices = @transform_10, window_bounds = array<i64: 1, 32>}, {pipeline_mode = #tpu.pipeline_mode<synchronous>, transform_indices = @transform_11, window_bounds = array<i64: 2, 8, 32>}]} {
    %c0 = arith.constant 0 : index
    %c0_0 = arith.constant 0 : index
    %0 = vector.load %arg1[%c0, %c0_0] : memref<8x32xf32, #tpu.memory_space<vmem>>, vector<8x32xf32>
    %c0_1 = arith.constant 0 : index
    %c0_2 = arith.constant 0 : index
    %1 = vector.load %arg2[%c0_1, %c0_2] : memref<8x32xf32, #tpu.memory_space<vmem>>, vector<8x32xf32>
    %2 = arith.addf %0, %1 : vector<8x32xf32>
    %c0_3 = arith.constant 0 : index
    %c0_4 = arith.constant 0 : index
    %3 = vector.load %arg3[%c0_3, %c0_4] : memref<16x32xf32, #tpu.memory_space<vmem>>, vector<16x32xf32>
    %c0_5 = arith.constant 0 : index
    %c0_6 = arith.constant 0 : index
    %4 = vector.load %arg4[%c0_5, %c0_6] : memref<16x32xf32, #tpu.memory_space<vmem>>, vector<16x32xf32>
    %5 = arith.addf %3, %4 : vector<16x32xf32>
    %c0_7 = arith.constant 0 : index
    %c0_8 = arith.constant 0 : index
    %6 = vector.load %arg3[%c0_7, %c0_8] : memref<16x32xf32, #tpu.memory_space<vmem>>, vector<16x32xf32>
    %c0_9 = arith.constant 0 : index
    %c0_10 = arith.constant 0 : index
    %7 = vector.load %arg6[%c0_9, %c0_10] : memref<32x32xf32, #tpu.memory_space<vmem>>, vector<32x32xf32>
    %cst = arith.constant dense<0.000000e+00> : vector<8x32xf32>
    %8 = tpu.matmul %2, %7, %cst {dimension_numbers = #tpu.dot_dimension_numbers<[1], [0], [0], [1], [0, 0, 1, 1], [], []>} : vector<8x32xf32>, vector<32x32xf32>, vector<8x32xf32> -> vector<8x32xf32>
    %cst_11 = arith.constant 0.353553385 : f32
    %9 = vector.broadcast %cst_11 : f32 to vector<8x32xf32>
    %10 = arith.mulf %8, %9 : vector<8x32xf32>
    %c0_12 = arith.constant 0 : index
    %c0_13 = arith.constant 0 : index
    %11 = vector.load %arg7[%c0_12, %c0_13] : memref<32x32xf32, #tpu.memory_space<vmem>>, vector<32x32xf32>
    %cst_14 = arith.constant dense<0.000000e+00> : vector<16x32xf32>
    %12 = tpu.matmul %5, %11, %cst_14 {dimension_numbers = #tpu.dot_dimension_numbers<[1], [0], [0], [1], [0, 0, 1, 1], [], []>} : vector<16x32xf32>, vector<32x32xf32>, vector<16x32xf32> -> vector<16x32xf32>
    %c0_15 = arith.constant 0 : index
    %c0_16 = arith.constant 0 : index
    %13 = vector.load %arg8[%c0_15, %c0_16] : memref<32x32xf32, #tpu.memory_space<vmem>>, vector<32x32xf32>
    %cst_17 = arith.constant dense<0.000000e+00> : vector<16x32xf32>
    %14 = tpu.matmul %6, %13, %cst_17 {dimension_numbers = #tpu.dot_dimension_numbers<[1], [0], [0], [1], [0, 0, 1, 1], [], []>} : vector<16x32xf32>, vector<32x32xf32>, vector<16x32xf32> -> vector<16x32xf32>
    %15 = vector.extract_strided_slice %10 {offsets = [0, 0], sizes = [8, 8], strides = [1, 1]} : vector<8x32xf32> to vector<8x8xf32>
    %16 = vector.extract_strided_slice %12 {offsets = [0, 0], sizes = [16, 8], strides = [1, 1]} : vector<16x32xf32> to vector<16x8xf32>
    %17 = vector.extract_strided_slice %14 {offsets = [0, 0], sizes = [16, 8], strides = [1, 1]} : vector<16x32xf32> to vector<16x8xf32>
    %cst_18 = arith.constant dense<0.000000e+00> : vector<8x16xf32>
    %18 = tpu.matmul %15, %16, %cst_18 {dimension_numbers = #tpu.dot_dimension_numbers<[1], [1], [0], [0], [0, 0, 1, 0], [], []>} : vector<8x8xf32>, vector<16x8xf32>, vector<8x16xf32> -> vector<8x16xf32>
    %cst_19 = arith.constant dense<0xFF800000> : vector<8xf32>
    %19 = vector.multi_reduction <maximumf>, %18, %cst_19 [1] : vector<8x16xf32> to vector<8xf32>
    %20 = vector.shape_cast %19 : vector<8xf32> to vector<8x1xf32>
    %21 = vector.broadcast %20 : vector<8x1xf32> to vector<8x16xf32>
    %22 = arith.subf %18, %21 : vector<8x16xf32>
    %23 = math.exp %22 : vector<8x16xf32>
    %cst_20 = arith.constant dense<0.000000e+00> : vector<8xf32>
    %24 = vector.multi_reduction <add>, %23, %cst_20 [1] : vector<8x16xf32> to vector<8xf32>
    %25 = vector.shape_cast %24 : vector<8xf32> to vector<8x1xf32>
    %26 = tpu.reciprocal %25 {approx = true} : vector<8x1xf32> -> vector<8x1xf32>
    %27 = vector.broadcast %26 : vector<8x1xf32> to vector<8x16xf32>
    %28 = arith.mulf %23, %27 : vector<8x16xf32>
    %cst_21 = arith.constant dense<0.000000e+00> : vector<8x8xf32>
    %29 = tpu.matmul %28, %17, %cst_21 {dimension_numbers = #tpu.dot_dimension_numbers<[1], [0], [0], [1], [0, 0, 1, 1], [], []>} : vector<8x16xf32>, vector<16x8xf32>, vector<8x8xf32> -> vector<8x8xf32>
    %30 = vector.extract_strided_slice %10 {offsets = [0, 8], sizes = [8, 8], strides = [1, 1]} : vector<8x32xf32> to vector<8x8xf32>
    %31 = vector.extract_strided_slice %12 {offsets = [0, 8], sizes = [16, 8], strides = [1, 1]} : vector<16x32xf32> to vector<16x8xf32>
    %32 = vector.extract_strided_slice %14 {offsets = [0, 8], sizes = [16, 8], strides = [1, 1]} : vector<16x32xf32> to vector<16x8xf32>
    %cst_22 = arith.constant dense<0.000000e+00> : vector<8x16xf32>
    %33 = tpu.matmul %30, %31, %cst_22 {dimension_numbers = #tpu.dot_dimension_numbers<[1], [1], [0], [0], [0, 0, 1, 0], [], []>} : vector<8x8xf32>, vector<16x8xf32>, vector<8x16xf32> -> vector<8x16xf32>
    %cst_23 = arith.constant dense<0xFF800000> : vector<8xf32>
    %34 = vector.multi_reduction <maximumf>, %33, %cst_23 [1] : vector<8x16xf32> to vector<8xf32>
    %35 = vector.shape_cast %34 : vector<8xf32> to vector<8x1xf32>
    %36 = vector.broadcast %35 : vector<8x1xf32> to vector<8x16xf32>
    %37 = arith.subf %33, %36 : vector<8x16xf32>
    %38 = math.exp %37 : vector<8x16xf32>
    %cst_24 = arith.constant dense<0.000000e+00> : vector<8xf32>
    %39 = vector.multi_reduction <add>, %38, %cst_24 [1] : vector<8x16xf32> to vector<8xf32>
    %40 = vector.shape_cast %39 : vector<8xf32> to vector<8x1xf32>
    %41 = tpu.reciprocal %40 {approx = true} : vector<8x1xf32> -> vector<8x1xf32>
    %42 = vector.broadcast %41 : vector<8x1xf32> to vector<8x16xf32>
    %43 = arith.mulf %38, %42 : vector<8x16xf32>
    %cst_25 = arith.constant dense<0.000000e+00> : vector<8x8xf32>
    %44 = tpu.matmul %43, %32, %cst_25 {dimension_numbers = #tpu.dot_dimension_numbers<[1], [0], [0], [1], [0, 0, 1, 1], [], []>} : vector<8x16xf32>, vector<16x8xf32>, vector<8x8xf32> -> vector<8x8xf32>
    %45 = vector.extract_strided_slice %10 {offsets = [0, 16], sizes = [8, 8], strides = [1, 1]} : vector<8x32xf32> to vector<8x8xf32>
    %46 = vector.extract_strided_slice %12 {offsets = [0, 16], sizes = [16, 8], strides = [1, 1]} : vector<16x32xf32> to vector<16x8xf32>
    %47 = vector.extract_strided_slice %14 {offsets = [0, 16], sizes = [16, 8], strides = [1, 1]} : vector<16x32xf32> to vector<16x8xf32>
    %cst_26 = arith.constant dense<0.000000e+00> : vector<8x16xf32>
    %48 = tpu.matmul %45, %46, %cst_26 {dimension_numbers = #tpu.dot_dimension_numbers<[1], [1], [0], [0], [0, 0, 1, 0], [], []>} : vector<8x8xf32>, vector<16x8xf32>, vector<8x16xf32> -> vector<8x16xf32>
    %cst_27 = arith.constant dense<0xFF800000> : vector<8xf32>
    %49 = vector.multi_reduction <maximumf>, %48, %cst_27 [1] : vector<8x16xf32> to vector<8xf32>
    %50 = vector.shape_cast %49 : vector<8xf32> to vector<8x1xf32>
    %51 = vector.broadcast %50 : vector<8x1xf32> to vector<8x16xf32>
    %52 = arith.subf %48, %51 : vector<8x16xf32>
    %53 = math.exp %52 : vector<8x16xf32>
    %cst_28 = arith.constant dense<0.000000e+00> : vector<8xf32>
    %54 = vector.multi_reduction <add>, %53, %cst_28 [1] : vector<8x16xf32> to vector<8xf32>
    %55 = vector.shape_cast %54 : vector<8xf32> to vector<8x1xf32>
    %56 = tpu.reciprocal %55 {approx = true} : vector<8x1xf32> -> vector<8x1xf32>
    %57 = vector.broadcast %56 : vector<8x1xf32> to vector<8x16xf32>
    %58 = arith.mulf %53, %57 : vector<8x16xf32>
    %cst_29 = arith.constant dense<0.000000e+00> : vector<8x8xf32>
    %59 = tpu.matmul %58, %47, %cst_29 {dimension_numbers = #tpu.dot_dimension_numbers<[1], [0], [0], [1], [0, 0, 1, 1], [], []>} : vector<8x16xf32>, vector<16x8xf32>, vector<8x8xf32> -> vector<8x8xf32>
    %60 = vector.extract_strided_slice %10 {offsets = [0, 24], sizes = [8, 8], strides = [1, 1]} : vector<8x32xf32> to vector<8x8xf32>
    %61 = vector.extract_strided_slice %12 {offsets = [0, 24], sizes = [16, 8], strides = [1, 1]} : vector<16x32xf32> to vector<16x8xf32>
    %62 = vector.extract_strided_slice %14 {offsets = [0, 24], sizes = [16, 8], strides = [1, 1]} : vector<16x32xf32> to vector<16x8xf32>
    %cst_30 = arith.constant dense<0.000000e+00> : vector<8x16xf32>
    %63 = tpu.matmul %60, %61, %cst_30 {dimension_numbers = #tpu.dot_dimension_numbers<[1], [1], [0], [0], [0, 0, 1, 0], [], []>} : vector<8x8xf32>, vector<16x8xf32>, vector<8x16xf32> -> vector<8x16xf32>
    %cst_31 = arith.constant dense<0xFF800000> : vector<8xf32>
    %64 = vector.multi_reduction <maximumf>, %63, %cst_31 [1] : vector<8x16xf32> to vector<8xf32>
    %65 = vector.shape_cast %64 : vector<8xf32> to vector<8x1xf32>
    %66 = vector.broadcast %65 : vector<8x1xf32> to vector<8x16xf32>
    %67 = arith.subf %63, %66 : vector<8x16xf32>
    %68 = math.exp %67 : vector<8x16xf32>
    %cst_32 = arith.constant dense<0.000000e+00> : vector<8xf32>
    %69 = vector.multi_reduction <add>, %68, %cst_32 [1] : vector<8x16xf32> to vector<8xf32>
    %70 = vector.shape_cast %69 : vector<8xf32> to vector<8x1xf32>
    %71 = tpu.reciprocal %70 {approx = true} : vector<8x1xf32> -> vector<8x1xf32>
    %72 = vector.broadcast %71 : vector<8x1xf32> to vector<8x16xf32>
    %73 = arith.mulf %68, %72 : vector<8x16xf32>
    %cst_33 = arith.constant dense<0.000000e+00> : vector<8x8xf32>
    %74 = tpu.matmul %73, %62, %cst_33 {dimension_numbers = #tpu.dot_dimension_numbers<[1], [0], [0], [1], [0, 0, 1, 1], [], []>} : vector<8x16xf32>, vector<16x8xf32>, vector<8x8xf32> -> vector<8x8xf32>
    %75 = tpu.concatenate %29, %44, %59, %74 in 1 : vector<8x8xf32>, vector<8x8xf32>, vector<8x8xf32>, vector<8x8xf32> -> vector<8x32xf32>
    %c0_34 = arith.constant 0 : index
    %c0_35 = arith.constant 0 : index
    %76 = vector.load %arg9[%c0_34, %c0_35] : memref<32x32xf32, #tpu.memory_space<vmem>>, vector<32x32xf32>
    %cst_36 = arith.constant dense<0.000000e+00> : vector<8x32xf32>
    %77 = tpu.matmul %75, %76, %cst_36 {dimension_numbers = #tpu.dot_dimension_numbers<[1], [0], [0], [1], [0, 0, 1, 1], [], []>} : vector<8x32xf32>, vector<32x32xf32>, vector<8x32xf32> -> vector<8x32xf32>
    %78 = vector.shape_cast %77 : vector<8x32xf32> to vector<1x8x32xf32>
    %c0_37 = arith.constant 0 : index
    %c0_38 = arith.constant 0 : index
    %c0_39 = arith.constant 0 : index
    %79 = vector.load %arg5[%c0_37, %c0_38, %c0_39] : memref<2x8x32xf32, #tpu.memory_space<vmem>>, vector<2x8x32xf32>
    %80 = vector.broadcast %78 : vector<1x8x32xf32> to vector<2x8x32xf32>
    %81 = arith.addf %80, %79 : vector<2x8x32xf32>
    %cst_40 = arith.constant dense<0.000000e+00> : vector<2x8xf32>
    %82 = vector.multi_reduction <add>, %81, %cst_40 [2] : vector<2x8x32xf32> to vector<2x8xf32>
    %83 = vector.shape_cast %82 : vector<2x8xf32> to vector<2x8x1xf32>
    %cst_41 = arith.constant 3.200000e+01 : f32
    %84 = vector.broadcast %cst_41 : f32 to vector<2x8x1xf32>
    %85 = arith.divf %83, %84 : vector<2x8x1xf32>
    %86 = vector.broadcast %85 : vector<2x8x1xf32> to vector<2x8x32xf32>
    %87 = arith.subf %81, %86 : vector<2x8x32xf32>
    %88 = arith.mulf %87, %87 : vector<2x8x32xf32>
    %cst_42 = arith.constant dense<0.000000e+00> : vector<2x8xf32>
    %89 = vector.multi_reduction <add>, %88, %cst_42 [2] : vector<2x8x32xf32> to vector<2x8xf32>
    %90 = vector.shape_cast %89 : vector<2x8xf32> to vector<2x8x1xf32>
    %cst_43 = arith.constant 3.200000e+01 : f32
    %91 = vector.broadcast %cst_43 : f32 to vector<2x8x1xf32>
    %92 = arith.divf %90, %91 : vector<2x8x1xf32>
    %93 = vector.broadcast %85 : vector<2x8x1xf32> to vector<2x8x32xf32>
    %94 = arith.subf %81, %93 : vector<2x8x32xf32>
    %cst_44 = arith.constant 9.99999974E-6 : f32
    %95 = vector.broadcast %cst_44 : f32 to vector<2x8x1xf32>
    %96 = arith.addf %92, %95 : vector<2x8x1xf32>
    %97 = math.rsqrt %96 : vector<2x8x1xf32>
    %98 = vector.broadcast %97 : vector<2x8x1xf32> to vector<2x8x32xf32>
    %99 = arith.mulf %94, %98 : vector<2x8x32xf32>
    %c0_45 = arith.constant 0 : index
    %c0_46 = arith.constant 0 : index
    %100 = vector.load %arg10[%c0_45, %c0_46] : memref<1x32xf32, #tpu.memory_space<vmem>>, vector<1x32xf32>
    %101 = vector.shape_cast %100 : vector<1x32xf32> to vector<1x1x32xf32>
    %102 = vector.broadcast %101 : vector<1x1x32xf32> to vector<2x8x32xf32>
    %103 = arith.mulf %99, %102 : vector<2x8x32xf32>
    %c0_47 = arith.constant 0 : index
    %c0_48 = arith.constant 0 : index
    %104 = vector.load %arg11[%c0_47, %c0_48] : memref<1x32xf32, #tpu.memory_space<vmem>>, vector<1x32xf32>
    %105 = vector.shape_cast %104 : vector<1x32xf32> to vector<1x1x32xf32>
    %106 = vector.broadcast %105 : vector<1x1x32xf32> to vector<2x8x32xf32>
    %107 = arith.addf %103, %106 : vector<2x8x32xf32>
    %c0_49 = arith.constant 0 : index
    %c0_50 = arith.constant 0 : index
    %c0_51 = arith.constant 0 : index
    %108 = vector.load %arg12[%c0_49, %c0_50, %c0_51] : memref<2x8x32xf32, #tpu.memory_space<vmem>>, vector<2x8x32xf32>
    tpu.vector_store %arg12[%c0_49, %c0_50, %c0_51], %107 {strides = array<i32>} : memref<2x8x32xf32, #tpu.memory_space<vmem>>, vector<2x8x32xf32>,
    return
  }
  func.func @transform_0(%arg0: i32) -> (i32, i32) {
    %c0_i32 = arith.constant 0 : i32
    %c0_i32_0 = arith.constant 0 : i32
    %c0_i32_1 = arith.constant 0 : i32
    return %c0_i32, %c0_i32_0 : i32, i32
  }
  func.func @transform_1(%arg0: i32) -> (i32, i32) {
    %c0_i32 = arith.constant 0 : i32
    %c0_i32_0 = arith.constant 0 : i32
    %c0_i32_1 = arith.constant 0 : i32
    return %c0_i32, %c0_i32_0 : i32, i32
  }
  func.func @transform_2(%arg0: i32) -> (i32, i32) {
    %c0_i32 = arith.constant 0 : i32
    %c0_i32_0 = arith.constant 0 : i32
    %c0_i32_1 = arith.constant 0 : i32
    return %c0_i32, %c0_i32_0 : i32, i32
  }
  func.func @transform_3(%arg0: i32) -> (i32, i32) {
    %c0_i32 = arith.constant 0 : i32
    %c0_i32_0 = arith.constant 0 : i32
    %c0_i32_1 = arith.constant 0 : i32
    return %c0_i32, %c0_i32_0 : i32, i32
  }
  func.func @transform_4(%arg0: i32) -> (i32, i32, i32) {
    %c0_i32 = arith.constant 0 : i32
    %c0_i32_0 = arith.constant 0 : i32
    %c0_i32_1 = arith.constant 0 : i32
    %c0_i32_2 = arith.constant 0 : i32
    return %c0_i32, %c0_i32_0, %c0_i32_1 : i32, i32, i32
  }
  func.func @transform_5(%arg0: i32) -> (i32, i32) {
    %c0_i32 = arith.constant 0 : i32
    %c0_i32_0 = arith.constant 0 : i32
    %c0_i32_1 = arith.constant 0 : i32
    return %c0_i32, %c0_i32_0 : i32, i32
  }
  func.func @transform_6(%arg0: i32) -> (i32, i32) {
    %c0_i32 = arith.constant 0 : i32
    %c0_i32_0 = arith.constant 0 : i32
    %c0_i32_1 = arith.constant 0 : i32
    return %c0_i32, %c0_i32_0 : i32, i32
  }
  func.func @transform_7(%arg0: i32) -> (i32, i32) {
    %c0_i32 = arith.constant 0 : i32
    %c0_i32_0 = arith.constant 0 : i32
    %c0_i32_1 = arith.constant 0 : i32
    return %c0_i32, %c0_i32_0 : i32, i32
  }
  func.func @transform_8(%arg0: i32) -> (i32, i32) {
    %c0_i32 = arith.constant 0 : i32
    %c0_i32_0 = arith.constant 0 : i32
    %c0_i32_1 = arith.constant 0 : i32
    return %c0_i32, %c0_i32_0 : i32, i32
  }
  func.func @transform_9(%arg0: i32) -> (i32, i32) {
    %c0_i32 = arith.constant 0 : i32
    %c0_i32_0 = arith.constant 0 : i32
    %c0_i32_1 = arith.constant 0 : i32
    return %c0_i32, %c0_i32_0 : i32, i32
  }
  func.func @transform_10(%arg0: i32) -> (i32, i32) {
    %c0_i32 = arith.constant 0 : i32
    %c0_i32_0 = arith.constant 0 : i32
    %c0_i32_1 = arith.constant 0 : i32
    return %c0_i32, %c0_i32_0 : i32, i32
  }
  func.func @transform_11(%arg0: i32) -> (i32, i32, i32) {
    %c0_i32 = arith.constant 0 : i32
    %c0_i32_0 = arith.constant 0 : i32
    %c0_i32_1 = arith.constant 0 : i32
    %c0_i32_2 = arith.constant 0 : i32
    return %c0_i32, %c0_i32_0, %c0_i32_1 : i32, i32, i32
  }
}

module attributes {stable_mosaic.version = 11 : i64} {
  func.func @_ffn_block_kernel(%arg0: i32, %arg1: memref<16x32xf32, #tpu.memory_space<vmem>>, %arg2: memref<32x128xf32, #tpu.memory_space<vmem>>, %arg3: memref<1x128xf32, #tpu.memory_space<vmem>>, %arg4: memref<128x32xf32, #tpu.memory_space<vmem>>, %arg5: memref<1x32xf32, #tpu.memory_space<vmem>>, %arg6: memref<1x32xf32, #tpu.memory_space<vmem>>, %arg7: memref<1x32xf32, #tpu.memory_space<vmem>>, %arg8: memref<16x32xf32, #tpu.memory_space<vmem>>) attributes {dimension_semantics = [#tpu.dimension_semantics<arbitrary>], iteration_bounds = array<i64: 1>, scalar_prefetch = 0 : i64, scratch_operands = 0 : i64, tpu.core_type = #tpu.core_type<tc>, window_params = [{pipeline_mode = #tpu.pipeline_mode<synchronous>, transform_indices = @transform_0, window_bounds = array<i64: 16, 32>}, {pipeline_mode = #tpu.pipeline_mode<synchronous>, transform_indices = @transform_1, window_bounds = array<i64: 32, 128>}, {pipeline_mode = #tpu.pipeline_mode<synchronous>, transform_indices = @transform_2, window_bounds = array<i64: 1, 128>}, {pipeline_mode = #tpu.pipeline_mode<synchronous>, transform_indices = @transform_3, window_bounds = array<i64: 128, 32>}, {pipeline_mode = #tpu.pipeline_mode<synchronous>, transform_indices = @transform_4, window_bounds = array<i64: 1, 32>}, {pipeline_mode = #tpu.pipeline_mode<synchronous>, transform_indices = @transform_5, window_bounds = array<i64: 1, 32>}, {pipeline_mode = #tpu.pipeline_mode<synchronous>, transform_indices = @transform_6, window_bounds = array<i64: 1, 32>}, {pipeline_mode = #tpu.pipeline_mode<synchronous>, transform_indices = @transform_7, window_bounds = array<i64: 16, 32>}]} {
    %c0 = arith.constant 0 : index
    %c0_0 = arith.constant 0 : index
    %0 = vector.load %arg1[%c0, %c0_0] : memref<16x32xf32, #tpu.memory_space<vmem>>, vector<16x32xf32>
    %c0_1 = arith.constant 0 : index
    %c0_2 = arith.constant 0 : index
    %1 = vector.load %arg2[%c0_1, %c0_2] : memref<32x128xf32, #tpu.memory_space<vmem>>, vector<32x128xf32>
    %cst = arith.constant dense<0.000000e+00> : vector<16x128xf32>
    %2 = tpu.matmul %0, %1, %cst {dimension_numbers = #tpu.dot_dimension_numbers<[1], [0], [0], [1], [0, 0, 1, 1], [], []>} : vector<16x32xf32>, vector<32x128xf32>, vector<16x128xf32> -> vector<16x128xf32>
    %c0_3 = arith.constant 0 : index
    %c0_4 = arith.constant 0 : index
    %3 = vector.load %arg3[%c0_3, %c0_4] : memref<1x128xf32, #tpu.memory_space<vmem>>, vector<1x128xf32>
    %4 = vector.broadcast %3 : vector<1x128xf32> to vector<16x128xf32>
    %5 = arith.addf %2, %4 : vector<16x128xf32>
    %cst_5 = arith.constant 0.000000e+00 : f32
    %6 = vector.broadcast %cst_5 : f32 to vector<16x128xf32>
    %7 = arith.maximumf %5, %6 : vector<16x128xf32>
    %c0_6 = arith.constant 0 : index
    %c0_7 = arith.constant 0 : index
    %8 = vector.load %arg4[%c0_6, %c0_7] : memref<128x32xf32, #tpu.memory_space<vmem>>, vector<128x32xf32>
    %cst_8 = arith.constant dense<0.000000e+00> : vector<16x32xf32>
    %9 = tpu.matmul %7, %8, %cst_8 {dimension_numbers = #tpu.dot_dimension_numbers<[1], [0], [0], [1], [0, 0, 1, 1], [], []>} : vector<16x128xf32>, vector<128x32xf32>, vector<16x32xf32> -> vector<16x32xf32>
    %c0_9 = arith.constant 0 : index
    %c0_10 = arith.constant 0 : index
    %10 = vector.load %arg5[%c0_9, %c0_10] : memref<1x32xf32, #tpu.memory_space<vmem>>, vector<1x32xf32>
    %11 = vector.broadcast %10 : vector<1x32xf32> to vector<16x32xf32>
    %12 = arith.addf %9, %11 : vector<16x32xf32>
    %13 = arith.addf %12, %0 : vector<16x32xf32>
    %cst_11 = arith.constant dense<0.000000e+00> : vector<16xf32>
    %14 = vector.multi_reduction <add>, %13, %cst_11 [1] : vector<16x32xf32> to vector<16xf32>
    %15 = vector.shape_cast %14 : vector<16xf32> to vector<16x1xf32>
    %cst_12 = arith.constant 3.200000e+01 : f32
    %16 = vector.broadcast %cst_12 : f32 to vector<16x1xf32>
    %17 = arith.divf %15, %16 : vector<16x1xf32>
    %18 = vector.broadcast %17 : vector<16x1xf32> to vector<16x32xf32>
    %19 = arith.subf %13, %18 : vector<16x32xf32>
    %20 = arith.mulf %19, %19 : vector<16x32xf32>
    %cst_13 = arith.constant dense<0.000000e+00> : vector<16xf32>
    %21 = vector.multi_reduction <add>, %20, %cst_13 [1] : vector<16x32xf32> to vector<16xf32>
    %22 = vector.shape_cast %21 : vector<16xf32> to vector<16x1xf32>
    %cst_14 = arith.constant 3.200000e+01 : f32
    %23 = vector.broadcast %cst_14 : f32 to vector<16x1xf32>
    %24 = arith.divf %22, %23 : vector<16x1xf32>
    %25 = vector.broadcast %17 : vector<16x1xf32> to vector<16x32xf32>
    %26 = arith.subf %13, %25 : vector<16x32xf32>
    %cst_15 = arith.constant 9.99999974E-6 : f32
    %27 = vector.broadcast %cst_15 : f32 to vector<16x1xf32>
    %28 = arith.addf %24, %27 : vector<16x1xf32>
    %29 = math.rsqrt %28 : vector<16x1xf32>
    %30 = vector.broadcast %29 : vector<16x1xf32> to vector<16x32xf32>
    %31 = arith.mulf %26, %30 : vector<16x32xf32>
    %c0_16 = arith.constant 0 : index
    %c0_17 = arith.constant 0 : index
    %32 = vector.load %arg6[%c0_16, %c0_17] : memref<1x32xf32, #tpu.memory_space<vmem>>, vector<1x32xf32>
    %33 = vector.broadcast %32 : vector<1x32xf32> to vector<16x32xf32>
    %34 = arith.mulf %31, %33 : vector<16x32xf32>
    %c0_18 = arith.constant 0 : index
    %c0_19 = arith.constant 0 : index
    %35 = vector.load %arg7[%c0_18, %c0_19] : memref<1x32xf32, #tpu.memory_space<vmem>>, vector<1x32xf32>
    %36 = vector.broadcast %35 : vector<1x32xf32> to vector<16x32xf32>
    %37 = arith.addf %34, %36 : vector<16x32xf32>
    %c0_20 = arith.constant 0 : index
    %c0_21 = arith.constant 0 : index
    %38 = vector.load %arg8[%c0_20, %c0_21] : memref<16x32xf32, #tpu.memory_space<vmem>>, vector<16x32xf32>
    tpu.vector_store %arg8[%c0_20, %c0_21], %37 {strides = array<i32>} : memref<16x32xf32, #tpu.memory_space<vmem>>, vector<16x32xf32>,
    return
  }
  func.func @transform_0(%arg0: i32) -> (i32, i32) {
    %c0_i32 = arith.constant 0 : i32
    %c0_i32_0 = arith.constant 0 : i32
    %c0_i32_1 = arith.constant 0 : i32
    return %c0_i32, %c0_i32_0 : i32, i32
  }
  func.func @transform_1(%arg0: i32) -> (i32, i32) {
    %c0_i32 = arith.constant 0 : i32
    %c0_i32_0 = arith.constant 0 : i32
    %c0_i32_1 = arith.constant 0 : i32
    return %c0_i32, %c0_i32_0 : i32, i32
  }
  func.func @transform_2(%arg0: i32) -> (i32, i32) {
    %c0_i32 = arith.constant 0 : i32
    %c0_i32_0 = arith.constant 0 : i32
    %c0_i32_1 = arith.constant 0 : i32
    return %c0_i32, %c0_i32_0 : i32, i32
  }
  func.func @transform_3(%arg0: i32) -> (i32, i32) {
    %c0_i32 = arith.constant 0 : i32
    %c0_i32_0 = arith.constant 0 : i32
    %c0_i32_1 = arith.constant 0 : i32
    return %c0_i32, %c0_i32_0 : i32, i32
  }
  func.func @transform_4(%arg0: i32) -> (i32, i32) {
    %c0_i32 = arith.constant 0 : i32
    %c0_i32_0 = arith.constant 0 : i32
    %c0_i32_1 = arith.constant 0 : i32
    return %c0_i32, %c0_i32_0 : i32, i32
  }
  func.func @transform_5(%arg0: i32) -> (i32, i32) {
    %c0_i32 = arith.constant 0 : i32
    %c0_i32_0 = arith.constant 0 : i32
    %c0_i32_1 = arith.constant 0 : i32
    return %c0_i32, %c0_i32_0 : i32, i32
  }
  func.func @transform_6(%arg0: i32) -> (i32, i32) {
    %c0_i32 = arith.constant 0 : i32
    %c0_i32_0 = arith.constant 0 : i32
    %c0_i32_1 = arith.constant 0 : i32
    return %c0_i32, %c0_i32_0 : i32, i32
  }
  func.func @transform_7(%arg0: i32) -> (i32, i32) {
    %c0_i32 = arith.constant 0 : i32
    %c0_i32_0 = arith.constant 0 : i32
    %c0_i32_1 = arith.constant 0 : i32
    return %c0_i32, %c0_i32_0 : i32, i32
  }
}

module attributes {stable_mosaic.version = 11 : i64} {
  func.func @_attn_block_kernel(%arg0: i32, %arg1: memref<8x32xf32, #tpu.memory_space<vmem>>, %arg2: memref<8x32xf32, #tpu.memory_space<vmem>>, %arg3: memref<8x32xf32, #tpu.memory_space<vmem>>, %arg4: memref<8x32xf32, #tpu.memory_space<vmem>>, %arg5: memref<2x8x32xf32, #tpu.memory_space<vmem>>, %arg6: memref<32x32xf32, #tpu.memory_space<vmem>>, %arg7: memref<32x32xf32, #tpu.memory_space<vmem>>, %arg8: memref<32x32xf32, #tpu.memory_space<vmem>>, %arg9: memref<32x32xf32, #tpu.memory_space<vmem>>, %arg10: memref<1x32xf32, #tpu.memory_space<vmem>>, %arg11: memref<1x32xf32, #tpu.memory_space<vmem>>, %arg12: memref<2x8x32xf32, #tpu.memory_space<vmem>>) attributes {dimension_semantics = [#tpu.dimension_semantics<arbitrary>], iteration_bounds = array<i64: 1>, scalar_prefetch = 0 : i64, scratch_operands = 0 : i64, tpu.core_type = #tpu.core_type<tc>, window_params = [{pipeline_mode = #tpu.pipeline_mode<synchronous>, transform_indices = @transform_0, window_bounds = array<i64: 8, 32>}, {pipeline_mode = #tpu.pipeline_mode<synchronous>, transform_indices = @transform_1, window_bounds = array<i64: 8, 32>}, {pipeline_mode = #tpu.pipeline_mode<synchronous>, transform_indices = @transform_2, window_bounds = array<i64: 8, 32>}, {pipeline_mode = #tpu.pipeline_mode<synchronous>, transform_indices = @transform_3, window_bounds = array<i64: 8, 32>}, {pipeline_mode = #tpu.pipeline_mode<synchronous>, transform_indices = @transform_4, window_bounds = array<i64: 2, 8, 32>}, {pipeline_mode = #tpu.pipeline_mode<synchronous>, transform_indices = @transform_5, window_bounds = array<i64: 32, 32>}, {pipeline_mode = #tpu.pipeline_mode<synchronous>, transform_indices = @transform_6, window_bounds = array<i64: 32, 32>}, {pipeline_mode = #tpu.pipeline_mode<synchronous>, transform_indices = @transform_7, window_bounds = array<i64: 32, 32>}, {pipeline_mode = #tpu.pipeline_mode<synchronous>, transform_indices = @transform_8, window_bounds = array<i64: 32, 32>}, {pipeline_mode = #tpu.pipeline_mode<synchronous>, transform_indices = @transform_9, window_bounds = array<i64: 1, 32>}, {pipeline_mode = #tpu.pipeline_mode<synchronous>, transform_indices = @transform_10, window_bounds = array<i64: 1, 32>}, {pipeline_mode = #tpu.pipeline_mode<synchronous>, transform_indices = @transform_11, window_bounds = array<i64: 2, 8, 32>}]} {
    %c0 = arith.constant 0 : index
    %c0_0 = arith.constant 0 : index
    %0 = vector.load %arg1[%c0, %c0_0] : memref<8x32xf32, #tpu.memory_space<vmem>>, vector<8x32xf32>
    %c0_1 = arith.constant 0 : index
    %c0_2 = arith.constant 0 : index
    %1 = vector.load %arg2[%c0_1, %c0_2] : memref<8x32xf32, #tpu.memory_space<vmem>>, vector<8x32xf32>
    %2 = arith.addf %0, %1 : vector<8x32xf32>
    %c0_3 = arith.constant 0 : index
    %c0_4 = arith.constant 0 : index
    %3 = vector.load %arg3[%c0_3, %c0_4] : memref<8x32xf32, #tpu.memory_space<vmem>>, vector<8x32xf32>
    %c0_5 = arith.constant 0 : index
    %c0_6 = arith.constant 0 : index
    %4 = vector.load %arg4[%c0_5, %c0_6] : memref<8x32xf32, #tpu.memory_space<vmem>>, vector<8x32xf32>
    %5 = arith.addf %3, %4 : vector<8x32xf32>
    %c0_7 = arith.constant 0 : index
    %c0_8 = arith.constant 0 : index
    %6 = vector.load %arg3[%c0_7, %c0_8] : memref<8x32xf32, #tpu.memory_space<vmem>>, vector<8x32xf32>
    %c0_9 = arith.constant 0 : index
    %c0_10 = arith.constant 0 : index
    %7 = vector.load %arg6[%c0_9, %c0_10] : memref<32x32xf32, #tpu.memory_space<vmem>>, vector<32x32xf32>
    %cst = arith.constant dense<0.000000e+00> : vector<8x32xf32>
    %8 = tpu.matmul %2, %7, %cst {dimension_numbers = #tpu.dot_dimension_numbers<[1], [0], [0], [1], [0, 0, 1, 1], [], []>} : vector<8x32xf32>, vector<32x32xf32>, vector<8x32xf32> -> vector<8x32xf32>
    %cst_11 = arith.constant 0.353553385 : f32
    %9 = vector.broadcast %cst_11 : f32 to vector<8x32xf32>
    %10 = arith.mulf %8, %9 : vector<8x32xf32>
    %c0_12 = arith.constant 0 : index
    %c0_13 = arith.constant 0 : index
    %11 = vector.load %arg7[%c0_12, %c0_13] : memref<32x32xf32, #tpu.memory_space<vmem>>, vector<32x32xf32>
    %cst_14 = arith.constant dense<0.000000e+00> : vector<8x32xf32>
    %12 = tpu.matmul %5, %11, %cst_14 {dimension_numbers = #tpu.dot_dimension_numbers<[1], [0], [0], [1], [0, 0, 1, 1], [], []>} : vector<8x32xf32>, vector<32x32xf32>, vector<8x32xf32> -> vector<8x32xf32>
    %c0_15 = arith.constant 0 : index
    %c0_16 = arith.constant 0 : index
    %13 = vector.load %arg8[%c0_15, %c0_16] : memref<32x32xf32, #tpu.memory_space<vmem>>, vector<32x32xf32>
    %cst_17 = arith.constant dense<0.000000e+00> : vector<8x32xf32>
    %14 = tpu.matmul %6, %13, %cst_17 {dimension_numbers = #tpu.dot_dimension_numbers<[1], [0], [0], [1], [0, 0, 1, 1], [], []>} : vector<8x32xf32>, vector<32x32xf32>, vector<8x32xf32> -> vector<8x32xf32>
    %15 = vector.extract_strided_slice %10 {offsets = [0, 0], sizes = [8, 8], strides = [1, 1]} : vector<8x32xf32> to vector<8x8xf32>
    %16 = vector.extract_strided_slice %12 {offsets = [0, 0], sizes = [8, 8], strides = [1, 1]} : vector<8x32xf32> to vector<8x8xf32>
    %17 = vector.extract_strided_slice %14 {offsets = [0, 0], sizes = [8, 8], strides = [1, 1]} : vector<8x32xf32> to vector<8x8xf32>
    %cst_18 = arith.constant dense<0.000000e+00> : vector<8x8xf32>
    %18 = tpu.matmul %15, %16, %cst_18 {dimension_numbers = #tpu.dot_dimension_numbers<[1], [1], [0], [0], [0, 0, 1, 0], [], []>} : vector<8x8xf32>, vector<8x8xf32>, vector<8x8xf32> -> vector<8x8xf32>
    %cst_19 = arith.constant dense<0xFF800000> : vector<8xf32>
    %19 = vector.multi_reduction <maximumf>, %18, %cst_19 [1] : vector<8x8xf32> to vector<8xf32>
    %20 = vector.shape_cast %19 : vector<8xf32> to vector<8x1xf32>
    %21 = vector.broadcast %20 : vector<8x1xf32> to vector<8x8xf32>
    %22 = arith.subf %18, %21 : vector<8x8xf32>
    %23 = math.exp %22 : vector<8x8xf32>
    %cst_20 = arith.constant dense<0.000000e+00> : vector<8xf32>
    %24 = vector.multi_reduction <add>, %23, %cst_20 [1] : vector<8x8xf32> to vector<8xf32>
    %25 = vector.shape_cast %24 : vector<8xf32> to vector<8x1xf32>
    %26 = tpu.reciprocal %25 {approx = true} : vector<8x1xf32> -> vector<8x1xf32>
    %27 = vector.broadcast %26 : vector<8x1xf32> to vector<8x8xf32>
    %28 = arith.mulf %23, %27 : vector<8x8xf32>
    %cst_21 = arith.constant dense<0.000000e+00> : vector<8x8xf32>
    %29 = tpu.matmul %28, %17, %cst_21 {dimension_numbers = #tpu.dot_dimension_numbers<[1], [0], [0], [1], [0, 0, 1, 1], [], []>} : vector<8x8xf32>, vector<8x8xf32>, vector<8x8xf32> -> vector<8x8xf32>
    %30 = vector.extract_strided_slice %10 {offsets = [0, 8], sizes = [8, 8], strides = [1, 1]} : vector<8x32xf32> to vector<8x8xf32>
    %31 = vector.extract_strided_slice %12 {offsets = [0, 8], sizes = [8, 8], strides = [1, 1]} : vector<8x32xf32> to vector<8x8xf32>
    %32 = vector.extract_strided_slice %14 {offsets = [0, 8], sizes = [8, 8], strides = [1, 1]} : vector<8x32xf32> to vector<8x8xf32>
    %cst_22 = arith.constant dense<0.000000e+00> : vector<8x8xf32>
    %33 = tpu.matmul %30, %31, %cst_22 {dimension_numbers = #tpu.dot_dimension_numbers<[1], [1], [0], [0], [0, 0, 1, 0], [], []>} : vector<8x8xf32>, vector<8x8xf32>, vector<8x8xf32> -> vector<8x8xf32>
    %cst_23 = arith.constant dense<0xFF800000> : vector<8xf32>
    %34 = vector.multi_reduction <maximumf>, %33, %cst_23 [1] : vector<8x8xf32> to vector<8xf32>
    %35 = vector.shape_cast %34 : vector<8xf32> to vector<8x1xf32>
    %36 = vector.broadcast %35 : vector<8x1xf32> to vector<8x8xf32>
    %37 = arith.subf %33, %36 : vector<8x8xf32>
    %38 = math.exp %37 : vector<8x8xf32>
    %cst_24 = arith.constant dense<0.000000e+00> : vector<8xf32>
    %39 = vector.multi_reduction <add>, %38, %cst_24 [1] : vector<8x8xf32> to vector<8xf32>
    %40 = vector.shape_cast %39 : vector<8xf32> to vector<8x1xf32>
    %41 = tpu.reciprocal %40 {approx = true} : vector<8x1xf32> -> vector<8x1xf32>
    %42 = vector.broadcast %41 : vector<8x1xf32> to vector<8x8xf32>
    %43 = arith.mulf %38, %42 : vector<8x8xf32>
    %cst_25 = arith.constant dense<0.000000e+00> : vector<8x8xf32>
    %44 = tpu.matmul %43, %32, %cst_25 {dimension_numbers = #tpu.dot_dimension_numbers<[1], [0], [0], [1], [0, 0, 1, 1], [], []>} : vector<8x8xf32>, vector<8x8xf32>, vector<8x8xf32> -> vector<8x8xf32>
    %45 = vector.extract_strided_slice %10 {offsets = [0, 16], sizes = [8, 8], strides = [1, 1]} : vector<8x32xf32> to vector<8x8xf32>
    %46 = vector.extract_strided_slice %12 {offsets = [0, 16], sizes = [8, 8], strides = [1, 1]} : vector<8x32xf32> to vector<8x8xf32>
    %47 = vector.extract_strided_slice %14 {offsets = [0, 16], sizes = [8, 8], strides = [1, 1]} : vector<8x32xf32> to vector<8x8xf32>
    %cst_26 = arith.constant dense<0.000000e+00> : vector<8x8xf32>
    %48 = tpu.matmul %45, %46, %cst_26 {dimension_numbers = #tpu.dot_dimension_numbers<[1], [1], [0], [0], [0, 0, 1, 0], [], []>} : vector<8x8xf32>, vector<8x8xf32>, vector<8x8xf32> -> vector<8x8xf32>
    %cst_27 = arith.constant dense<0xFF800000> : vector<8xf32>
    %49 = vector.multi_reduction <maximumf>, %48, %cst_27 [1] : vector<8x8xf32> to vector<8xf32>
    %50 = vector.shape_cast %49 : vector<8xf32> to vector<8x1xf32>
    %51 = vector.broadcast %50 : vector<8x1xf32> to vector<8x8xf32>
    %52 = arith.subf %48, %51 : vector<8x8xf32>
    %53 = math.exp %52 : vector<8x8xf32>
    %cst_28 = arith.constant dense<0.000000e+00> : vector<8xf32>
    %54 = vector.multi_reduction <add>, %53, %cst_28 [1] : vector<8x8xf32> to vector<8xf32>
    %55 = vector.shape_cast %54 : vector<8xf32> to vector<8x1xf32>
    %56 = tpu.reciprocal %55 {approx = true} : vector<8x1xf32> -> vector<8x1xf32>
    %57 = vector.broadcast %56 : vector<8x1xf32> to vector<8x8xf32>
    %58 = arith.mulf %53, %57 : vector<8x8xf32>
    %cst_29 = arith.constant dense<0.000000e+00> : vector<8x8xf32>
    %59 = tpu.matmul %58, %47, %cst_29 {dimension_numbers = #tpu.dot_dimension_numbers<[1], [0], [0], [1], [0, 0, 1, 1], [], []>} : vector<8x8xf32>, vector<8x8xf32>, vector<8x8xf32> -> vector<8x8xf32>
    %60 = vector.extract_strided_slice %10 {offsets = [0, 24], sizes = [8, 8], strides = [1, 1]} : vector<8x32xf32> to vector<8x8xf32>
    %61 = vector.extract_strided_slice %12 {offsets = [0, 24], sizes = [8, 8], strides = [1, 1]} : vector<8x32xf32> to vector<8x8xf32>
    %62 = vector.extract_strided_slice %14 {offsets = [0, 24], sizes = [8, 8], strides = [1, 1]} : vector<8x32xf32> to vector<8x8xf32>
    %cst_30 = arith.constant dense<0.000000e+00> : vector<8x8xf32>
    %63 = tpu.matmul %60, %61, %cst_30 {dimension_numbers = #tpu.dot_dimension_numbers<[1], [1], [0], [0], [0, 0, 1, 0], [], []>} : vector<8x8xf32>, vector<8x8xf32>, vector<8x8xf32> -> vector<8x8xf32>
    %cst_31 = arith.constant dense<0xFF800000> : vector<8xf32>
    %64 = vector.multi_reduction <maximumf>, %63, %cst_31 [1] : vector<8x8xf32> to vector<8xf32>
    %65 = vector.shape_cast %64 : vector<8xf32> to vector<8x1xf32>
    %66 = vector.broadcast %65 : vector<8x1xf32> to vector<8x8xf32>
    %67 = arith.subf %63, %66 : vector<8x8xf32>
    %68 = math.exp %67 : vector<8x8xf32>
    %cst_32 = arith.constant dense<0.000000e+00> : vector<8xf32>
    %69 = vector.multi_reduction <add>, %68, %cst_32 [1] : vector<8x8xf32> to vector<8xf32>
    %70 = vector.shape_cast %69 : vector<8xf32> to vector<8x1xf32>
    %71 = tpu.reciprocal %70 {approx = true} : vector<8x1xf32> -> vector<8x1xf32>
    %72 = vector.broadcast %71 : vector<8x1xf32> to vector<8x8xf32>
    %73 = arith.mulf %68, %72 : vector<8x8xf32>
    %cst_33 = arith.constant dense<0.000000e+00> : vector<8x8xf32>
    %74 = tpu.matmul %73, %62, %cst_33 {dimension_numbers = #tpu.dot_dimension_numbers<[1], [0], [0], [1], [0, 0, 1, 1], [], []>} : vector<8x8xf32>, vector<8x8xf32>, vector<8x8xf32> -> vector<8x8xf32>
    %75 = tpu.concatenate %29, %44, %59, %74 in 1 : vector<8x8xf32>, vector<8x8xf32>, vector<8x8xf32>, vector<8x8xf32> -> vector<8x32xf32>
    %c0_34 = arith.constant 0 : index
    %c0_35 = arith.constant 0 : index
    %76 = vector.load %arg9[%c0_34, %c0_35] : memref<32x32xf32, #tpu.memory_space<vmem>>, vector<32x32xf32>
    %cst_36 = arith.constant dense<0.000000e+00> : vector<8x32xf32>
    %77 = tpu.matmul %75, %76, %cst_36 {dimension_numbers = #tpu.dot_dimension_numbers<[1], [0], [0], [1], [0, 0, 1, 1], [], []>} : vector<8x32xf32>, vector<32x32xf32>, vector<8x32xf32> -> vector<8x32xf32>
    %78 = vector.shape_cast %77 : vector<8x32xf32> to vector<1x8x32xf32>
    %c0_37 = arith.constant 0 : index
    %c0_38 = arith.constant 0 : index
    %c0_39 = arith.constant 0 : index
    %79 = vector.load %arg5[%c0_37, %c0_38, %c0_39] : memref<2x8x32xf32, #tpu.memory_space<vmem>>, vector<2x8x32xf32>
    %80 = vector.broadcast %78 : vector<1x8x32xf32> to vector<2x8x32xf32>
    %81 = arith.addf %80, %79 : vector<2x8x32xf32>
    %cst_40 = arith.constant dense<0.000000e+00> : vector<2x8xf32>
    %82 = vector.multi_reduction <add>, %81, %cst_40 [2] : vector<2x8x32xf32> to vector<2x8xf32>
    %83 = vector.shape_cast %82 : vector<2x8xf32> to vector<2x8x1xf32>
    %cst_41 = arith.constant 3.200000e+01 : f32
    %84 = vector.broadcast %cst_41 : f32 to vector<2x8x1xf32>
    %85 = arith.divf %83, %84 : vector<2x8x1xf32>
    %86 = vector.broadcast %85 : vector<2x8x1xf32> to vector<2x8x32xf32>
    %87 = arith.subf %81, %86 : vector<2x8x32xf32>
    %88 = arith.mulf %87, %87 : vector<2x8x32xf32>
    %cst_42 = arith.constant dense<0.000000e+00> : vector<2x8xf32>
    %89 = vector.multi_reduction <add>, %88, %cst_42 [2] : vector<2x8x32xf32> to vector<2x8xf32>
    %90 = vector.shape_cast %89 : vector<2x8xf32> to vector<2x8x1xf32>
    %cst_43 = arith.constant 3.200000e+01 : f32
    %91 = vector.broadcast %cst_43 : f32 to vector<2x8x1xf32>
    %92 = arith.divf %90, %91 : vector<2x8x1xf32>
    %93 = vector.broadcast %85 : vector<2x8x1xf32> to vector<2x8x32xf32>
    %94 = arith.subf %81, %93 : vector<2x8x32xf32>
    %cst_44 = arith.constant 9.99999974E-6 : f32
    %95 = vector.broadcast %cst_44 : f32 to vector<2x8x1xf32>
    %96 = arith.addf %92, %95 : vector<2x8x1xf32>
    %97 = math.rsqrt %96 : vector<2x8x1xf32>
    %98 = vector.broadcast %97 : vector<2x8x1xf32> to vector<2x8x32xf32>
    %99 = arith.mulf %94, %98 : vector<2x8x32xf32>
    %c0_45 = arith.constant 0 : index
    %c0_46 = arith.constant 0 : index
    %100 = vector.load %arg10[%c0_45, %c0_46] : memref<1x32xf32, #tpu.memory_space<vmem>>, vector<1x32xf32>
    %101 = vector.shape_cast %100 : vector<1x32xf32> to vector<1x1x32xf32>
    %102 = vector.broadcast %101 : vector<1x1x32xf32> to vector<2x8x32xf32>
    %103 = arith.mulf %99, %102 : vector<2x8x32xf32>
    %c0_47 = arith.constant 0 : index
    %c0_48 = arith.constant 0 : index
    %104 = vector.load %arg11[%c0_47, %c0_48] : memref<1x32xf32, #tpu.memory_space<vmem>>, vector<1x32xf32>
    %105 = vector.shape_cast %104 : vector<1x32xf32> to vector<1x1x32xf32>
    %106 = vector.broadcast %105 : vector<1x1x32xf32> to vector<2x8x32xf32>
    %107 = arith.addf %103, %106 : vector<2x8x32xf32>
    %c0_49 = arith.constant 0 : index
    %c0_50 = arith.constant 0 : index
    %c0_51 = arith.constant 0 : index
    %108 = vector.load %arg12[%c0_49, %c0_50, %c0_51] : memref<2x8x32xf32, #tpu.memory_space<vmem>>, vector<2x8x32xf32>
    tpu.vector_store %arg12[%c0_49, %c0_50, %c0_51], %107 {strides = array<i32>} : memref<2x8x32xf32, #tpu.memory_space<vmem>>, vector<2x8x32xf32>,
    return
  }
  func.func @transform_0(%arg0: i32) -> (i32, i32) {
    %c0_i32 = arith.constant 0 : i32
    %c0_i32_0 = arith.constant 0 : i32
    %c0_i32_1 = arith.constant 0 : i32
    return %c0_i32, %c0_i32_0 : i32, i32
  }
  func.func @transform_1(%arg0: i32) -> (i32, i32) {
    %c0_i32 = arith.constant 0 : i32
    %c0_i32_0 = arith.constant 0 : i32
    %c0_i32_1 = arith.constant 0 : i32
    return %c0_i32, %c0_i32_0 : i32, i32
  }
  func.func @transform_2(%arg0: i32) -> (i32, i32) {
    %c0_i32 = arith.constant 0 : i32
    %c0_i32_0 = arith.constant 0 : i32
    %c0_i32_1 = arith.constant 0 : i32
    return %c0_i32, %c0_i32_0 : i32, i32
  }
  func.func @transform_3(%arg0: i32) -> (i32, i32) {
    %c0_i32 = arith.constant 0 : i32
    %c0_i32_0 = arith.constant 0 : i32
    %c0_i32_1 = arith.constant 0 : i32
    return %c0_i32, %c0_i32_0 : i32, i32
  }
  func.func @transform_4(%arg0: i32) -> (i32, i32, i32) {
    %c0_i32 = arith.constant 0 : i32
    %c0_i32_0 = arith.constant 0 : i32
    %c0_i32_1 = arith.constant 0 : i32
    %c0_i32_2 = arith.constant 0 : i32
    return %c0_i32, %c0_i32_0, %c0_i32_1 : i32, i32, i32
  }
  func.func @transform_5(%arg0: i32) -> (i32, i32) {
    %c0_i32 = arith.constant 0 : i32
    %c0_i32_0 = arith.constant 0 : i32
    %c0_i32_1 = arith.constant 0 : i32
    return %c0_i32, %c0_i32_0 : i32, i32
  }
  func.func @transform_6(%arg0: i32) -> (i32, i32) {
    %c0_i32 = arith.constant 0 : i32
    %c0_i32_0 = arith.constant 0 : i32
    %c0_i32_1 = arith.constant 0 : i32
    return %c0_i32, %c0_i32_0 : i32, i32
  }
  func.func @transform_7(%arg0: i32) -> (i32, i32) {
    %c0_i32 = arith.constant 0 : i32
    %c0_i32_0 = arith.constant 0 : i32
    %c0_i32_1 = arith.constant 0 : i32
    return %c0_i32, %c0_i32_0 : i32, i32
  }
  func.func @transform_8(%arg0: i32) -> (i32, i32) {
    %c0_i32 = arith.constant 0 : i32
    %c0_i32_0 = arith.constant 0 : i32
    %c0_i32_1 = arith.constant 0 : i32
    return %c0_i32, %c0_i32_0 : i32, i32
  }
  func.func @transform_9(%arg0: i32) -> (i32, i32) {
    %c0_i32 = arith.constant 0 : i32
    %c0_i32_0 = arith.constant 0 : i32
    %c0_i32_1 = arith.constant 0 : i32
    return %c0_i32, %c0_i32_0 : i32, i32
  }
  func.func @transform_10(%arg0: i32) -> (i32, i32) {
    %c0_i32 = arith.constant 0 : i32
    %c0_i32_0 = arith.constant 0 : i32
    %c0_i32_1 = arith.constant 0 : i32
    return %c0_i32, %c0_i32_0 : i32, i32
  }
  func.func @transform_11(%arg0: i32) -> (i32, i32, i32) {
    %c0_i32 = arith.constant 0 : i32
    %c0_i32_0 = arith.constant 0 : i32
    %c0_i32_1 = arith.constant 0 : i32
    %c0_i32_2 = arith.constant 0 : i32
    return %c0_i32, %c0_i32_0, %c0_i32_1 : i32, i32, i32
  }
}

module attributes {stable_mosaic.version = 11 : i64} {
  func.func @_attn_block_kernel(%arg0: i32, %arg1: memref<8x32xf32, #tpu.memory_space<vmem>>, %arg2: memref<8x32xf32, #tpu.memory_space<vmem>>, %arg3: memref<16x32xf32, #tpu.memory_space<vmem>>, %arg4: memref<16x32xf32, #tpu.memory_space<vmem>>, %arg5: memref<2x8x32xf32, #tpu.memory_space<vmem>>, %arg6: memref<32x32xf32, #tpu.memory_space<vmem>>, %arg7: memref<32x32xf32, #tpu.memory_space<vmem>>, %arg8: memref<32x32xf32, #tpu.memory_space<vmem>>, %arg9: memref<32x32xf32, #tpu.memory_space<vmem>>, %arg10: memref<1x32xf32, #tpu.memory_space<vmem>>, %arg11: memref<1x32xf32, #tpu.memory_space<vmem>>, %arg12: memref<2x8x32xf32, #tpu.memory_space<vmem>>) attributes {dimension_semantics = [#tpu.dimension_semantics<arbitrary>], iteration_bounds = array<i64: 1>, scalar_prefetch = 0 : i64, scratch_operands = 0 : i64, tpu.core_type = #tpu.core_type<tc>, window_params = [{pipeline_mode = #tpu.pipeline_mode<synchronous>, transform_indices = @transform_0, window_bounds = array<i64: 8, 32>}, {pipeline_mode = #tpu.pipeline_mode<synchronous>, transform_indices = @transform_1, window_bounds = array<i64: 8, 32>}, {pipeline_mode = #tpu.pipeline_mode<synchronous>, transform_indices = @transform_2, window_bounds = array<i64: 16, 32>}, {pipeline_mode = #tpu.pipeline_mode<synchronous>, transform_indices = @transform_3, window_bounds = array<i64: 16, 32>}, {pipeline_mode = #tpu.pipeline_mode<synchronous>, transform_indices = @transform_4, window_bounds = array<i64: 2, 8, 32>}, {pipeline_mode = #tpu.pipeline_mode<synchronous>, transform_indices = @transform_5, window_bounds = array<i64: 32, 32>}, {pipeline_mode = #tpu.pipeline_mode<synchronous>, transform_indices = @transform_6, window_bounds = array<i64: 32, 32>}, {pipeline_mode = #tpu.pipeline_mode<synchronous>, transform_indices = @transform_7, window_bounds = array<i64: 32, 32>}, {pipeline_mode = #tpu.pipeline_mode<synchronous>, transform_indices = @transform_8, window_bounds = array<i64: 32, 32>}, {pipeline_mode = #tpu.pipeline_mode<synchronous>, transform_indices = @transform_9, window_bounds = array<i64: 1, 32>}, {pipeline_mode = #tpu.pipeline_mode<synchronous>, transform_indices = @transform_10, window_bounds = array<i64: 1, 32>}, {pipeline_mode = #tpu.pipeline_mode<synchronous>, transform_indices = @transform_11, window_bounds = array<i64: 2, 8, 32>}]} {
    %c0 = arith.constant 0 : index
    %c0_0 = arith.constant 0 : index
    %0 = vector.load %arg1[%c0, %c0_0] : memref<8x32xf32, #tpu.memory_space<vmem>>, vector<8x32xf32>
    %c0_1 = arith.constant 0 : index
    %c0_2 = arith.constant 0 : index
    %1 = vector.load %arg2[%c0_1, %c0_2] : memref<8x32xf32, #tpu.memory_space<vmem>>, vector<8x32xf32>
    %2 = arith.addf %0, %1 : vector<8x32xf32>
    %c0_3 = arith.constant 0 : index
    %c0_4 = arith.constant 0 : index
    %3 = vector.load %arg3[%c0_3, %c0_4] : memref<16x32xf32, #tpu.memory_space<vmem>>, vector<16x32xf32>
    %c0_5 = arith.constant 0 : index
    %c0_6 = arith.constant 0 : index
    %4 = vector.load %arg4[%c0_5, %c0_6] : memref<16x32xf32, #tpu.memory_space<vmem>>, vector<16x32xf32>
    %5 = arith.addf %3, %4 : vector<16x32xf32>
    %c0_7 = arith.constant 0 : index
    %c0_8 = arith.constant 0 : index
    %6 = vector.load %arg3[%c0_7, %c0_8] : memref<16x32xf32, #tpu.memory_space<vmem>>, vector<16x32xf32>
    %c0_9 = arith.constant 0 : index
    %c0_10 = arith.constant 0 : index
    %7 = vector.load %arg6[%c0_9, %c0_10] : memref<32x32xf32, #tpu.memory_space<vmem>>, vector<32x32xf32>
    %cst = arith.constant dense<0.000000e+00> : vector<8x32xf32>
    %8 = tpu.matmul %2, %7, %cst {dimension_numbers = #tpu.dot_dimension_numbers<[1], [0], [0], [1], [0, 0, 1, 1], [], []>} : vector<8x32xf32>, vector<32x32xf32>, vector<8x32xf32> -> vector<8x32xf32>
    %cst_11 = arith.constant 0.353553385 : f32
    %9 = vector.broadcast %cst_11 : f32 to vector<8x32xf32>
    %10 = arith.mulf %8, %9 : vector<8x32xf32>
    %c0_12 = arith.constant 0 : index
    %c0_13 = arith.constant 0 : index
    %11 = vector.load %arg7[%c0_12, %c0_13] : memref<32x32xf32, #tpu.memory_space<vmem>>, vector<32x32xf32>
    %cst_14 = arith.constant dense<0.000000e+00> : vector<16x32xf32>
    %12 = tpu.matmul %5, %11, %cst_14 {dimension_numbers = #tpu.dot_dimension_numbers<[1], [0], [0], [1], [0, 0, 1, 1], [], []>} : vector<16x32xf32>, vector<32x32xf32>, vector<16x32xf32> -> vector<16x32xf32>
    %c0_15 = arith.constant 0 : index
    %c0_16 = arith.constant 0 : index
    %13 = vector.load %arg8[%c0_15, %c0_16] : memref<32x32xf32, #tpu.memory_space<vmem>>, vector<32x32xf32>
    %cst_17 = arith.constant dense<0.000000e+00> : vector<16x32xf32>
    %14 = tpu.matmul %6, %13, %cst_17 {dimension_numbers = #tpu.dot_dimension_numbers<[1], [0], [0], [1], [0, 0, 1, 1], [], []>} : vector<16x32xf32>, vector<32x32xf32>, vector<16x32xf32> -> vector<16x32xf32>
    %15 = vector.extract_strided_slice %10 {offsets = [0, 0], sizes = [8, 8], strides = [1, 1]} : vector<8x32xf32> to vector<8x8xf32>
    %16 = vector.extract_strided_slice %12 {offsets = [0, 0], sizes = [16, 8], strides = [1, 1]} : vector<16x32xf32> to vector<16x8xf32>
    %17 = vector.extract_strided_slice %14 {offsets = [0, 0], sizes = [16, 8], strides = [1, 1]} : vector<16x32xf32> to vector<16x8xf32>
    %cst_18 = arith.constant dense<0.000000e+00> : vector<8x16xf32>
    %18 = tpu.matmul %15, %16, %cst_18 {dimension_numbers = #tpu.dot_dimension_numbers<[1], [1], [0], [0], [0, 0, 1, 0], [], []>} : vector<8x8xf32>, vector<16x8xf32>, vector<8x16xf32> -> vector<8x16xf32>
    %cst_19 = arith.constant dense<0xFF800000> : vector<8xf32>
    %19 = vector.multi_reduction <maximumf>, %18, %cst_19 [1] : vector<8x16xf32> to vector<8xf32>
    %20 = vector.shape_cast %19 : vector<8xf32> to vector<8x1xf32>
    %21 = vector.broadcast %20 : vector<8x1xf32> to vector<8x16xf32>
    %22 = arith.subf %18, %21 : vector<8x16xf32>
    %23 = math.exp %22 : vector<8x16xf32>
    %cst_20 = arith.constant dense<0.000000e+00> : vector<8xf32>
    %24 = vector.multi_reduction <add>, %23, %cst_20 [1] : vector<8x16xf32> to vector<8xf32>
    %25 = vector.shape_cast %24 : vector<8xf32> to vector<8x1xf32>
    %26 = tpu.reciprocal %25 {approx = true} : vector<8x1xf32> -> vector<8x1xf32>
    %27 = vector.broadcast %26 : vector<8x1xf32> to vector<8x16xf32>
    %28 = arith.mulf %23, %27 : vector<8x16xf32>
    %cst_21 = arith.constant dense<0.000000e+00> : vector<8x8xf32>
    %29 = tpu.matmul %28, %17, %cst_21 {dimension_numbers = #tpu.dot_dimension_numbers<[1], [0], [0], [1], [0, 0, 1, 1], [], []>} : vector<8x16xf32>, vector<16x8xf32>, vector<8x8xf32> -> vector<8x8xf32>
    %30 = vector.extract_strided_slice %10 {offsets = [0, 8], sizes = [8, 8], strides = [1, 1]} : vector<8x32xf32> to vector<8x8xf32>
    %31 = vector.extract_strided_slice %12 {offsets = [0, 8], sizes = [16, 8], strides = [1, 1]} : vector<16x32xf32> to vector<16x8xf32>
    %32 = vector.extract_strided_slice %14 {offsets = [0, 8], sizes = [16, 8], strides = [1, 1]} : vector<16x32xf32> to vector<16x8xf32>
    %cst_22 = arith.constant dense<0.000000e+00> : vector<8x16xf32>
    %33 = tpu.matmul %30, %31, %cst_22 {dimension_numbers = #tpu.dot_dimension_numbers<[1], [1], [0], [0], [0, 0, 1, 0], [], []>} : vector<8x8xf32>, vector<16x8xf32>, vector<8x16xf32> -> vector<8x16xf32>
    %cst_23 = arith.constant dense<0xFF800000> : vector<8xf32>
    %34 = vector.multi_reduction <maximumf>, %33, %cst_23 [1] : vector<8x16xf32> to vector<8xf32>
    %35 = vector.shape_cast %34 : vector<8xf32> to vector<8x1xf32>
    %36 = vector.broadcast %35 : vector<8x1xf32> to vector<8x16xf32>
    %37 = arith.subf %33, %36 : vector<8x16xf32>
    %38 = math.exp %37 : vector<8x16xf32>
    %cst_24 = arith.constant dense<0.000000e+00> : vector<8xf32>
    %39 = vector.multi_reduction <add>, %38, %cst_24 [1] : vector<8x16xf32> to vector<8xf32>
    %40 = vector.shape_cast %39 : vector<8xf32> to vector<8x1xf32>
    %41 = tpu.reciprocal %40 {approx = true} : vector<8x1xf32> -> vector<8x1xf32>
    %42 = vector.broadcast %41 : vector<8x1xf32> to vector<8x16xf32>
    %43 = arith.mulf %38, %42 : vector<8x16xf32>
    %cst_25 = arith.constant dense<0.000000e+00> : vector<8x8xf32>
    %44 = tpu.matmul %43, %32, %cst_25 {dimension_numbers = #tpu.dot_dimension_numbers<[1], [0], [0], [1], [0, 0, 1, 1], [], []>} : vector<8x16xf32>, vector<16x8xf32>, vector<8x8xf32> -> vector<8x8xf32>
    %45 = vector.extract_strided_slice %10 {offsets = [0, 16], sizes = [8, 8], strides = [1, 1]} : vector<8x32xf32> to vector<8x8xf32>
    %46 = vector.extract_strided_slice %12 {offsets = [0, 16], sizes = [16, 8], strides = [1, 1]} : vector<16x32xf32> to vector<16x8xf32>
    %47 = vector.extract_strided_slice %14 {offsets = [0, 16], sizes = [16, 8], strides = [1, 1]} : vector<16x32xf32> to vector<16x8xf32>
    %cst_26 = arith.constant dense<0.000000e+00> : vector<8x16xf32>
    %48 = tpu.matmul %45, %46, %cst_26 {dimension_numbers = #tpu.dot_dimension_numbers<[1], [1], [0], [0], [0, 0, 1, 0], [], []>} : vector<8x8xf32>, vector<16x8xf32>, vector<8x16xf32> -> vector<8x16xf32>
    %cst_27 = arith.constant dense<0xFF800000> : vector<8xf32>
    %49 = vector.multi_reduction <maximumf>, %48, %cst_27 [1] : vector<8x16xf32> to vector<8xf32>
    %50 = vector.shape_cast %49 : vector<8xf32> to vector<8x1xf32>
    %51 = vector.broadcast %50 : vector<8x1xf32> to vector<8x16xf32>
    %52 = arith.subf %48, %51 : vector<8x16xf32>
    %53 = math.exp %52 : vector<8x16xf32>
    %cst_28 = arith.constant dense<0.000000e+00> : vector<8xf32>
    %54 = vector.multi_reduction <add>, %53, %cst_28 [1] : vector<8x16xf32> to vector<8xf32>
    %55 = vector.shape_cast %54 : vector<8xf32> to vector<8x1xf32>
    %56 = tpu.reciprocal %55 {approx = true} : vector<8x1xf32> -> vector<8x1xf32>
    %57 = vector.broadcast %56 : vector<8x1xf32> to vector<8x16xf32>
    %58 = arith.mulf %53, %57 : vector<8x16xf32>
    %cst_29 = arith.constant dense<0.000000e+00> : vector<8x8xf32>
    %59 = tpu.matmul %58, %47, %cst_29 {dimension_numbers = #tpu.dot_dimension_numbers<[1], [0], [0], [1], [0, 0, 1, 1], [], []>} : vector<8x16xf32>, vector<16x8xf32>, vector<8x8xf32> -> vector<8x8xf32>
    %60 = vector.extract_strided_slice %10 {offsets = [0, 24], sizes = [8, 8], strides = [1, 1]} : vector<8x32xf32> to vector<8x8xf32>
    %61 = vector.extract_strided_slice %12 {offsets = [0, 24], sizes = [16, 8], strides = [1, 1]} : vector<16x32xf32> to vector<16x8xf32>
    %62 = vector.extract_strided_slice %14 {offsets = [0, 24], sizes = [16, 8], strides = [1, 1]} : vector<16x32xf32> to vector<16x8xf32>
    %cst_30 = arith.constant dense<0.000000e+00> : vector<8x16xf32>
    %63 = tpu.matmul %60, %61, %cst_30 {dimension_numbers = #tpu.dot_dimension_numbers<[1], [1], [0], [0], [0, 0, 1, 0], [], []>} : vector<8x8xf32>, vector<16x8xf32>, vector<8x16xf32> -> vector<8x16xf32>
    %cst_31 = arith.constant dense<0xFF800000> : vector<8xf32>
    %64 = vector.multi_reduction <maximumf>, %63, %cst_31 [1] : vector<8x16xf32> to vector<8xf32>
    %65 = vector.shape_cast %64 : vector<8xf32> to vector<8x1xf32>
    %66 = vector.broadcast %65 : vector<8x1xf32> to vector<8x16xf32>
    %67 = arith.subf %63, %66 : vector<8x16xf32>
    %68 = math.exp %67 : vector<8x16xf32>
    %cst_32 = arith.constant dense<0.000000e+00> : vector<8xf32>
    %69 = vector.multi_reduction <add>, %68, %cst_32 [1] : vector<8x16xf32> to vector<8xf32>
    %70 = vector.shape_cast %69 : vector<8xf32> to vector<8x1xf32>
    %71 = tpu.reciprocal %70 {approx = true} : vector<8x1xf32> -> vector<8x1xf32>
    %72 = vector.broadcast %71 : vector<8x1xf32> to vector<8x16xf32>
    %73 = arith.mulf %68, %72 : vector<8x16xf32>
    %cst_33 = arith.constant dense<0.000000e+00> : vector<8x8xf32>
    %74 = tpu.matmul %73, %62, %cst_33 {dimension_numbers = #tpu.dot_dimension_numbers<[1], [0], [0], [1], [0, 0, 1, 1], [], []>} : vector<8x16xf32>, vector<16x8xf32>, vector<8x8xf32> -> vector<8x8xf32>
    %75 = tpu.concatenate %29, %44, %59, %74 in 1 : vector<8x8xf32>, vector<8x8xf32>, vector<8x8xf32>, vector<8x8xf32> -> vector<8x32xf32>
    %c0_34 = arith.constant 0 : index
    %c0_35 = arith.constant 0 : index
    %76 = vector.load %arg9[%c0_34, %c0_35] : memref<32x32xf32, #tpu.memory_space<vmem>>, vector<32x32xf32>
    %cst_36 = arith.constant dense<0.000000e+00> : vector<8x32xf32>
    %77 = tpu.matmul %75, %76, %cst_36 {dimension_numbers = #tpu.dot_dimension_numbers<[1], [0], [0], [1], [0, 0, 1, 1], [], []>} : vector<8x32xf32>, vector<32x32xf32>, vector<8x32xf32> -> vector<8x32xf32>
    %78 = vector.shape_cast %77 : vector<8x32xf32> to vector<1x8x32xf32>
    %c0_37 = arith.constant 0 : index
    %c0_38 = arith.constant 0 : index
    %c0_39 = arith.constant 0 : index
    %79 = vector.load %arg5[%c0_37, %c0_38, %c0_39] : memref<2x8x32xf32, #tpu.memory_space<vmem>>, vector<2x8x32xf32>
    %80 = vector.broadcast %78 : vector<1x8x32xf32> to vector<2x8x32xf32>
    %81 = arith.addf %80, %79 : vector<2x8x32xf32>
    %cst_40 = arith.constant dense<0.000000e+00> : vector<2x8xf32>
    %82 = vector.multi_reduction <add>, %81, %cst_40 [2] : vector<2x8x32xf32> to vector<2x8xf32>
    %83 = vector.shape_cast %82 : vector<2x8xf32> to vector<2x8x1xf32>
    %cst_41 = arith.constant 3.200000e+01 : f32
    %84 = vector.broadcast %cst_41 : f32 to vector<2x8x1xf32>
    %85 = arith.divf %83, %84 : vector<2x8x1xf32>
    %86 = vector.broadcast %85 : vector<2x8x1xf32> to vector<2x8x32xf32>
    %87 = arith.subf %81, %86 : vector<2x8x32xf32>
    %88 = arith.mulf %87, %87 : vector<2x8x32xf32>
    %cst_42 = arith.constant dense<0.000000e+00> : vector<2x8xf32>
    %89 = vector.multi_reduction <add>, %88, %cst_42 [2] : vector<2x8x32xf32> to vector<2x8xf32>
    %90 = vector.shape_cast %89 : vector<2x8xf32> to vector<2x8x1xf32>
    %cst_43 = arith.constant 3.200000e+01 : f32
    %91 = vector.broadcast %cst_43 : f32 to vector<2x8x1xf32>
    %92 = arith.divf %90, %91 : vector<2x8x1xf32>
    %93 = vector.broadcast %85 : vector<2x8x1xf32> to vector<2x8x32xf32>
    %94 = arith.subf %81, %93 : vector<2x8x32xf32>
    %cst_44 = arith.constant 9.99999974E-6 : f32
    %95 = vector.broadcast %cst_44 : f32 to vector<2x8x1xf32>
    %96 = arith.addf %92, %95 : vector<2x8x1xf32>
    %97 = math.rsqrt %96 : vector<2x8x1xf32>
    %98 = vector.broadcast %97 : vector<2x8x1xf32> to vector<2x8x32xf32>
    %99 = arith.mulf %94, %98 : vector<2x8x32xf32>
    %c0_45 = arith.constant 0 : index
    %c0_46 = arith.constant 0 : index
    %100 = vector.load %arg10[%c0_45, %c0_46] : memref<1x32xf32, #tpu.memory_space<vmem>>, vector<1x32xf32>
    %101 = vector.shape_cast %100 : vector<1x32xf32> to vector<1x1x32xf32>
    %102 = vector.broadcast %101 : vector<1x1x32xf32> to vector<2x8x32xf32>
    %103 = arith.mulf %99, %102 : vector<2x8x32xf32>
    %c0_47 = arith.constant 0 : index
    %c0_48 = arith.constant 0 : index
    %104 = vector.load %arg11[%c0_47, %c0_48] : memref<1x32xf32, #tpu.memory_space<vmem>>, vector<1x32xf32>
    %105 = vector.shape_cast %104 : vector<1x32xf32> to vector<1x1x32xf32>
    %106 = vector.broadcast %105 : vector<1x1x32xf32> to vector<2x8x32xf32>
    %107 = arith.addf %103, %106 : vector<2x8x32xf32>
    %c0_49 = arith.constant 0 : index
    %c0_50 = arith.constant 0 : index
    %c0_51 = arith.constant 0 : index
    %108 = vector.load %arg12[%c0_49, %c0_50, %c0_51] : memref<2x8x32xf32, #tpu.memory_space<vmem>>, vector<2x8x32xf32>
    tpu.vector_store %arg12[%c0_49, %c0_50, %c0_51], %107 {strides = array<i32>} : memref<2x8x32xf32, #tpu.memory_space<vmem>>, vector<2x8x32xf32>,
    return
  }
  func.func @transform_0(%arg0: i32) -> (i32, i32) {
    %c0_i32 = arith.constant 0 : i32
    %c0_i32_0 = arith.constant 0 : i32
    %c0_i32_1 = arith.constant 0 : i32
    return %c0_i32, %c0_i32_0 : i32, i32
  }
  func.func @transform_1(%arg0: i32) -> (i32, i32) {
    %c0_i32 = arith.constant 0 : i32
    %c0_i32_0 = arith.constant 0 : i32
    %c0_i32_1 = arith.constant 0 : i32
    return %c0_i32, %c0_i32_0 : i32, i32
  }
  func.func @transform_2(%arg0: i32) -> (i32, i32) {
    %c0_i32 = arith.constant 0 : i32
    %c0_i32_0 = arith.constant 0 : i32
    %c0_i32_1 = arith.constant 0 : i32
    return %c0_i32, %c0_i32_0 : i32, i32
  }
  func.func @transform_3(%arg0: i32) -> (i32, i32) {
    %c0_i32 = arith.constant 0 : i32
    %c0_i32_0 = arith.constant 0 : i32
    %c0_i32_1 = arith.constant 0 : i32
    return %c0_i32, %c0_i32_0 : i32, i32
  }
  func.func @transform_4(%arg0: i32) -> (i32, i32, i32) {
    %c0_i32 = arith.constant 0 : i32
    %c0_i32_0 = arith.constant 0 : i32
    %c0_i32_1 = arith.constant 0 : i32
    %c0_i32_2 = arith.constant 0 : i32
    return %c0_i32, %c0_i32_0, %c0_i32_1 : i32, i32, i32
  }
  func.func @transform_5(%arg0: i32) -> (i32, i32) {
    %c0_i32 = arith.constant 0 : i32
    %c0_i32_0 = arith.constant 0 : i32
    %c0_i32_1 = arith.constant 0 : i32
    return %c0_i32, %c0_i32_0 : i32, i32
  }
  func.func @transform_6(%arg0: i32) -> (i32, i32) {
    %c0_i32 = arith.constant 0 : i32
    %c0_i32_0 = arith.constant 0 : i32
    %c0_i32_1 = arith.constant 0 : i32
    return %c0_i32, %c0_i32_0 : i32, i32
  }
  func.func @transform_7(%arg0: i32) -> (i32, i32) {
    %c0_i32 = arith.constant 0 : i32
    %c0_i32_0 = arith.constant 0 : i32
    %c0_i32_1 = arith.constant 0 : i32
    return %c0_i32, %c0_i32_0 : i32, i32
  }
  func.func @transform_8(%arg0: i32) -> (i32, i32) {
    %c0_i32 = arith.constant 0 : i32
    %c0_i32_0 = arith.constant 0 : i32
    %c0_i32_1 = arith.constant 0 : i32
    return %c0_i32, %c0_i32_0 : i32, i32
  }
  func.func @transform_9(%arg0: i32) -> (i32, i32) {
    %c0_i32 = arith.constant 0 : i32
    %c0_i32_0 = arith.constant 0 : i32
    %c0_i32_1 = arith.constant 0 : i32
    return %c0_i32, %c0_i32_0 : i32, i32
  }
  func.func @transform_10(%arg0: i32) -> (i32, i32) {
    %c0_i32 = arith.constant 0 : i32
    %c0_i32_0 = arith.constant 0 : i32
    %c0_i32_1 = arith.constant 0 : i32
    return %c0_i32, %c0_i32_0 : i32, i32
  }
  func.func @transform_11(%arg0: i32) -> (i32, i32, i32) {
    %c0_i32 = arith.constant 0 : i32
    %c0_i32_0 = arith.constant 0 : i32
    %c0_i32_1 = arith.constant 0 : i32
    %c0_i32_2 = arith.constant 0 : i32
    return %c0_i32, %c0_i32_0, %c0_i32_1 : i32, i32, i32
  }
}

module attributes {stable_mosaic.version = 11 : i64} {
  func.func @_ffn_block_kernel(%arg0: i32, %arg1: memref<16x32xf32, #tpu.memory_space<vmem>>, %arg2: memref<32x128xf32, #tpu.memory_space<vmem>>, %arg3: memref<1x128xf32, #tpu.memory_space<vmem>>, %arg4: memref<128x32xf32, #tpu.memory_space<vmem>>, %arg5: memref<1x32xf32, #tpu.memory_space<vmem>>, %arg6: memref<1x32xf32, #tpu.memory_space<vmem>>, %arg7: memref<1x32xf32, #tpu.memory_space<vmem>>, %arg8: memref<16x32xf32, #tpu.memory_space<vmem>>) attributes {dimension_semantics = [#tpu.dimension_semantics<arbitrary>], iteration_bounds = array<i64: 1>, scalar_prefetch = 0 : i64, scratch_operands = 0 : i64, tpu.core_type = #tpu.core_type<tc>, window_params = [{pipeline_mode = #tpu.pipeline_mode<synchronous>, transform_indices = @transform_0, window_bounds = array<i64: 16, 32>}, {pipeline_mode = #tpu.pipeline_mode<synchronous>, transform_indices = @transform_1, window_bounds = array<i64: 32, 128>}, {pipeline_mode = #tpu.pipeline_mode<synchronous>, transform_indices = @transform_2, window_bounds = array<i64: 1, 128>}, {pipeline_mode = #tpu.pipeline_mode<synchronous>, transform_indices = @transform_3, window_bounds = array<i64: 128, 32>}, {pipeline_mode = #tpu.pipeline_mode<synchronous>, transform_indices = @transform_4, window_bounds = array<i64: 1, 32>}, {pipeline_mode = #tpu.pipeline_mode<synchronous>, transform_indices = @transform_5, window_bounds = array<i64: 1, 32>}, {pipeline_mode = #tpu.pipeline_mode<synchronous>, transform_indices = @transform_6, window_bounds = array<i64: 1, 32>}, {pipeline_mode = #tpu.pipeline_mode<synchronous>, transform_indices = @transform_7, window_bounds = array<i64: 16, 32>}]} {
    %c0 = arith.constant 0 : index
    %c0_0 = arith.constant 0 : index
    %0 = vector.load %arg1[%c0, %c0_0] : memref<16x32xf32, #tpu.memory_space<vmem>>, vector<16x32xf32>
    %c0_1 = arith.constant 0 : index
    %c0_2 = arith.constant 0 : index
    %1 = vector.load %arg2[%c0_1, %c0_2] : memref<32x128xf32, #tpu.memory_space<vmem>>, vector<32x128xf32>
    %cst = arith.constant dense<0.000000e+00> : vector<16x128xf32>
    %2 = tpu.matmul %0, %1, %cst {dimension_numbers = #tpu.dot_dimension_numbers<[1], [0], [0], [1], [0, 0, 1, 1], [], []>} : vector<16x32xf32>, vector<32x128xf32>, vector<16x128xf32> -> vector<16x128xf32>
    %c0_3 = arith.constant 0 : index
    %c0_4 = arith.constant 0 : index
    %3 = vector.load %arg3[%c0_3, %c0_4] : memref<1x128xf32, #tpu.memory_space<vmem>>, vector<1x128xf32>
    %4 = vector.broadcast %3 : vector<1x128xf32> to vector<16x128xf32>
    %5 = arith.addf %2, %4 : vector<16x128xf32>
    %cst_5 = arith.constant 0.000000e+00 : f32
    %6 = vector.broadcast %cst_5 : f32 to vector<16x128xf32>
    %7 = arith.maximumf %5, %6 : vector<16x128xf32>
    %c0_6 = arith.constant 0 : index
    %c0_7 = arith.constant 0 : index
    %8 = vector.load %arg4[%c0_6, %c0_7] : memref<128x32xf32, #tpu.memory_space<vmem>>, vector<128x32xf32>
    %cst_8 = arith.constant dense<0.000000e+00> : vector<16x32xf32>
    %9 = tpu.matmul %7, %8, %cst_8 {dimension_numbers = #tpu.dot_dimension_numbers<[1], [0], [0], [1], [0, 0, 1, 1], [], []>} : vector<16x128xf32>, vector<128x32xf32>, vector<16x32xf32> -> vector<16x32xf32>
    %c0_9 = arith.constant 0 : index
    %c0_10 = arith.constant 0 : index
    %10 = vector.load %arg5[%c0_9, %c0_10] : memref<1x32xf32, #tpu.memory_space<vmem>>, vector<1x32xf32>
    %11 = vector.broadcast %10 : vector<1x32xf32> to vector<16x32xf32>
    %12 = arith.addf %9, %11 : vector<16x32xf32>
    %13 = arith.addf %12, %0 : vector<16x32xf32>
    %cst_11 = arith.constant dense<0.000000e+00> : vector<16xf32>
    %14 = vector.multi_reduction <add>, %13, %cst_11 [1] : vector<16x32xf32> to vector<16xf32>
    %15 = vector.shape_cast %14 : vector<16xf32> to vector<16x1xf32>
    %cst_12 = arith.constant 3.200000e+01 : f32
    %16 = vector.broadcast %cst_12 : f32 to vector<16x1xf32>
    %17 = arith.divf %15, %16 : vector<16x1xf32>
    %18 = vector.broadcast %17 : vector<16x1xf32> to vector<16x32xf32>
    %19 = arith.subf %13, %18 : vector<16x32xf32>
    %20 = arith.mulf %19, %19 : vector<16x32xf32>
    %cst_13 = arith.constant dense<0.000000e+00> : vector<16xf32>
    %21 = vector.multi_reduction <add>, %20, %cst_13 [1] : vector<16x32xf32> to vector<16xf32>
    %22 = vector.shape_cast %21 : vector<16xf32> to vector<16x1xf32>
    %cst_14 = arith.constant 3.200000e+01 : f32
    %23 = vector.broadcast %cst_14 : f32 to vector<16x1xf32>
    %24 = arith.divf %22, %23 : vector<16x1xf32>
    %25 = vector.broadcast %17 : vector<16x1xf32> to vector<16x32xf32>
    %26 = arith.subf %13, %25 : vector<16x32xf32>
    %cst_15 = arith.constant 9.99999974E-6 : f32
    %27 = vector.broadcast %cst_15 : f32 to vector<16x1xf32>
    %28 = arith.addf %24, %27 : vector<16x1xf32>
    %29 = math.rsqrt %28 : vector<16x1xf32>
    %30 = vector.broadcast %29 : vector<16x1xf32> to vector<16x32xf32>
    %31 = arith.mulf %26, %30 : vector<16x32xf32>
    %c0_16 = arith.constant 0 : index
    %c0_17 = arith.constant 0 : index
    %32 = vector.load %arg6[%c0_16, %c0_17] : memref<1x32xf32, #tpu.memory_space<vmem>>, vector<1x32xf32>
    %33 = vector.broadcast %32 : vector<1x32xf32> to vector<16x32xf32>
    %34 = arith.mulf %31, %33 : vector<16x32xf32>
    %c0_18 = arith.constant 0 : index
    %c0_19 = arith.constant 0 : index
    %35 = vector.load %arg7[%c0_18, %c0_19] : memref<1x32xf32, #tpu.memory_space<vmem>>, vector<1x32xf32>
    %36 = vector.broadcast %35 : vector<1x32xf32> to vector<16x32xf32>
    %37 = arith.addf %34, %36 : vector<16x32xf32>
    %c0_20 = arith.constant 0 : index
    %c0_21 = arith.constant 0 : index
    %38 = vector.load %arg8[%c0_20, %c0_21] : memref<16x32xf32, #tpu.memory_space<vmem>>, vector<16x32xf32>
    tpu.vector_store %arg8[%c0_20, %c0_21], %37 {strides = array<i32>} : memref<16x32xf32, #tpu.memory_space<vmem>>, vector<16x32xf32>,
    return
  }
  func.func @transform_0(%arg0: i32) -> (i32, i32) {
    %c0_i32 = arith.constant 0 : i32
    %c0_i32_0 = arith.constant 0 : i32
    %c0_i32_1 = arith.constant 0 : i32
    return %c0_i32, %c0_i32_0 : i32, i32
  }
  func.func @transform_1(%arg0: i32) -> (i32, i32) {
    %c0_i32 = arith.constant 0 : i32
    %c0_i32_0 = arith.constant 0 : i32
    %c0_i32_1 = arith.constant 0 : i32
    return %c0_i32, %c0_i32_0 : i32, i32
  }
  func.func @transform_2(%arg0: i32) -> (i32, i32) {
    %c0_i32 = arith.constant 0 : i32
    %c0_i32_0 = arith.constant 0 : i32
    %c0_i32_1 = arith.constant 0 : i32
    return %c0_i32, %c0_i32_0 : i32, i32
  }
  func.func @transform_3(%arg0: i32) -> (i32, i32) {
    %c0_i32 = arith.constant 0 : i32
    %c0_i32_0 = arith.constant 0 : i32
    %c0_i32_1 = arith.constant 0 : i32
    return %c0_i32, %c0_i32_0 : i32, i32
  }
  func.func @transform_4(%arg0: i32) -> (i32, i32) {
    %c0_i32 = arith.constant 0 : i32
    %c0_i32_0 = arith.constant 0 : i32
    %c0_i32_1 = arith.constant 0 : i32
    return %c0_i32, %c0_i32_0 : i32, i32
  }
  func.func @transform_5(%arg0: i32) -> (i32, i32) {
    %c0_i32 = arith.constant 0 : i32
    %c0_i32_0 = arith.constant 0 : i32
    %c0_i32_1 = arith.constant 0 : i32
    return %c0_i32, %c0_i32_0 : i32, i32
  }
  func.func @transform_6(%arg0: i32) -> (i32, i32) {
    %c0_i32 = arith.constant 0 : i32
    %c0_i32_0 = arith.constant 0 : i32
    %c0_i32_1 = arith.constant 0 : i32
    return %c0_i32, %c0_i32_0 : i32, i32
  }
  func.func @transform_7(%arg0: i32) -> (i32, i32) {
    %c0_i32 = arith.constant 0 : i32
    %c0_i32_0 = arith.constant 0 : i32
    %c0_i32_1 = arith.constant 0 : i32
    return %c0_i32, %c0_i32_0 : i32, i32
  }
}

</mosaic_0001>

<llo_original>
// kernel: transformer_forward.11
$region0: #{transformer_forward.11}
  #allocation0 [shape = 'u32[]', space=smem, size = 0x4, offset = 0x4, fixed_abs, tag = 'smem constant byte address 0x4 - core index']
  #allocation1 [shape = 'u32[72,128]{1,0:T(1,128)}', space=vmem, size = 0x9000, scoped, tag = 'internal scratch']
  %s0 = inlined_call_operand.vmem [shape: f32[32,32], index: 0, kind: input, shape index: {}]
  %s1 = inlined_call_operand.vmem [shape: f32[32,128], index: 1, kind: input, shape index: {}]
  %s2 = inlined_call_operand.vmem [shape: f32[1,128], index: 2, kind: input, shape index: {}]
  %s3 = inlined_call_operand.vmem [shape: f32[128,32], index: 3, kind: input, shape index: {}]
  %s4 = inlined_call_operand.vmem [shape: f32[1,32], index: 4, kind: input, shape index: {}]
  %s5 = inlined_call_operand.vmem [shape: f32[1,32], index: 5, kind: input, shape index: {}]
  %s6 = inlined_call_operand.vmem [shape: f32[1,32], index: 6, kind: input, shape index: {}]
  %s7 = inlined_call_operand.vmem [shape: f32[32,32], index: 7, kind: output, shape index: {}]
  %s8 = sld [smem:[#allocation0]]
  $region38: #{transformer_forward.11} parent=0
    _
  %s10 = ssub.s32 1, %s8
  %s11 = scalar_select 0, %s10, %s8
  // Predicated region
  $region2: #{transformer_forward.11} parent=0 // pred_check
    _
  $region3: #{transformer_forward.11} parent=0 // pred_check_branch
    %13 = sbr.rel (0) target = $region5
  $region4: #{transformer_forward.11} parent=0 // pred_region
    _
  $region5: #{transformer_forward.11} parent=0 // pred_fallthru
    _
  // Predicated region
  $region6: #{transformer_forward.11} parent=0 // pred_check
    _
  $region7: #{transformer_forward.11} parent=0 // pred_check_branch
    %15 = sbr.rel (0) target = $region9
  $region8: #{transformer_forward.11} parent=0 // pred_region
    _
  $region9: #{transformer_forward.11} parent=0 // pred_fallthru
    _
  // Predicated region
  $region10: #{transformer_forward.11} parent=0 // pred_check
    _
  $region11: #{transformer_forward.11} parent=0 // pred_check_branch
    %17 = sbr.rel (0) target = $region13
  $region12: #{transformer_forward.11} parent=0 // pred_region
    _
  $region13: #{transformer_forward.11} parent=0 // pred_fallthru
    _
  // Predicated region
  $region14: #{transformer_forward.11} parent=0 // pred_check
    _
  $region15: #{transformer_forward.11} parent=0 // pred_check_branch
    %19 = sbr.rel (0) target = $region17
  $region16: #{transformer_forward.11} parent=0 // pred_region
    _
  $region17: #{transformer_forward.11} parent=0 // pred_fallthru
    _
  // Predicated region
  $region18: #{transformer_forward.11} parent=0 // pred_check
    _
  $region19: #{transformer_forward.11} parent=0 // pred_check_branch
    %21 = sbr.rel (0) target = $region21
  $region20: #{transformer_forward.11} parent=0 // pred_region
    _
  $region21: #{transformer_forward.11} parent=0 // pred_fallthru
    _
  // Predicated region
  $region22: #{transformer_forward.11} parent=0 // pred_check
    _
  $region23: #{transformer_forward.11} parent=0 // pred_check_branch
    %23 = sbr.rel (0) target = $region25
  $region24: #{transformer_forward.11} parent=0 // pred_region
    _
  $region25: #{transformer_forward.11} parent=0 // pred_fallthru
    _
  // Predicated region
  $region26: #{transformer_forward.11} parent=0 // pred_check
    _
  $region27: #{transformer_forward.11} parent=0 // pred_check_branch
    %25 = sbr.rel (0) target = $region29
  $region28: #{transformer_forward.11} parent=0 // pred_region
    _
  $region29: #{transformer_forward.11} parent=0 // pred_fallthru
    _
  %v26 = vld [vmem:[%s0] sm:$0xff]
  %v27 = vld [vmem:[%s0 + $0x8] sm:$0xff]
  %v28 = vld [vmem:[%s0 + $0x10] sm:$0xff]
  %v29 = vld [vmem:[%s0 + $0x18] sm:$0xff]
  %v30 = vld [vmem:[%s1] sm:$0xff]
  %v31 = vld [vmem:[%s1 + $0x8] sm:$0xff]
  %v32 = vld [vmem:[%s1 + $0x10] sm:$0xff]
  %v33 = vld [vmem:[%s1 + $0x18] sm:$0xff]
  %v34 = vld [vmem:[%s2] sm:$0x1]
  %v36 = vperm.slane %v34, 0
  %vm38 = vcmask 261120
  %v40 = vsel %vm38, %v26, 0
  %v43 = vsel %vm38, %v27, 0
  %v46 = vsel %vm38, %v28, 0
  %v49 = vsel %vm38, %v29, 0
  %51 = vmatpush.msra.mxu0 0.0
  %52 = vmatpush.msra.mxu0 0.0
  %53 = vmatpush.msra.mxu0 0.0
  %54 = vmatpush.msra.mxu0 0.0
  %55 = vmatpush.msra.mxu0 0.0
  %56 = vmatpush.msra.mxu0 0.0
  %57 = vmatpush.msra.mxu0 0.0
  %58 = vmatpush.msra.mxu0 0.0
  %59 = vmatpush.msra.mxu0 0.0
  %60 = vmatpush.msra.mxu0 0.0
  %61 = vmatpush.msra.mxu0 0.0
  %62 = vmatpush.msra.mxu0 0.0
  %63 = vmatpush.msra.mxu0 %v33
  %64 = vmatpush.msra.mxu0 %v32
  %65 = vmatpush.msra.mxu0 %v31
  %66 = vmatpush.msra.mxu0 %v30
  %67 = vmatmul.f32.gmra.mxu0 %v40
  %v68 = vpop.f32.mrf.mxu0
  %v69 = vadd.f32 %v36, %v68
  %70 = vmatmul.f32.gmra.mxu0 %v43
  %v71 = vpop.f32.mrf.mxu0
  %v72 = vadd.f32 %v36, %v71
  %73 = vmatmul.f32.gmra.mxu0 %v46
  %v74 = vpop.f32.mrf.mxu0
  %v75 = vadd.f32 %v36, %v74
  %76 = vmatmul.f32.gmra.mxu0 %v49
  %v77 = vpop.f32.mrf.mxu0
  %v78 = vadd.f32 %v36, %v77
  %79 = vdwg.mxu0
  %v80 = vmax.f32 %v69, 0.0
  %v81 = vmax.f32 %v72, 0.0
  %v82 = vmax.f32 %v75, 0.0
  %v83 = vmax.f32 %v78, 0.0
  %v84 = vld [vmem:[%s3] sm:$0xff]
  %v85 = vld [vmem:[%s3 + $0x8] sm:$0xff]
  %v86 = vld [vmem:[%s3 + $0x10] sm:$0xff]
  %v87 = vld [vmem:[%s3 + $0x18] sm:$0xff]
  %v88 = vld [vmem:[%s3 + $0x20] sm:$0xff]
  %v89 = vld [vmem:[%s3 + $0x28] sm:$0xff]
  %v90 = vld [vmem:[%s3 + $0x30] sm:$0xff]
  %v91 = vld [vmem:[%s3 + $0x38] sm:$0xff]
  %v92 = vld [vmem:[%s3 + $0x40] sm:$0xff]
  %v93 = vld [vmem:[%s3 + $0x48] sm:$0xff]
  %v94 = vld [vmem:[%s3 + $0x50] sm:$0xff]
  %v95 = vld [vmem:[%s3 + $0x58] sm:$0xff]
  %v96 = vld [vmem:[%s3 + $0x60] sm:$0xff]
  %v97 = vld [vmem:[%s3 + $0x68] sm:$0xff]
  %v98 = vld [vmem:[%s3 + $0x70] sm:$0xff]
  %v99 = vld [vmem:[%s3 + $0x78] sm:$0xff]
  %v100 = vld [vmem:[%s4] sm:$0x1]
  %v102 = vperm.slane %v100, 0
  %104 = vmatpush.msra.mxu0 %v99
  %105 = vmatpush.msra.mxu0 %v98
  %106 = vmatpush.msra.mxu0 %v97
  %107 = vmatpush.msra.mxu0 %v96
  %108 = vmatpush.msra.mxu0 %v95
  %109 = vmatpush.msra.mxu0 %v94
  %110 = vmatpush.msra.mxu0 %v93
  %111 = vmatpush.msra.mxu0 %v92
  %112 = vmatpush.msra.mxu0 %v91
  %113 = vmatpush.msra.mxu0 %v90
  %114 = vmatpush.msra.mxu0 %v89
  %115 = vmatpush.msra.mxu0 %v88
  %116 = vmatpush.msra.mxu0 %v87
  %117 = vmatpush.msra.mxu0 %v86
  %118 = vmatpush.msra.mxu0 %v85
  %119 = vmatpush.msra.mxu0 %v84
  %120 = vmatmul.f32.gmra.mxu0 %v80
  %v121 = vpop.f32.mrf.mxu0
  %v122 = vadd.f32 %v102, %v121
  %123 = vmatmul.f32.gmra.mxu0 %v81
  %v124 = vpop.f32.mrf.mxu0
  %v125 = vadd.f32 %v102, %v124
  %126 = vmatmul.f32.gmra.mxu0 %v82
  %v127 = vpop.f32.mrf.mxu0
  %v128 = vadd.f32 %v102, %v127
  %129 = vmatmul.f32.gmra.mxu0 %v83
  %v130 = vpop.f32.mrf.mxu0
  %v131 = vadd.f32 %v102, %v130
  %132 = vdwg.mxu0
  %v133 = vadd.f32 %v122, %v26
  %v134 = vadd.f32 %v125, %v27
  %v135 = vadd.f32 %v128, %v28
  %v136 = vadd.f32 %v131, %v29
  %v137 = vsel %vm38, %v133, 0.0
  %138 = vadd.xlane.f32.xlu0 %v137
  %v139 = vpop.xlane.xlu0 %138
  %v140 = vsel %vm38, %v134, 0.0
  %141 = vadd.xlane.f32.xlu0 %v140
  %v142 = vpop.xlane.xlu0 %141
  %v143 = vsel %vm38, %v135, 0.0
  %144 = vadd.xlane.f32.xlu0 %v143
  %v145 = vpop.xlane.xlu0 %144
  %v146 = vsel %vm38, %v136, 0.0
  %147 = vadd.xlane.f32.xlu0 %v146
  %v148 = vpop.xlane.xlu0 %147
  %v149 = vrcp.pop 32.0
  %v150 = vmul.f32 32.0, %v149
  %v151 = vsub.f32 1.0, %v150
  %v152 = vmul.f32 %v149, %v151
  %v153 = vadd.f32 %v149, %v152
  %vm154 = vweird.f32 %v149
  %v155 = vsel %vm154, %v149, %v153
  %v156 = vmul.f32 %v139, %v155
  %v157 = vmul.f32 %v142, %v155
  %v158 = vmul.f32 %v145, %v155
  %v159 = vmul.f32 %v148, %v155
  %v160 = vsub.f32 %v133, %v156
  %v161 = vsub.f32 %v134, %v157
  %v162 = vsub.f32 %v135, %v158
  %v163 = vsub.f32 %v136, %v159
  %v164 = vmul.f32 %v160, %v160
  %v165 = vmul.f32 %v161, %v161
  %v166 = vmul.f32 %v162, %v162
  %v167 = vmul.f32 %v163, %v163
  %v168 = vsel %vm38, %v164, 0.0
  %169 = vadd.xlane.f32.xlu0 %v168
  %v170 = vpop.xlane.xlu0 %169
  %v171 = vsel %vm38, %v165, 0.0
  %172 = vadd.xlane.f32.xlu0 %v171
  %v173 = vpop.xlane.xlu0 %172
  %v174 = vsel %vm38, %v166, 0.0
  %175 = vadd.xlane.f32.xlu0 %v174
  %v176 = vpop.xlane.xlu0 %175
  %v177 = vsel %vm38, %v167, 0.0
  %178 = vadd.xlane.f32.xlu0 %v177
  %v179 = vpop.xlane.xlu0 %178
  %v180 = vmul.f32 %v170, %v155
  %v181 = vmul.f32 %v173, %v155
  %v182 = vmul.f32 %v176, %v155
  %v183 = vmul.f32 %v179, %v155
  %v184 = vadd.f32 %v180, 1e-05
  %v185 = vadd.f32 %v181, 1e-05
  %v186 = vadd.f32 %v182, 1e-05
  %v187 = vadd.f32 %v183, 1e-05
  %v188 = vrsqrt.pop %v184
  %v189 = vmul.f32 %v188, %v184
  %v190 = vmul.f32 %v189, %v188
  %v191 = vmul.f32 0.5, %v190
  %v192 = vsub.f32 1.5, %v191
  %v193 = vmul.f32 %v188, %v192
  %vm194 = vweird.f32 %v184
  %vm195 = vweird.f32 %v188
  %vm196 = vmor %vm194, %vm195
  %v197 = vsel %vm196, %v188, %v193
  %v198 = vrsqrt.pop %v185
  %v199 = vmul.f32 %v198, %v185
  %v200 = vmul.f32 %v199, %v198
  %v201 = vmul.f32 0.5, %v200
  %v202 = vsub.f32 1.5, %v201
  %v203 = vmul.f32 %v198, %v202
  %vm204 = vweird.f32 %v185
  %vm205 = vweird.f32 %v198
  %vm206 = vmor %vm204, %vm205
  %v207 = vsel %vm206, %v198, %v203
  %v208 = vrsqrt.pop %v186
  %v209 = vmul.f32 %v208, %v186
  %v210 = vmul.f32 %v209, %v208
  %v211 = vmul.f32 0.5, %v210
  %v212 = vsub.f32 1.5, %v211
  %v213 = vmul.f32 %v208, %v212
  %vm214 = vweird.f32 %v186
  %vm215 = vweird.f32 %v208
  %vm216 = vmor %vm214, %vm215
  %v217 = vsel %vm216, %v208, %v213
  %v218 = vrsqrt.pop %v187
  %v219 = vmul.f32 %v218, %v187
  %v220 = vmul.f32 %v219, %v218
  %v221 = vmul.f32 0.5, %v220
  %v222 = vsub.f32 1.5, %v221
  %v223 = vmul.f32 %v218, %v222
  %vm224 = vweird.f32 %v187
  %vm225 = vweird.f32 %v218
  %vm226 = vmor %vm224, %vm225
  %v227 = vsel %vm226, %v218, %v223
  %v228 = vmul.f32 %v160, %v197
  %v229 = vmul.f32 %v161, %v207
  %v230 = vmul.f32 %v162, %v217
  %v231 = vmul.f32 %v163, %v227
  %v232 = vld [vmem:[%s5] sm:$0x1]
  %v234 = vperm.slane %v232, 0
  %v236 = vmul.f32 %v228, %v234
  %v237 = vmul.f32 %v229, %v234
  %v238 = vmul.f32 %v230, %v234
  %v239 = vmul.f32 %v231, %v234
  %v240 = vld [vmem:[%s6] sm:$0x1]
  %v242 = vperm.slane %v240, 0
  %v244 = vadd.f32 %v236, %v242
  %v245 = vadd.f32 %v237, %v242
  %v246 = vadd.f32 %v238, %v242
  %v247 = vadd.f32 %v239, %v242
  %248 = vst.msk [vmem:[%s7] sm:$0xff] %vm38, %v244
  %249 = vst.msk [vmem:[%s7 + $0x8] sm:$0xff] %vm38, %v245
  %250 = vst.msk [vmem:[%s7 + $0x10] sm:$0xff] %vm38, %v246
  %251 = vst.msk [vmem:[%s7 + $0x18] sm:$0xff] %vm38, %v247
  // Predicated region
  $region30: #{transformer_forward.11} parent=0 // pred_check
    _
  $region31: #{transformer_forward.11} parent=0 // pred_check_branch
    %253 = sbr.rel (0) target = $region33
  $region32: #{transformer_forward.11} parent=0 // pred_region
    _
  $region33: #{transformer_forward.11} parent=0 // pred_fallthru
    _
  // Predicated region
  $region34: #{transformer_forward.11} parent=0 // pred_check
    _
  $region35: #{transformer_forward.11} parent=0 // pred_check_branch
    %255 = sbr.rel (0) target = $region37
  $region36: #{transformer_forward.11} parent=0 // pred_region
    _
  $region37: #{transformer_forward.11} parent=0 // pred_fallthru
    _

// kernel: transformer_forward.14
$region0: #{transformer_forward.14}
  #allocation0 [shape = 'u32[]', space=smem, size = 0x4, offset = 0x4, fixed_abs, tag = 'smem constant byte address 0x4 - core index']
  #allocation1 [shape = 'u32[72,128]{1,0:T(1,128)}', space=vmem, size = 0x9000, scoped, tag = 'internal scratch']
  %s0 = inlined_call_operand.vmem [shape: f32[8,32], index: 0, kind: input, shape index: {}, may-alias: {0,2}]
  %s1 = inlined_call_operand.vmem [shape: f32[8,32], index: 1, kind: input, shape index: {}, may-alias: {1,3}]
  %s2 = inlined_call_operand.vmem [shape: f32[8,32], index: 2, kind: input, shape index: {}, may-alias: {0,2}]
  %s3 = inlined_call_operand.vmem [shape: f32[8,32], index: 3, kind: input, shape index: {}, may-alias: {1,3}]
  %s4 = inlined_call_operand.vmem [shape: f32[2,8,32], index: 4, kind: input, shape index: {}]
  %s5 = inlined_call_operand.vmem [shape: f32[32,32], index: 5, kind: input, shape index: {}]
  %s6 = inlined_call_operand.vmem [shape: f32[32,32], index: 6, kind: input, shape index: {}]
  %s7 = inlined_call_operand.vmem [shape: f32[32,32], index: 7, kind: input, shape index: {}]
  %s8 = inlined_call_operand.vmem [shape: f32[32,32], index: 8, kind: input, shape index: {}]
  %s9 = inlined_call_operand.vmem [shape: f32[1,32], index: 9, kind: input, shape index: {}]
  %s10 = inlined_call_operand.vmem [shape: f32[1,32], index: 10, kind: input, shape index: {}]
  %s11 = inlined_call_operand.vmem [shape: f32[2,8,32], index: 11, kind: output, shape index: {}]
  %s12 = sld [smem:[#allocation0]]
  $region54: #{transformer_forward.14} parent=0
    _
  %s14 = ssub.s32 1, %s12
  %s15 = scalar_select 0, %s14, %s12
  // Predicated region
  $region2: #{transformer_forward.14} parent=0 // pred_check
    _
  $region3: #{transformer_forward.14} parent=0 // pred_check_branch
    %17 = sbr.rel (0) target = $region5
  $region4: #{transformer_forward.14} parent=0 // pred_region
    _
  $region5: #{transformer_forward.14} parent=0 // pred_fallthru
    _
  // Predicated region
  $region6: #{transformer_forward.14} parent=0 // pred_check
    _
  $region7: #{transformer_forward.14} parent=0 // pred_check_branch
    %19 = sbr.rel (0) target = $region9
  $region8: #{transformer_forward.14} parent=0 // pred_region
    _
  $region9: #{transformer_forward.14} parent=0 // pred_fallthru
    _
  // Predicated region
  $region10: #{transformer_forward.14} parent=0 // pred_check
    _
  $region11: #{transformer_forward.14} parent=0 // pred_check_branch
    %21 = sbr.rel (0) target = $region13
  $region12: #{transformer_forward.14} parent=0 // pred_region
    _
  $region13: #{transformer_forward.14} parent=0 // pred_fallthru
    _
  // Predicated region
  $region14: #{transformer_forward.14} parent=0 // pred_check
    _
  $region15: #{transformer_forward.14} parent=0 // pred_check_branch
    %23 = sbr.rel (0) target = $region17
  $region16: #{transformer_forward.14} parent=0 // pred_region
    _
  $region17: #{transformer_forward.14} parent=0 // pred_fallthru
    _
  // Predicated region
  $region18: #{transformer_forward.14} parent=0 // pred_check
    _
  $region19: #{transformer_forward.14} parent=0 // pred_check_branch
    %25 = sbr.rel (0) target = $region21
  $region20: #{transformer_forward.14} parent=0 // pred_region
    _
  $region21: #{transformer_forward.14} parent=0 // pred_fallthru
    _
  // Predicated region
  $region22: #{transformer_forward.14} parent=0 // pred_check
    _
  $region23: #{transformer_forward.14} parent=0 // pred_check_branch
    %27 = sbr.rel (0) target = $region25
  $region24: #{transformer_forward.14} parent=0 // pred_region
    _
  $region25: #{transformer_forward.14} parent=0 // pred_fallthru
    _
  // Predicated region
  $region26: #{transformer_forward.14} parent=0 // pred_check
    _
  $region27: #{transformer_forward.14} parent=0 // pred_check_branch
    %29 = sbr.rel (0) target = $region29
  $region28: #{transformer_forward.14} parent=0 // pred_region
    _
  $region29: #{transformer_forward.14} parent=0 // pred_fallthru
    _
  // Predicated region
  $region30: #{transformer_forward.14} parent=0 // pred_check
    _
  $region31: #{transformer_forward.14} parent=0 // pred_check_branch
    %31 = sbr.rel (0) target = $region33
  $region32: #{transformer_forward.14} parent=0 // pred_region
    _
  $region33: #{transformer_forward.14} parent=0 // pred_fallthru
    _
  // Predicated region
  $region34: #{transformer_forward.14} parent=0 // pred_check
    _
  $region35: #{transformer_forward.14} parent=0 // pred_check_branch
    %33 = sbr.rel (0) target = $region37
  $region36: #{transformer_forward.14} parent=0 // pred_region
    _
  $region37: #{transformer_forward.14} parent=0 // pred_fallthru
    _
  // Predicated region
  $region38: #{transformer_forward.14} parent=0 // pred_check
    _
  $region39: #{transformer_forward.14} parent=0 // pred_check_branch
    %35 = sbr.rel (0) target = $region41
  $region40: #{transformer_forward.14} parent=0 // pred_region
    _
  $region41: #{transformer_forward.14} parent=0 // pred_fallthru
    _
  // Predicated region
  $region42: #{transformer_forward.14} parent=0 // pred_check
    _
  $region43: #{transformer_forward.14} parent=0 // pred_check_branch
    %37 = sbr.rel (0) target = $region45
  $region44: #{transformer_forward.14} parent=0 // pred_region
    _
  $region45: #{transformer_forward.14} parent=0 // pred_fallthru
    _
  %v38 = vld [vmem:[%s0] sm:$0xff]
  %v39 = vld [vmem:[%s1] sm:$0xff]
  %v40 = vadd.f32 %v38, %v39
  %v41 = vld [vmem:[%s2] sm:$0xff]
  %v42 = vld [vmem:[%s3] sm:$0xff]
  %v43 = vadd.f32 %v41, %v42
  %v44 = vld [vmem:[%s5] sm:$0xff]
  %v45 = vld [vmem:[%s5 + $0x8] sm:$0xff]
  %v46 = vld [vmem:[%s5 + $0x10] sm:$0xff]
  %v47 = vld [vmem:[%s5 + $0x18] sm:$0xff]
  %vm48 = vcmask 261120
  %v50 = vsel %vm48, %v40, 0
  %52 = vmatpush.msra.mxu0 0.0
  %53 = vmatpush.msra.mxu0 0.0
  %54 = vmatpush.msra.mxu0 0.0
  %55 = vmatpush.msra.mxu0 0.0
  %56 = vmatpush.msra.mxu0 0.0
  %57 = vmatpush.msra.mxu0 0.0
  %58 = vmatpush.msra.mxu0 0.0
  %59 = vmatpush.msra.mxu0 0.0
  %60 = vmatpush.msra.mxu0 0.0
  %61 = vmatpush.msra.mxu0 0.0
  %62 = vmatpush.msra.mxu0 0.0
  %63 = vmatpush.msra.mxu0 0.0
  %64 = vmatpush.msra.mxu0 %v47
  %65 = vmatpush.msra.mxu0 %v46
  %66 = vmatpush.msra.mxu0 %v45
  %67 = vmatpush.msra.mxu0 %v44
  %68 = vmatmul.f32.gmra.mxu0 %v50
  %v69 = vpop.f32.mrf.mxu0
  %v70 = vadd.f32 0.0, %v69
  %71 = vdwg.mxu0
  %v72 = vmul.f32 %v70, 0.35355338
  %v73 = vld [vmem:[%s6] sm:$0xff]
  %v74 = vld [vmem:[%s6 + $0x8] sm:$0xff]
  %v75 = vld [vmem:[%s6 + $0x10] sm:$0xff]
  %v76 = vld [vmem:[%s6 + $0x18] sm:$0xff]
  %v78 = vsel %vm48, %v43, 0
  %80 = vmatpush.msra.mxu0 0.0
  %81 = vmatpush.msra.mxu0 0.0
  %82 = vmatpush.msra.mxu0 0.0
  %83 = vmatpush.msra.mxu0 0.0
  %84 = vmatpush.msra.mxu0 0.0
  %85 = vmatpush.msra.mxu0 0.0
  %86 = vmatpush.msra.mxu0 0.0
  %87 = vmatpush.msra.mxu0 0.0
  %88 = vmatpush.msra.mxu0 0.0
  %89 = vmatpush.msra.mxu0 0.0
  %90 = vmatpush.msra.mxu0 0.0
  %91 = vmatpush.msra.mxu0 0.0
  %92 = vmatpush.msra.mxu0 %v76
  %93 = vmatpush.msra.mxu0 %v75
  %94 = vmatpush.msra.mxu0 %v74
  %95 = vmatpush.msra.mxu0 %v73
  %96 = vmatmul.f32.gmra.mxu0 %v78
  %v97 = vpop.f32.mrf.mxu0
  %v98 = vadd.f32 0.0, %v97
  %99 = vdwg.mxu0
  %v100 = vld [vmem:[%s7] sm:$0xff]
  %v101 = vld [vmem:[%s7 + $0x8] sm:$0xff]
  %v102 = vld [vmem:[%s7 + $0x10] sm:$0xff]
  %v103 = vld [vmem:[%s7 + $0x18] sm:$0xff]
  %v105 = vsel %vm48, %v41, 0
  %107 = vmatpush.msra.mxu0 0.0
  %108 = vmatpush.msra.mxu0 0.0
  %109 = vmatpush.msra.mxu0 0.0
  %110 = vmatpush.msra.mxu0 0.0
  %111 = vmatpush.msra.mxu0 0.0
  %112 = vmatpush.msra.mxu0 0.0
  %113 = vmatpush.msra.mxu0 0.0
  %114 = vmatpush.msra.mxu0 0.0
  %115 = vmatpush.msra.mxu0 0.0
  %116 = vmatpush.msra.mxu0 0.0
  %117 = vmatpush.msra.mxu0 0.0
  %118 = vmatpush.msra.mxu0 0.0
  %119 = vmatpush.msra.mxu0 %v103
  %120 = vmatpush.msra.mxu0 %v102
  %121 = vmatpush.msra.mxu0 %v101
  %122 = vmatpush.msra.mxu0 %v100
  %123 = vmatmul.f32.gmra.mxu0 %v105
  %v124 = vpop.f32.mrf.mxu0
  %v125 = vadd.f32 0.0, %v124
  %126 = vdwg.mxu0
  %vm127 = vcmask 64512
  %v129 = vsel %vm127, %v72, 0
  %v132 = vsel %vm127, %v98, 0
  %134 = vmatpush.xpose.msra.mxu0 0.0
  %135 = vmatpush.xpose.msra.mxu0 0.0
  %136 = vmatpush.xpose.msra.mxu0 0.0
  %137 = vmatpush.xpose.msra.mxu0 0.0
  %138 = vmatpush.xpose.msra.mxu0 0.0
  %139 = vmatpush.xpose.msra.mxu0 0.0
  %140 = vmatpush.xpose.msra.mxu0 0.0
  %141 = vmatpush.xpose.msra.mxu0 0.0
  %142 = vmatpush.xpose.msra.mxu0 0.0
  %143 = vmatpush.xpose.msra.mxu0 0.0
  %144 = vmatpush.xpose.msra.mxu0 0.0
  %145 = vmatpush.xpose.msra.mxu0 0.0
  %146 = vmatpush.xpose.msra.mxu0 0.0
  %147 = vmatpush.xpose.msra.mxu0 0.0
  %148 = vmatpush.xpose.msra.mxu0 0.0
  %149 = vmatpush.xpose.msra.mxu0 %v132
  %150 = vmatmul.f32.gmra.mxu0 %v129
  %v151 = vpop.f32.mrf.mxu0
  %v152 = vadd.f32 0.0, %v151
  %153 = vdwg.mxu0
  %v154 = vsel %vm127, %v152, -inf
  %155 = vmax.xlane.f32.xlu0 %v154
  %v156 = vpop.xlane.xlu0 %155
  %v157 = vsub.f32 %v152, %v156
  %v158 = vmul.f32 %v157, 1.442695
  %v159 = vpow.pop %v158
  %v160 = vsel %vm127, %v159, 0.0
  %161 = vadd.xlane.f32.xlu0 %v160
  %v162 = vpop.xlane.xlu0 %161
  %v163 = vrcp.pop %v162
  %v164 = vmul.f32 %v159, %v163
  %v166 = vsel %vm127, %v164, 0
  %168 = vmatpush.msra.mxu0 0.0
  %169 = vmatpush.msra.mxu0 0.0
  %170 = vmatpush.msra.mxu0 0.0
  %171 = vmatpush.msra.mxu0 0.0
  %172 = vmatpush.msra.mxu0 0.0
  %173 = vmatpush.msra.mxu0 0.0
  %174 = vmatpush.msra.mxu0 0.0
  %175 = vmatpush.msra.mxu0 0.0
  %176 = vmatpush.msra.mxu0 0.0
  %177 = vmatpush.msra.mxu0 0.0
  %178 = vmatpush.msra.mxu0 0.0
  %179 = vmatpush.msra.mxu0 0.0
  %180 = vmatpush.msra.mxu0 0.0
  %181 = vmatpush.msra.mxu0 0.0
  %182 = vmatpush.msra.mxu0 0.0
  %183 = vmatpush.msra.mxu0 %v125
  %184 = vmatmul.f32.gmra.mxu0 %v166
  %v185 = vpop.f32.mrf.mxu0
  %v186 = vadd.f32 0.0, %v185
  %187 = vdwg.mxu0
  %188 = vrot.lane.b32.xlu0 %v72, 120
  %v189 = vpop.permute.xlu0 %188
  %190 = vrot.lane.b32.xlu0 %v98, 120
  %v191 = vpop.permute.xlu0 %190
  %v192 = vsel %vm127, %v189, 0
  %v194 = vsel %vm127, %v191, 0
  %196 = vmatpush.xpose.msra.mxu0 0.0
  %197 = vmatpush.xpose.msra.mxu0 0.0
  %198 = vmatpush.xpose.msra.mxu0 0.0
  %199 = vmatpush.xpose.msra.mxu0 0.0
  %200 = vmatpush.xpose.msra.mxu0 0.0
  %201 = vmatpush.xpose.msra.mxu0 0.0
  %202 = vmatpush.xpose.msra.mxu0 0.0
  %203 = vmatpush.xpose.msra.mxu0 0.0
  %204 = vmatpush.xpose.msra.mxu0 0.0
  %205 = vmatpush.xpose.msra.mxu0 0.0
  %206 = vmatpush.xpose.msra.mxu0 0.0
  %207 = vmatpush.xpose.msra.mxu0 0.0
  %208 = vmatpush.xpose.msra.mxu0 0.0
  %209 = vmatpush.xpose.msra.mxu0 0.0
  %210 = vmatpush.xpose.msra.mxu0 0.0
  %211 = vmatpush.xpose.msra.mxu0 %v194
  %212 = vmatmul.f32.gmra.mxu0 %v192
  %v213 = vpop.f32.mrf.mxu0
  %v214 = vadd.f32 0.0, %v213
  %215 = vdwg.mxu0
  %v216 = vsel %vm127, %v214, -inf
  %217 = vmax.xlane.f32.xlu0 %v216
  %v218 = vpop.xlane.xlu0 %217
  %v219 = vsub.f32 %v214, %v218
  %v220 = vmul.f32 %v219, 1.442695
  %v221 = vpow.pop %v220
  %v222 = vsel %vm127, %v221, 0.0
  %223 = vadd.xlane.f32.xlu0 %v222
  %v224 = vpop.xlane.xlu0 %223
  %v225 = vrcp.pop %v224
  %v226 = vmul.f32 %v221, %v225
  %228 = vrot.lane.b32.xlu0 %v125, 120
  %v229 = vpop.permute.xlu0 %228
  %v232 = vsel %vm127, %v226, 0
  %234 = vmatpush.msra.mxu0 0.0
  %235 = vmatpush.msra.mxu0 0.0
  %236 = vmatpush.msra.mxu0 0.0
  %237 = vmatpush.msra.mxu0 0.0
  %238 = vmatpush.msra.mxu0 0.0
  %239 = vmatpush.msra.mxu0 0.0
  %240 = vmatpush.msra.mxu0 0.0
  %241 = vmatpush.msra.mxu0 0.0
  %242 = vmatpush.msra.mxu0 0.0
  %243 = vmatpush.msra.mxu0 0.0
  %244 = vmatpush.msra.mxu0 0.0
  %245 = vmatpush.msra.mxu0 0.0
  %246 = vmatpush.msra.mxu0 0.0
  %247 = vmatpush.msra.mxu0 0.0
  %248 = vmatpush.msra.mxu0 0.0
  %249 = vmatpush.msra.mxu0 %v229
  %250 = vmatmul.f32.gmra.mxu0 %v232
  %v251 = vpop.f32.mrf.mxu0
  %v252 = vadd.f32 0.0, %v251
  %253 = vdwg.mxu0
  %254 = vrot.lane.b32.xlu0 %v72, 112
  %v255 = vpop.permute.xlu0 %254
  %256 = vrot.lane.b32.xlu0 %v98, 112
  %v257 = vpop.permute.xlu0 %256
  %v258 = vsel %vm127, %v255, 0
  %v260 = vsel %vm127, %v257, 0
  %262 = vmatpush.xpose.msra.mxu0 0.0
  %263 = vmatpush.xpose.msra.mxu0 0.0
  %264 = vmatpush.xpose.msra.mxu0 0.0
  %265 = vmatpush.xpose.msra.mxu0 0.0
  %266 = vmatpush.xpose.msra.mxu0 0.0
  %267 = vmatpush.xpose.msra.mxu0 0.0
  %268 = vmatpush.xpose.msra.mxu0 0.0
  %269 = vmatpush.xpose.msra.mxu0 0.0
  %270 = vmatpush.xpose.msra.mxu0 0.0
  %271 = vmatpush.xpose.msra.mxu0 0.0
  %272 = vmatpush.xpose.msra.mxu0 0.0
  %273 = vmatpush.xpose.msra.mxu0 0.0
  %274 = vmatpush.xpose.msra.mxu0 0.0
  %275 = vmatpush.xpose.msra.mxu0 0.0
  %276 = vmatpush.xpose.msra.mxu0 0.0
  %277 = vmatpush.xpose.msra.mxu0 %v260
  %278 = vmatmul.f32.gmra.mxu0 %v258
  %v279 = vpop.f32.mrf.mxu0
  %v280 = vadd.f32 0.0, %v279
  %281 = vdwg.mxu0
  %v282 = vsel %vm127, %v280, -inf
  %283 = vmax.xlane.f32.xlu0 %v282
  %v284 = vpop.xlane.xlu0 %283
  %v285 = vsub.f32 %v280, %v284
  %v286 = vmul.f32 %v285, 1.442695
  %v287 = vpow.pop %v286
  %v288 = vsel %vm127, %v287, 0.0
  %289 = vadd.xlane.f32.xlu0 %v288
  %v290 = vpop.xlane.xlu0 %289
  %v291 = vrcp.pop %v290
  %v292 = vmul.f32 %v287, %v291
  %293 = vrot.lane.b32.xlu0 %v125, 112
  %v294 = vpop.permute.xlu0 %293
  %v297 = vsel %vm127, %v292, 0
  %299 = vmatpush.msra.mxu0 0.0
  %300 = vmatpush.msra.mxu0 0.0
  %301 = vmatpush.msra.mxu0 0.0
  %302 = vmatpush.msra.mxu0 0.0
  %303 = vmatpush.msra.mxu0 0.0
  %304 = vmatpush.msra.mxu0 0.0
  %305 = vmatpush.msra.mxu0 0.0
  %306 = vmatpush.msra.mxu0 0.0
  %307 = vmatpush.msra.mxu0 0.0
  %308 = vmatpush.msra.mxu0 0.0
  %309 = vmatpush.msra.mxu0 0.0
  %310 = vmatpush.msra.mxu0 0.0
  %311 = vmatpush.msra.mxu0 0.0
  %312 = vmatpush.msra.mxu0 0.0
  %313 = vmatpush.msra.mxu0 0.0
  %314 = vmatpush.msra.mxu0 %v294
  %315 = vmatmul.f32.gmra.mxu0 %v297
  %v316 = vpop.f32.mrf.mxu0
  %v317 = vadd.f32 0.0, %v316
  %318 = vdwg.mxu0
  %319 = vrot.lane.b32.xlu0 %v72, 104
  %v320 = vpop.permute.xlu0 %319
  %321 = vrot.lane.b32.xlu0 %v98, 104
  %v322 = vpop.permute.xlu0 %321
  %v323 = vsel %vm127, %v320, 0
  %v325 = vsel %vm127, %v322, 0
  %327 = vmatpush.xpose.msra.mxu0 0.0
  %328 = vmatpush.xpose.msra.mxu0 0.0
  %329 = vmatpush.xpose.msra.mxu0 0.0
  %330 = vmatpush.xpose.msra.mxu0 0.0
  %331 = vmatpush.xpose.msra.mxu0 0.0
  %332 = vmatpush.xpose.msra.mxu0 0.0
  %333 = vmatpush.xpose.msra.mxu0 0.0
  %334 = vmatpush.xpose.msra.mxu0 0.0
  %335 = vmatpush.xpose.msra.mxu0 0.0
  %336 = vmatpush.xpose.msra.mxu0 0.0
  %337 = vmatpush.xpose.msra.mxu0 0.0
  %338 = vmatpush.xpose.msra.mxu0 0.0
  %339 = vmatpush.xpose.msra.mxu0 0.0
  %340 = vmatpush.xpose.msra.mxu0 0.0
  %341 = vmatpush.xpose.msra.mxu0 0.0
  %342 = vmatpush.xpose.msra.mxu0 %v325
  %343 = vmatmul.f32.gmra.mxu0 %v323
  %v344 = vpop.f32.mrf.mxu0
  %v345 = vadd.f32 0.0, %v344
  %346 = vdwg.mxu0
  %v347 = vsel %vm127, %v345, -inf
  %348 = vmax.xlane.f32.xlu0 %v347
  %v349 = vpop.xlane.xlu0 %348
  %v350 = vsub.f32 %v345, %v349
  %v351 = vmul.f32 %v350, 1.442695
  %v352 = vpow.pop %v351
  %v353 = vsel %vm127, %v352, 0.0
  %354 = vadd.xlane.f32.xlu0 %v353
  %v355 = vpop.xlane.xlu0 %354
  %v356 = vrcp.pop %v355
  %v357 = vmul.f32 %v352, %v356
  %358 = vrot.lane.b32.xlu0 %v125, 104
  %v359 = vpop.permute.xlu0 %358
  %v362 = vsel %vm127, %v357, 0
  %364 = vmatpush.msra.mxu0 0.0
  %365 = vmatpush.msra.mxu0 0.0
  %366 = vmatpush.msra.mxu0 0.0
  %367 = vmatpush.msra.mxu0 0.0
  %368 = vmatpush.msra.mxu0 0.0
  %369 = vmatpush.msra.mxu0 0.0
  %370 = vmatpush.msra.mxu0 0.0
  %371 = vmatpush.msra.mxu0 0.0
  %372 = vmatpush.msra.mxu0 0.0
  %373 = vmatpush.msra.mxu0 0.0
  %374 = vmatpush.msra.mxu0 0.0
  %375 = vmatpush.msra.mxu0 0.0
  %376 = vmatpush.msra.mxu0 0.0
  %377 = vmatpush.msra.mxu0 0.0
  %378 = vmatpush.msra.mxu0 0.0
  %379 = vmatpush.msra.mxu0 %v359
  %380 = vmatmul.f32.gmra.mxu0 %v362
  %v381 = vpop.f32.mrf.mxu0
  %v382 = vadd.f32 0.0, %v381
  %383 = vdwg.mxu0
  %385 = vrot.lane.b32.xlu0 %v252, 8
  %v386 = vpop.permute.xlu0 %385
  %389 = vrot.lane.b32.xlu0 %v317, 16
  %v390 = vpop.permute.xlu0 %389
  %393 = vrot.lane.b32.xlu0 %v382, 24
  %v394 = vpop.permute.xlu0 %393
  %v396 = vsel %vm127, %v186, %v386
  %vm397 = vcmask 130048
  %v398 = vsel %vm397, %v396, %v390
  %vm399 = vcmask 195584
  %v400 = vsel %vm399, %v398, %v394
  %v401 = vld [vmem:[%s8] sm:$0xff]
  %v402 = vld [vmem:[%s8 + $0x8] sm:$0xff]
  %v403 = vld [vmem:[%s8 + $0x10] sm:$0xff]
  %v404 = vld [vmem:[%s8 + $0x18] sm:$0xff]
  %v406 = vsel %vm48, %v400, 0
  %408 = vmatpush.msra.mxu0 0.0
  %409 = vmatpush.msra.mxu0 0.0
  %410 = vmatpush.msra.mxu0 0.0
  %411 = vmatpush.msra.mxu0 0.0
  %412 = vmatpush.msra.mxu0 0.0
  %413 = vmatpush.msra.mxu0 0.0
  %414 = vmatpush.msra.mxu0 0.0
  %415 = vmatpush.msra.mxu0 0.0
  %416 = vmatpush.msra.mxu0 0.0
  %417 = vmatpush.msra.mxu0 0.0
  %418 = vmatpush.msra.mxu0 0.0
  %419 = vmatpush.msra.mxu0 0.0
  %420 = vmatpush.msra.mxu0 %v404
  %421 = vmatpush.msra.mxu0 %v403
  %422 = vmatpush.msra.mxu0 %v402
  %423 = vmatpush.msra.mxu0 %v401
  %424 = vmatmul.f32.gmra.mxu0 %v406
  %v425 = vpop.f32.mrf.mxu0
  %v426 = vadd.f32 0.0, %v425
  %427 = vdwg.mxu0
  %v428 = vld [vmem:[%s4] sm:$0xff]
  %v429 = vld [vmem:[%s4 + $0x8] sm:$0xff]
  %v430 = vadd.f32 %v426, %v428
  %v431 = vadd.f32 %v426, %v429
  %v432 = vsel %vm48, %v430, 0.0
  %433 = vadd.xlane.f32.xlu0 %v432
  %v434 = vpop.xlane.xlu0 %433
  %v435 = vsel %vm48, %v431, 0.0
  %436 = vadd.xlane.f32.xlu0 %v435
  %v437 = vpop.xlane.xlu0 %436
  %v438 = vrcp.pop 32.0
  %v439 = vmul.f32 32.0, %v438
  %v440 = vsub.f32 1.0, %v439
  %v441 = vmul.f32 %v438, %v440
  %v442 = vadd.f32 %v438, %v441
  %vm443 = vweird.f32 %v438
  %v444 = vsel %vm443, %v438, %v442
  %v445 = vmul.f32 %v434, %v444
  %v446 = vmul.f32 %v437, %v444
  %v447 = vsub.f32 %v430, %v445
  %v448 = vsub.f32 %v431, %v446
  %v449 = vmul.f32 %v447, %v447
  %v450 = vmul.f32 %v448, %v448
  %v451 = vsel %vm48, %v449, 0.0
  %452 = vadd.xlane.f32.xlu0 %v451
  %v453 = vpop.xlane.xlu0 %452
  %v454 = vsel %vm48, %v450, 0.0
  %455 = vadd.xlane.f32.xlu0 %v454
  %v456 = vpop.xlane.xlu0 %455
  %v457 = vmul.f32 %v453, %v444
  %v458 = vmul.f32 %v456, %v444
  %v459 = vadd.f32 %v457, 1e-05
  %v460 = vadd.f32 %v458, 1e-05
  %v461 = vrsqrt.pop %v459
  %v462 = vmul.f32 %v461, %v459
  %v463 = vmul.f32 %v462, %v461
  %v464 = vmul.f32 0.5, %v463
  %v465 = vsub.f32 1.5, %v464
  %v466 = vmul.f32 %v461, %v465
  %vm467 = vweird.f32 %v459
  %vm468 = vweird.f32 %v461
  %vm469 = vmor %vm467, %vm468
  %v470 = vsel %vm469, %v461, %v466
  %v471 = vrsqrt.pop %v460
  %v472 = vmul.f32 %v471, %v460
  %v473 = vmul.f32 %v472, %v471
  %v474 = vmul.f32 0.5, %v473
  %v475 = vsub.f32 1.5, %v474
  %v476 = vmul.f32 %v471, %v475
  %vm477 = vweird.f32 %v460
  %vm478 = vweird.f32 %v471
  %vm479 = vmor %vm477, %vm478
  %v480 = vsel %vm479, %v471, %v476
  %v481 = vmul.f32 %v447, %v470
  %v482 = vmul.f32 %v448, %v480
  %v483 = vld [vmem:[%s9] sm:$0x1]
  %v485 = vperm.slane %v483, 0
  %v487 = vmul.f32 %v481, %v485
  %v488 = vmul.f32 %v482, %v485
  %v489 = vld [vmem:[%s10] sm:$0x1]
  %v491 = vperm.slane %v489, 0
  %v493 = vadd.f32 %v487, %v491
  %v494 = vadd.f32 %v488, %v491
  %495 = vst.msk [vmem:[%s11] sm:$0xff] %vm48, %v493
  %496 = vst.msk [vmem:[%s11 + $0x8] sm:$0xff] %vm48, %v494
  // Predicated region
  $region46: #{transformer_forward.14} parent=0 // pred_check
    _
  $region47: #{transformer_forward.14} parent=0 // pred_check_branch
    %498 = sbr.rel (0) target = $region49
  $region48: #{transformer_forward.14} parent=0 // pred_region
    _
  $region49: #{transformer_forward.14} parent=0 // pred_fallthru
    _
  // Predicated region
  $region50: #{transformer_forward.14} parent=0 // pred_check
    _
  $region51: #{transformer_forward.14} parent=0 // pred_check_branch
    %500 = sbr.rel (0) target = $region53
  $region52: #{transformer_forward.14} parent=0 // pred_region
    _
  $region53: #{transformer_forward.14} parent=0 // pred_fallthru
    _

// kernel: transformer_forward.10
$region0: #{transformer_forward.10}
  #allocation0 [shape = 'u32[]', space=smem, size = 0x4, offset = 0x4, fixed_abs, tag = 'smem constant byte address 0x4 - core index']
  #allocation1 [shape = 'u32[72,128]{1,0:T(1,128)}', space=vmem, size = 0x9000, scoped, tag = 'internal scratch']
  %s0 = inlined_call_operand.vmem [shape: f32[16,32], index: 0, kind: input, shape index: {}, may-alias: {0,2}]
  %s1 = inlined_call_operand.vmem [shape: f32[16,32], index: 1, kind: input, shape index: {}, may-alias: {1,3}]
  %s2 = inlined_call_operand.vmem [shape: f32[16,32], index: 2, kind: input, shape index: {}, may-alias: {0,2}]
  %s3 = inlined_call_operand.vmem [shape: f32[16,32], index: 3, kind: input, shape index: {}, may-alias: {1,3}]
  %s4 = inlined_call_operand.vmem [shape: f32[2,16,32], index: 4, kind: input, shape index: {}]
  %s5 = inlined_call_operand.vmem [shape: f32[32,32], index: 5, kind: input, shape index: {}]
  %s6 = inlined_call_operand.vmem [shape: f32[32,32], index: 6, kind: input, shape index: {}]
  %s7 = inlined_call_operand.vmem [shape: f32[32,32], index: 7, kind: input, shape index: {}]
  %s8 = inlined_call_operand.vmem [shape: f32[32,32], index: 8, kind: input, shape index: {}]
  %s9 = inlined_call_operand.vmem [shape: f32[1,32], index: 9, kind: input, shape index: {}]
  %s10 = inlined_call_operand.vmem [shape: f32[1,32], index: 10, kind: input, shape index: {}]
  %s11 = inlined_call_operand.vmem [shape: f32[2,16,32], index: 11, kind: output, shape index: {}]
  %s12 = sld [smem:[#allocation0]]
  $region54: #{transformer_forward.10} parent=0
    _
  %s14 = ssub.s32 1, %s12
  %s15 = scalar_select 0, %s14, %s12
  // Predicated region
  $region2: #{transformer_forward.10} parent=0 // pred_check
    _
  $region3: #{transformer_forward.10} parent=0 // pred_check_branch
    %17 = sbr.rel (0) target = $region5
  $region4: #{transformer_forward.10} parent=0 // pred_region
    _
  $region5: #{transformer_forward.10} parent=0 // pred_fallthru
    _
  // Predicated region
  $region6: #{transformer_forward.10} parent=0 // pred_check
    _
  $region7: #{transformer_forward.10} parent=0 // pred_check_branch
    %19 = sbr.rel (0) target = $region9
  $region8: #{transformer_forward.10} parent=0 // pred_region
    _
  $region9: #{transformer_forward.10} parent=0 // pred_fallthru
    _
  // Predicated region
  $region10: #{transformer_forward.10} parent=0 // pred_check
    _
  $region11: #{transformer_forward.10} parent=0 // pred_check_branch
    %21 = sbr.rel (0) target = $region13
  $region12: #{transformer_forward.10} parent=0 // pred_region
    _
  $region13: #{transformer_forward.10} parent=0 // pred_fallthru
    _
  // Predicated region
  $region14: #{transformer_forward.10} parent=0 // pred_check
    _
  $region15: #{transformer_forward.10} parent=0 // pred_check_branch
    %23 = sbr.rel (0) target = $region17
  $region16: #{transformer_forward.10} parent=0 // pred_region
    _
  $region17: #{transformer_forward.10} parent=0 // pred_fallthru
    _
  // Predicated region
  $region18: #{transformer_forward.10} parent=0 // pred_check
    _
  $region19: #{transformer_forward.10} parent=0 // pred_check_branch
    %25 = sbr.rel (0) target = $region21
  $region20: #{transformer_forward.10} parent=0 // pred_region
    _
  $region21: #{transformer_forward.10} parent=0 // pred_fallthru
    _
  // Predicated region
  $region22: #{transformer_forward.10} parent=0 // pred_check
    _
  $region23: #{transformer_forward.10} parent=0 // pred_check_branch
    %27 = sbr.rel (0) target = $region25
  $region24: #{transformer_forward.10} parent=0 // pred_region
    _
  $region25: #{transformer_forward.10} parent=0 // pred_fallthru
    _
  // Predicated region
  $region26: #{transformer_forward.10} parent=0 // pred_check
    _
  $region27: #{transformer_forward.10} parent=0 // pred_check_branch
    %29 = sbr.rel (0) target = $region29
  $region28: #{transformer_forward.10} parent=0 // pred_region
    _
  $region29: #{transformer_forward.10} parent=0 // pred_fallthru
    _
  // Predicated region
  $region30: #{transformer_forward.10} parent=0 // pred_check
    _
  $region31: #{transformer_forward.10} parent=0 // pred_check_branch
    %31 = sbr.rel (0) target = $region33
  $region32: #{transformer_forward.10} parent=0 // pred_region
    _
  $region33: #{transformer_forward.10} parent=0 // pred_fallthru
    _
  // Predicated region
  $region34: #{transformer_forward.10} parent=0 // pred_check
    _
  $region35: #{transformer_forward.10} parent=0 // pred_check_branch
    %33 = sbr.rel (0) target = $region37
  $region36: #{transformer_forward.10} parent=0 // pred_region
    _
  $region37: #{transformer_forward.10} parent=0 // pred_fallthru
    _
  // Predicated region
  $region38: #{transformer_forward.10} parent=0 // pred_check
    _
  $region39: #{transformer_forward.10} parent=0 // pred_check_branch
    %35 = sbr.rel (0) target = $region41
  $region40: #{transformer_forward.10} parent=0 // pred_region
    _
  $region41: #{transformer_forward.10} parent=0 // pred_fallthru
    _
  // Predicated region
  $region42: #{transformer_forward.10} parent=0 // pred_check
    _
  $region43: #{transformer_forward.10} parent=0 // pred_check_branch
    %37 = sbr.rel (0) target = $region45
  $region44: #{transformer_forward.10} parent=0 // pred_region
    _
  $region45: #{transformer_forward.10} parent=0 // pred_fallthru
    _
  %v38 = vld [vmem:[%s0] sm:$0xff]
  %v39 = vld [vmem:[%s0 + $0x8] sm:$0xff]
  %v40 = vld [vmem:[%s1] sm:$0xff]
  %v41 = vld [vmem:[%s1 + $0x8] sm:$0xff]
  %v42 = vadd.f32 %v38, %v40
  %v43 = vadd.f32 %v39, %v41
  %v44 = vld [vmem:[%s2] sm:$0xff]
  %v45 = vld [vmem:[%s2 + $0x8] sm:$0xff]
  %v46 = vld [vmem:[%s3] sm:$0xff]
  %v47 = vld [vmem:[%s3 + $0x8] sm:$0xff]
  %v48 = vadd.f32 %v44, %v46
  %v49 = vadd.f32 %v45, %v47
  %v50 = vld [vmem:[%s5] sm:$0xff]
  %v51 = vld [vmem:[%s5 + $0x8] sm:$0xff]
  %v52 = vld [vmem:[%s5 + $0x10] sm:$0xff]
  %v53 = vld [vmem:[%s5 + $0x18] sm:$0xff]
  %vm54 = vcmask 261120
  %v56 = vsel %vm54, %v42, 0
  %v59 = vsel %vm54, %v43, 0
  %61 = vmatpush.msra.mxu0 0.0
  %62 = vmatpush.msra.mxu0 0.0
  %63 = vmatpush.msra.mxu0 0.0
  %64 = vmatpush.msra.mxu0 0.0
  %65 = vmatpush.msra.mxu0 0.0
  %66 = vmatpush.msra.mxu0 0.0
  %67 = vmatpush.msra.mxu0 0.0
  %68 = vmatpush.msra.mxu0 0.0
  %69 = vmatpush.msra.mxu0 0.0
  %70 = vmatpush.msra.mxu0 0.0
  %71 = vmatpush.msra.mxu0 0.0
  %72 = vmatpush.msra.mxu0 0.0
  %73 = vmatpush.msra.mxu0 %v53
  %74 = vmatpush.msra.mxu0 %v52
  %75 = vmatpush.msra.mxu0 %v51
  %76 = vmatpush.msra.mxu0 %v50
  %77 = vmatmul.f32.gmra.mxu0 %v56
  %v78 = vpop.f32.mrf.mxu0
  %v79 = vadd.f32 0.0, %v78
  %80 = vmatmul.f32.gmra.mxu0 %v59
  %v81 = vpop.f32.mrf.mxu0
  %v82 = vadd.f32 0.0, %v81
  %83 = vdwg.mxu0
  %v84 = vmul.f32 %v79, 0.35355338
  %v85 = vmul.f32 %v82, 0.35355338
  %v86 = vld [vmem:[%s6] sm:$0xff]
  %v87 = vld [vmem:[%s6 + $0x8] sm:$0xff]
  %v88 = vld [vmem:[%s6 + $0x10] sm:$0xff]
  %v89 = vld [vmem:[%s6 + $0x18] sm:$0xff]
  %v91 = vsel %vm54, %v48, 0
  %v94 = vsel %vm54, %v49, 0
  %96 = vmatpush.msra.mxu0 0.0
  %97 = vmatpush.msra.mxu0 0.0
  %98 = vmatpush.msra.mxu0 0.0
  %99 = vmatpush.msra.mxu0 0.0
  %100 = vmatpush.msra.mxu0 0.0
  %101 = vmatpush.msra.mxu0 0.0
  %102 = vmatpush.msra.mxu0 0.0
  %103 = vmatpush.msra.mxu0 0.0
  %104 = vmatpush.msra.mxu0 0.0
  %105 = vmatpush.msra.mxu0 0.0
  %106 = vmatpush.msra.mxu0 0.0
  %107 = vmatpush.msra.mxu0 0.0
  %108 = vmatpush.msra.mxu0 %v89
  %109 = vmatpush.msra.mxu0 %v88
  %110 = vmatpush.msra.mxu0 %v87
  %111 = vmatpush.msra.mxu0 %v86
  %112 = vmatmul.f32.gmra.mxu0 %v91
  %v113 = vpop.f32.mrf.mxu0
  %v114 = vadd.f32 0.0, %v113
  %115 = vmatmul.f32.gmra.mxu0 %v94
  %v116 = vpop.f32.mrf.mxu0
  %v117 = vadd.f32 0.0, %v116
  %118 = vdwg.mxu0
  %v119 = vld [vmem:[%s7] sm:$0xff]
  %v120 = vld [vmem:[%s7 + $0x8] sm:$0xff]
  %v121 = vld [vmem:[%s7 + $0x10] sm:$0xff]
  %v122 = vld [vmem:[%s7 + $0x18] sm:$0xff]
  %v124 = vsel %vm54, %v44, 0
  %v127 = vsel %vm54, %v45, 0
  %129 = vmatpush.msra.mxu0 0.0
  %130 = vmatpush.msra.mxu0 0.0
  %131 = vmatpush.msra.mxu0 0.0
  %132 = vmatpush.msra.mxu0 0.0
  %133 = vmatpush.msra.mxu0 0.0
  %134 = vmatpush.msra.mxu0 0.0
  %135 = vmatpush.msra.mxu0 0.0
  %136 = vmatpush.msra.mxu0 0.0
  %137 = vmatpush.msra.mxu0 0.0
  %138 = vmatpush.msra.mxu0 0.0
  %139 = vmatpush.msra.mxu0 0.0
  %140 = vmatpush.msra.mxu0 0.0
  %141 = vmatpush.msra.mxu0 %v122
  %142 = vmatpush.msra.mxu0 %v121
  %143 = vmatpush.msra.mxu0 %v120
  %144 = vmatpush.msra.mxu0 %v119
  %145 = vmatmul.f32.gmra.mxu0 %v124
  %v146 = vpop.f32.mrf.mxu0
  %v147 = vadd.f32 0.0, %v146
  %148 = vmatmul.f32.gmra.mxu0 %v127
  %v149 = vpop.f32.mrf.mxu0
  %v150 = vadd.f32 0.0, %v149
  %151 = vdwg.mxu0
  %vm152 = vcmask 64512
  %v154 = vsel %vm152, %v84, 0
  %v157 = vsel %vm152, %v85, 0
  %v160 = vsel %vm152, %v114, 0
  %v163 = vsel %vm152, %v117, 0
  %165 = vmatpush.xpose.msra.mxu0 0.0
  %166 = vmatpush.xpose.msra.mxu0 0.0
  %167 = vmatpush.xpose.msra.mxu0 0.0
  %168 = vmatpush.xpose.msra.mxu0 0.0
  %169 = vmatpush.xpose.msra.mxu0 0.0
  %170 = vmatpush.xpose.msra.mxu0 0.0
  %171 = vmatpush.xpose.msra.mxu0 0.0
  %172 = vmatpush.xpose.msra.mxu0 0.0
  %173 = vmatpush.xpose.msra.mxu0 0.0
  %174 = vmatpush.xpose.msra.mxu0 0.0
  %175 = vmatpush.xpose.msra.mxu0 0.0
  %176 = vmatpush.xpose.msra.mxu0 0.0
  %177 = vmatpush.xpose.msra.mxu0 0.0
  %178 = vmatpush.xpose.msra.mxu0 0.0
  %179 = vmatpush.xpose.msra.mxu0 %v163
  %180 = vmatpush.xpose.msra.mxu0 %v160
  %181 = vmatmul.f32.gmra.mxu0 %v154
  %v182 = vpop.f32.mrf.mxu0
  %v183 = vadd.f32 0.0, %v182
  %184 = vmatmul.f32.gmra.mxu0 %v157
  %v185 = vpop.f32.mrf.mxu0
  %v186 = vadd.f32 0.0, %v185
  %187 = vdwg.mxu0
  %vm188 = vcmask 130048
  %v189 = vsel %vm188, %v183, -inf
  %190 = vmax.xlane.f32.xlu0 %v189
  %v191 = vpop.xlane.xlu0 %190
  %v192 = vsel %vm188, %v186, -inf
  %193 = vmax.xlane.f32.xlu0 %v192
  %v194 = vpop.xlane.xlu0 %193
  %v195 = vsub.f32 %v183, %v191
  %v196 = vsub.f32 %v186, %v194
  %v197 = vmul.f32 %v195, 1.442695
  %v198 = vpow.pop %v197
  %v199 = vmul.f32 %v196, 1.442695
  %v200 = vpow.pop %v199
  %v201 = vsel %vm188, %v198, 0.0
  %202 = vadd.xlane.f32.xlu0 %v201
  %v203 = vpop.xlane.xlu0 %202
  %v204 = vsel %vm188, %v200, 0.0
  %205 = vadd.xlane.f32.xlu0 %v204
  %v206 = vpop.xlane.xlu0 %205
  %v207 = vrcp.pop %v203
  %v208 = vrcp.pop %v206
  %v209 = vmul.f32 %v198, %v207
  %v210 = vmul.f32 %v200, %v208
  %v212 = vsel %vm188, %v209, 0
  %v215 = vsel %vm188, %v210, 0
  %217 = vmatpush.msra.mxu0 0.0
  %218 = vmatpush.msra.mxu0 0.0
  %219 = vmatpush.msra.mxu0 0.0
  %220 = vmatpush.msra.mxu0 0.0
  %221 = vmatpush.msra.mxu0 0.0
  %222 = vmatpush.msra.mxu0 0.0
  %223 = vmatpush.msra.mxu0 0.0
  %224 = vmatpush.msra.mxu0 0.0
  %225 = vmatpush.msra.mxu0 0.0
  %226 = vmatpush.msra.mxu0 0.0
  %227 = vmatpush.msra.mxu0 0.0
  %228 = vmatpush.msra.mxu0 0.0
  %229 = vmatpush.msra.mxu0 0.0
  %230 = vmatpush.msra.mxu0 0.0
  %231 = vmatpush.msra.mxu0 %v150
  %232 = vmatpush.msra.mxu0 %v147
  %233 = vmatmul.f32.gmra.mxu0 %v212
  %v234 = vpop.f32.mrf.mxu0
  %v235 = vadd.f32 0.0, %v234
  %236 = vmatmul.f32.gmra.mxu0 %v215
  %v237 = vpop.f32.mrf.mxu0
  %v238 = vadd.f32 0.0, %v237
  %239 = vdwg.mxu0
  %240 = vrot.lane.b32.xlu0 %v84, 120
  %v241 = vpop.permute.xlu0 %240
  %242 = vrot.lane.b32.xlu0 %v85, 120
  %v243 = vpop.permute.xlu0 %242
  %244 = vrot.lane.b32.xlu0 %v114, 120
  %v245 = vpop.permute.xlu0 %244
  %246 = vrot.lane.b32.xlu0 %v117, 120
  %v247 = vpop.permute.xlu0 %246
  %v248 = vsel %vm152, %v241, 0
  %v250 = vsel %vm152, %v243, 0
  %v252 = vsel %vm152, %v245, 0
  %v254 = vsel %vm152, %v247, 0
  %256 = vmatpush.xpose.msra.mxu0 0.0
  %257 = vmatpush.xpose.msra.mxu0 0.0
  %258 = vmatpush.xpose.msra.mxu0 0.0
  %259 = vmatpush.xpose.msra.mxu0 0.0
  %260 = vmatpush.xpose.msra.mxu0 0.0
  %261 = vmatpush.xpose.msra.mxu0 0.0
  %262 = vmatpush.xpose.msra.mxu0 0.0
  %263 = vmatpush.xpose.msra.mxu0 0.0
  %264 = vmatpush.xpose.msra.mxu0 0.0
  %265 = vmatpush.xpose.msra.mxu0 0.0
  %266 = vmatpush.xpose.msra.mxu0 0.0
  %267 = vmatpush.xpose.msra.mxu0 0.0
  %268 = vmatpush.xpose.msra.mxu0 0.0
  %269 = vmatpush.xpose.msra.mxu0 0.0
  %270 = vmatpush.xpose.msra.mxu0 %v254
  %271 = vmatpush.xpose.msra.mxu0 %v252
  %272 = vmatmul.f32.gmra.mxu0 %v248
  %v273 = vpop.f32.mrf.mxu0
  %v274 = vadd.f32 0.0, %v273
  %275 = vmatmul.f32.gmra.mxu0 %v250
  %v276 = vpop.f32.mrf.mxu0
  %v277 = vadd.f32 0.0, %v276
  %278 = vdwg.mxu0
  %v279 = vsel %vm188, %v274, -inf
  %280 = vmax.xlane.f32.xlu0 %v279
  %v281 = vpop.xlane.xlu0 %280
  %v282 = vsel %vm188, %v277, -inf
  %283 = vmax.xlane.f32.xlu0 %v282
  %v284 = vpop.xlane.xlu0 %283
  %v285 = vsub.f32 %v274, %v281
  %v286 = vsub.f32 %v277, %v284
  %v287 = vmul.f32 %v285, 1.442695
  %v288 = vpow.pop %v287
  %v289 = vmul.f32 %v286, 1.442695
  %v290 = vpow.pop %v289
  %v291 = vsel %vm188, %v288, 0.0
  %292 = vadd.xlane.f32.xlu0 %v291
  %v293 = vpop.xlane.xlu0 %292
  %v294 = vsel %vm188, %v290, 0.0
  %295 = vadd.xlane.f32.xlu0 %v294
  %v296 = vpop.xlane.xlu0 %295
  %v297 = vrcp.pop %v293
  %v298 = vrcp.pop %v296
  %v299 = vmul.f32 %v288, %v297
  %v300 = vmul.f32 %v290, %v298
  %303 = vrot.lane.b32.xlu0 %v147, 120
  %v304 = vpop.permute.xlu0 %303
  %305 = vrot.lane.b32.xlu0 %v150, 120
  %v306 = vpop.permute.xlu0 %305
  %v310 = vsel %vm188, %v299, 0
  %v313 = vsel %vm188, %v300, 0
  %315 = vmatpush.msra.mxu0 0.0
  %316 = vmatpush.msra.mxu0 0.0
  %317 = vmatpush.msra.mxu0 0.0
  %318 = vmatpush.msra.mxu0 0.0
  %319 = vmatpush.msra.mxu0 0.0
  %320 = vmatpush.msra.mxu0 0.0
  %321 = vmatpush.msra.mxu0 0.0
  %322 = vmatpush.msra.mxu0 0.0
  %323 = vmatpush.msra.mxu0 0.0
  %324 = vmatpush.msra.mxu0 0.0
  %325 = vmatpush.msra.mxu0 0.0
  %326 = vmatpush.msra.mxu0 0.0
  %327 = vmatpush.msra.mxu0 0.0
  %328 = vmatpush.msra.mxu0 0.0
  %329 = vmatpush.msra.mxu0 %v306
  %330 = vmatpush.msra.mxu0 %v304
  %331 = vmatmul.f32.gmra.mxu0 %v310
  %v332 = vpop.f32.mrf.mxu0
  %v333 = vadd.f32 0.0, %v332
  %334 = vmatmul.f32.gmra.mxu0 %v313
  %v335 = vpop.f32.mrf.mxu0
  %v336 = vadd.f32 0.0, %v335
  %337 = vdwg.mxu0
  %338 = vrot.lane.b32.xlu0 %v84, 112
  %v339 = vpop.permute.xlu0 %338
  %340 = vrot.lane.b32.xlu0 %v85, 112
  %v341 = vpop.permute.xlu0 %340
  %342 = vrot.lane.b32.xlu0 %v114, 112
  %v343 = vpop.permute.xlu0 %342
  %344 = vrot.lane.b32.xlu0 %v117, 112
  %v345 = vpop.permute.xlu0 %344
  %v346 = vsel %vm152, %v339, 0
  %v348 = vsel %vm152, %v341, 0
  %v350 = vsel %vm152, %v343, 0
  %v352 = vsel %vm152, %v345, 0
  %354 = vmatpush.xpose.msra.mxu0 0.0
  %355 = vmatpush.xpose.msra.mxu0 0.0
  %356 = vmatpush.xpose.msra.mxu0 0.0
  %357 = vmatpush.xpose.msra.mxu0 0.0
  %358 = vmatpush.xpose.msra.mxu0 0.0
  %359 = vmatpush.xpose.msra.mxu0 0.0
  %360 = vmatpush.xpose.msra.mxu0 0.0
  %361 = vmatpush.xpose.msra.mxu0 0.0
  %362 = vmatpush.xpose.msra.mxu0 0.0
  %363 = vmatpush.xpose.msra.mxu0 0.0
  %364 = vmatpush.xpose.msra.mxu0 0.0
  %365 = vmatpush.xpose.msra.mxu0 0.0
  %366 = vmatpush.xpose.msra.mxu0 0.0
  %367 = vmatpush.xpose.msra.mxu0 0.0
  %368 = vmatpush.xpose.msra.mxu0 %v352
  %369 = vmatpush.xpose.msra.mxu0 %v350
  %370 = vmatmul.f32.gmra.mxu0 %v346
  %v371 = vpop.f32.mrf.mxu0
  %v372 = vadd.f32 0.0, %v371
  %373 = vmatmul.f32.gmra.mxu0 %v348
  %v374 = vpop.f32.mrf.mxu0
  %v375 = vadd.f32 0.0, %v374
  %376 = vdwg.mxu0
  %v377 = vsel %vm188, %v372, -inf
  %378 = vmax.xlane.f32.xlu0 %v377
  %v379 = vpop.xlane.xlu0 %378
  %v380 = vsel %vm188, %v375, -inf
  %381 = vmax.xlane.f32.xlu0 %v380
  %v382 = vpop.xlane.xlu0 %381
  %v383 = vsub.f32 %v372, %v379
  %v384 = vsub.f32 %v375, %v382
  %v385 = vmul.f32 %v383, 1.442695
  %v386 = vpow.pop %v385
  %v387 = vmul.f32 %v384, 1.442695
  %v388 = vpow.pop %v387
  %v389 = vsel %vm188, %v386, 0.0
  %390 = vadd.xlane.f32.xlu0 %v389
  %v391 = vpop.xlane.xlu0 %390
  %v392 = vsel %vm188, %v388, 0.0
  %393 = vadd.xlane.f32.xlu0 %v392
  %v394 = vpop.xlane.xlu0 %393
  %v395 = vrcp.pop %v391
  %v396 = vrcp.pop %v394
  %v397 = vmul.f32 %v386, %v395
  %v398 = vmul.f32 %v388, %v396
  %399 = vrot.lane.b32.xlu0 %v147, 112
  %v400 = vpop.permute.xlu0 %399
  %401 = vrot.lane.b32.xlu0 %v150, 112
  %v402 = vpop.permute.xlu0 %401
  %v406 = vsel %vm188, %v397, 0
  %v409 = vsel %vm188, %v398, 0
  %411 = vmatpush.msra.mxu0 0.0
  %412 = vmatpush.msra.mxu0 0.0
  %413 = vmatpush.msra.mxu0 0.0
  %414 = vmatpush.msra.mxu0 0.0
  %415 = vmatpush.msra.mxu0 0.0
  %416 = vmatpush.msra.mxu0 0.0
  %417 = vmatpush.msra.mxu0 0.0
  %418 = vmatpush.msra.mxu0 0.0
  %419 = vmatpush.msra.mxu0 0.0
  %420 = vmatpush.msra.mxu0 0.0
  %421 = vmatpush.msra.mxu0 0.0
  %422 = vmatpush.msra.mxu0 0.0
  %423 = vmatpush.msra.mxu0 0.0
  %424 = vmatpush.msra.mxu0 0.0
  %425 = vmatpush.msra.mxu0 %v402
  %426 = vmatpush.msra.mxu0 %v400
  %427 = vmatmul.f32.gmra.mxu0 %v406
  %v428 = vpop.f32.mrf.mxu0
  %v429 = vadd.f32 0.0, %v428
  %430 = vmatmul.f32.gmra.mxu0 %v409
  %v431 = vpop.f32.mrf.mxu0
  %v432 = vadd.f32 0.0, %v431
  %433 = vdwg.mxu0
  %434 = vrot.lane.b32.xlu0 %v84, 104
  %v435 = vpop.permute.xlu0 %434
  %436 = vrot.lane.b32.xlu0 %v85, 104
  %v437 = vpop.permute.xlu0 %436
  %438 = vrot.lane.b32.xlu0 %v114, 104
  %v439 = vpop.permute.xlu0 %438
  %440 = vrot.lane.b32.xlu0 %v117, 104
  %v441 = vpop.permute.xlu0 %440
  %v442 = vsel %vm152, %v435, 0
  %v444 = vsel %vm152, %v437, 0
  %v446 = vsel %vm152, %v439, 0
  %v448 = vsel %vm152, %v441, 0
  %450 = vmatpush.xpose.msra.mxu0 0.0
  %451 = vmatpush.xpose.msra.mxu0 0.0
  %452 = vmatpush.xpose.msra.mxu0 0.0
  %453 = vmatpush.xpose.msra.mxu0 0.0
  %454 = vmatpush.xpose.msra.mxu0 0.0
  %455 = vmatpush.xpose.msra.mxu0 0.0
  %456 = vmatpush.xpose.msra.mxu0 0.0
  %457 = vmatpush.xpose.msra.mxu0 0.0
  %458 = vmatpush.xpose.msra.mxu0 0.0
  %459 = vmatpush.xpose.msra.mxu0 0.0
  %460 = vmatpush.xpose.msra.mxu0 0.0
  %461 = vmatpush.xpose.msra.mxu0 0.0
  %462 = vmatpush.xpose.msra.mxu0 0.0
  %463 = vmatpush.xpose.msra.mxu0 0.0
  %464 = vmatpush.xpose.msra.mxu0 %v448
  %465 = vmatpush.xpose.msra.mxu0 %v446
  %466 = vmatmul.f32.gmra.mxu0 %v442
  %v467 = vpop.f32.mrf.mxu0
  %v468 = vadd.f32 0.0, %v467
  %469 = vmatmul.f32.gmra.mxu0 %v444
  %v470 = vpop.f32.mrf.mxu0
  %v471 = vadd.f32 0.0, %v470
  %472 = vdwg.mxu0
  %v473 = vsel %vm188, %v468, -inf
  %474 = vmax.xlane.f32.xlu0 %v473
  %v475 = vpop.xlane.xlu0 %474
  %v476 = vsel %vm188, %v471, -inf
  %477 = vmax.xlane.f32.xlu0 %v476
  %v478 = vpop.xlane.xlu0 %477
  %v479 = vsub.f32 %v468, %v475
  %v480 = vsub.f32 %v471, %v478
  %v481 = vmul.f32 %v479, 1.442695
  %v482 = vpow.pop %v481
  %v483 = vmul.f32 %v480, 1.442695
  %v484 = vpow.pop %v483
  %v485 = vsel %vm188, %v482, 0.0
  %486 = vadd.xlane.f32.xlu0 %v485
  %v487 = vpop.xlane.xlu0 %486
  %v488 = vsel %vm188, %v484, 0.0
  %489 = vadd.xlane.f32.xlu0 %v488
  %v490 = vpop.xlane.xlu0 %489
  %v491 = vrcp.pop %v487
  %v492 = vrcp.pop %v490
  %v493 = vmul.f32 %v482, %v491
  %v494 = vmul.f32 %v484, %v492
  %495 = vrot.lane.b32.xlu0 %v147, 104
  %v496 = vpop.permute.xlu0 %495
  %497 = vrot.lane.b32.xlu0 %v150, 104
  %v498 = vpop.permute.xlu0 %497
  %v502 = vsel %vm188, %v493, 0
  %v505 = vsel %vm188, %v494, 0
  %507 = vmatpush.msra.mxu0 0.0
  %508 = vmatpush.msra.mxu0 0.0
  %509 = vmatpush.msra.mxu0 0.0
  %510 = vmatpush.msra.mxu0 0.0
  %511 = vmatpush.msra.mxu0 0.0
  %512 = vmatpush.msra.mxu0 0.0
  %513 = vmatpush.msra.mxu0 0.0
  %514 = vmatpush.msra.mxu0 0.0
  %515 = vmatpush.msra.mxu0 0.0
  %516 = vmatpush.msra.mxu0 0.0
  %517 = vmatpush.msra.mxu0 0.0
  %518 = vmatpush.msra.mxu0 0.0
  %519 = vmatpush.msra.mxu0 0.0
  %520 = vmatpush.msra.mxu0 0.0
  %521 = vmatpush.msra.mxu0 %v498
  %522 = vmatpush.msra.mxu0 %v496
  %523 = vmatmul.f32.gmra.mxu0 %v502
  %v524 = vpop.f32.mrf.mxu0
  %v525 = vadd.f32 0.0, %v524
  %526 = vmatmul.f32.gmra.mxu0 %v505
  %v527 = vpop.f32.mrf.mxu0
  %v528 = vadd.f32 0.0, %v527
  %529 = vdwg.mxu0
  %532 = vrot.lane.b32.xlu0 %v333, 8
  %v533 = vpop.permute.xlu0 %532
  %534 = vrot.lane.b32.xlu0 %v336, 8
  %v535 = vpop.permute.xlu0 %534
  %540 = vrot.lane.b32.xlu0 %v429, 16
  %v541 = vpop.permute.xlu0 %540
  %542 = vrot.lane.b32.xlu0 %v432, 16
  %v543 = vpop.permute.xlu0 %542
  %548 = vrot.lane.b32.xlu0 %v525, 24
  %v549 = vpop.permute.xlu0 %548
  %550 = vrot.lane.b32.xlu0 %v528, 24
  %v551 = vpop.permute.xlu0 %550
  %v554 = vsel %vm152, %v235, %v533
  %v555 = vsel %vm152, %v238, %v535
  %v556 = vsel %vm188, %v554, %v541
  %v557 = vsel %vm188, %v555, %v543
  %vm558 = vcmask 195584
  %v559 = vsel %vm558, %v556, %v549
  %v560 = vsel %vm558, %v557, %v551
  %v561 = vld [vmem:[%s8] sm:$0xff]
  %v562 = vld [vmem:[%s8 + $0x8] sm:$0xff]
  %v563 = vld [vmem:[%s8 + $0x10] sm:$0xff]
  %v564 = vld [vmem:[%s8 + $0x18] sm:$0xff]
  %v566 = vsel %vm54, %v559, 0
  %v569 = vsel %vm54, %v560, 0
  %571 = vmatpush.msra.mxu0 0.0
  %572 = vmatpush.msra.mxu0 0.0
  %573 = vmatpush.msra.mxu0 0.0
  %574 = vmatpush.msra.mxu0 0.0
  %575 = vmatpush.msra.mxu0 0.0
  %576 = vmatpush.msra.mxu0 0.0
  %577 = vmatpush.msra.mxu0 0.0
  %578 = vmatpush.msra.mxu0 0.0
  %579 = vmatpush.msra.mxu0 0.0
  %580 = vmatpush.msra.mxu0 0.0
  %581 = vmatpush.msra.mxu0 0.0
  %582 = vmatpush.msra.mxu0 0.0
  %583 = vmatpush.msra.mxu0 %v564
  %584 = vmatpush.msra.mxu0 %v563
  %585 = vmatpush.msra.mxu0 %v562
  %586 = vmatpush.msra.mxu0 %v561
  %587 = vmatmul.f32.gmra.mxu0 %v566
  %v588 = vpop.f32.mrf.mxu0
  %v589 = vadd.f32 0.0, %v588
  %590 = vmatmul.f32.gmra.mxu0 %v569
  %v591 = vpop.f32.mrf.mxu0
  %v592 = vadd.f32 0.0, %v591
  %593 = vdwg.mxu0
  %v594 = vld [vmem:[%s4] sm:$0xff]
  %v595 = vld [vmem:[%s4 + $0x8] sm:$0xff]
  %v596 = vld [vmem:[%s4 + $0x10] sm:$0xff]
  %v597 = vld [vmem:[%s4 + $0x18] sm:$0xff]
  %v598 = vadd.f32 %v589, %v594
  %v599 = vadd.f32 %v592, %v595
  %v600 = vadd.f32 %v589, %v596
  %v601 = vadd.f32 %v592, %v597
  %v602 = vsel %vm54, %v598, 0.0
  %603 = vadd.xlane.f32.xlu0 %v602
  %v604 = vpop.xlane.xlu0 %603
  %v605 = vsel %vm54, %v599, 0.0
  %606 = vadd.xlane.f32.xlu0 %v605
  %v607 = vpop.xlane.xlu0 %606
  %v608 = vsel %vm54, %v600, 0.0
  %609 = vadd.xlane.f32.xlu0 %v608
  %v610 = vpop.xlane.xlu0 %609
  %v611 = vsel %vm54, %v601, 0.0
  %612 = vadd.xlane.f32.xlu0 %v611
  %v613 = vpop.xlane.xlu0 %612
  %v614 = vrcp.pop 32.0
  %v615 = vmul.f32 32.0, %v614
  %v616 = vsub.f32 1.0, %v615
  %v617 = vmul.f32 %v614, %v616
  %v618 = vadd.f32 %v614, %v617
  %vm619 = vweird.f32 %v614
  %v620 = vsel %vm619, %v614, %v618
  %v621 = vmul.f32 %v604, %v620
  %v622 = vmul.f32 %v607, %v620
  %v623 = vmul.f32 %v610, %v620
  %v624 = vmul.f32 %v613, %v620
  %v625 = vsub.f32 %v598, %v621
  %v626 = vsub.f32 %v599, %v622
  %v627 = vsub.f32 %v600, %v623
  %v628 = vsub.f32 %v601, %v624
  %v629 = vmul.f32 %v625, %v625
  %v630 = vmul.f32 %v626, %v626
  %v631 = vmul.f32 %v627, %v627
  %v632 = vmul.f32 %v628, %v628
  %v633 = vsel %vm54, %v629, 0.0
  %634 = vadd.xlane.f32.xlu0 %v633
  %v635 = vpop.xlane.xlu0 %634
  %v636 = vsel %vm54, %v630, 0.0
  %637 = vadd.xlane.f32.xlu0 %v636
  %v638 = vpop.xlane.xlu0 %637
  %v639 = vsel %vm54, %v631, 0.0
  %640 = vadd.xlane.f32.xlu0 %v639
  %v641 = vpop.xlane.xlu0 %640
  %v642 = vsel %vm54, %v632, 0.0
  %643 = vadd.xlane.f32.xlu0 %v642
  %v644 = vpop.xlane.xlu0 %643
  %v645 = vmul.f32 %v635, %v620
  %v646 = vmul.f32 %v638, %v620
  %v647 = vmul.f32 %v641, %v620
  %v648 = vmul.f32 %v644, %v620
  %v649 = vadd.f32 %v645, 1e-05
  %v650 = vadd.f32 %v646, 1e-05
  %v651 = vadd.f32 %v647, 1e-05
  %v652 = vadd.f32 %v648, 1e-05
  %v653 = vrsqrt.pop %v649
  %v654 = vmul.f32 %v653, %v649
  %v655 = vmul.f32 %v654, %v653
  %v656 = vmul.f32 0.5, %v655
  %v657 = vsub.f32 1.5, %v656
  %v658 = vmul.f32 %v653, %v657
  %vm659 = vweird.f32 %v649
  %vm660 = vweird.f32 %v653
  %vm661 = vmor %vm659, %vm660
  %v662 = vsel %vm661, %v653, %v658
  %v663 = vrsqrt.pop %v650
  %v664 = vmul.f32 %v663, %v650
  %v665 = vmul.f32 %v664, %v663
  %v666 = vmul.f32 0.5, %v665
  %v667 = vsub.f32 1.5, %v666
  %v668 = vmul.f32 %v663, %v667
  %vm669 = vweird.f32 %v650
  %vm670 = vweird.f32 %v663
  %vm671 = vmor %vm669, %vm670
  %v672 = vsel %vm671, %v663, %v668
  %v673 = vrsqrt.pop %v651
  %v674 = vmul.f32 %v673, %v651
  %v675 = vmul.f32 %v674, %v673
  %v676 = vmul.f32 0.5, %v675
  %v677 = vsub.f32 1.5, %v676
  %v678 = vmul.f32 %v673, %v677
  %vm679 = vweird.f32 %v651
  %vm680 = vweird.f32 %v673
  %vm681 = vmor %vm679, %vm680
  %v682 = vsel %vm681, %v673, %v678
  %v683 = vrsqrt.pop %v652
  %v684 = vmul.f32 %v683, %v652
  %v685 = vmul.f32 %v684, %v683
  %v686 = vmul.f32 0.5, %v685
  %v687 = vsub.f32 1.5, %v686
  %v688 = vmul.f32 %v683, %v687
  %vm689 = vweird.f32 %v652
  %vm690 = vweird.f32 %v683
  %vm691 = vmor %vm689, %vm690
  %v692 = vsel %vm691, %v683, %v688
  %v693 = vmul.f32 %v625, %v662
  %v694 = vmul.f32 %v626, %v672
  %v695 = vmul.f32 %v627, %v682
  %v696 = vmul.f32 %v628, %v692
  %v697 = vld [vmem:[%s9] sm:$0x1]
  %v699 = vperm.slane %v697, 0
  %v701 = vmul.f32 %v693, %v699
  %v702 = vmul.f32 %v694, %v699
  %v703 = vmul.f32 %v695, %v699
  %v704 = vmul.f32 %v696, %v699
  %v705 = vld [vmem:[%s10] sm:$0x1]
  %v707 = vperm.slane %v705, 0
  %v709 = vadd.f32 %v701, %v707
  %v710 = vadd.f32 %v702, %v707
  %v711 = vadd.f32 %v703, %v707
  %v712 = vadd.f32 %v704, %v707
  %713 = vst.msk [vmem:[%s11] sm:$0xff] %vm54, %v709
  %714 = vst.msk [vmem:[%s11 + $0x8] sm:$0xff] %vm54, %v710
  %715 = vst.msk [vmem:[%s11 + $0x10] sm:$0xff] %vm54, %v711
  %716 = vst.msk [vmem:[%s11 + $0x18] sm:$0xff] %vm54, %v712
  // Predicated region
  $region46: #{transformer_forward.10} parent=0 // pred_check
    _
  $region47: #{transformer_forward.10} parent=0 // pred_check_branch
    %718 = sbr.rel (0) target = $region49
  $region48: #{transformer_forward.10} parent=0 // pred_region
    _
  $region49: #{transformer_forward.10} parent=0 // pred_fallthru
    _
  // Predicated region
  $region50: #{transformer_forward.10} parent=0 // pred_check
    _
  $region51: #{transformer_forward.10} parent=0 // pred_check_branch
    %720 = sbr.rel (0) target = $region53
  $region52: #{transformer_forward.10} parent=0 // pred_region
    _
  $region53: #{transformer_forward.10} parent=0 // pred_fallthru
    _

// kernel: transformer_forward.15
$region0: #{transformer_forward.15}
  #allocation0 [shape = 'u32[]', space=smem, size = 0x4, offset = 0x4, fixed_abs, tag = 'smem constant byte address 0x4 - core index']
  #allocation1 [shape = 'u32[72,128]{1,0:T(1,128)}', space=vmem, size = 0x9000, scoped, tag = 'internal scratch']
  %s0 = inlined_call_operand.vmem [shape: f32[8,32], index: 0, kind: input, shape index: {}]
  %s1 = inlined_call_operand.vmem [shape: f32[8,32], index: 1, kind: input, shape index: {}]
  %s2 = inlined_call_operand.vmem [shape: f32[16,32], index: 2, kind: input, shape index: {}]
  %s3 = inlined_call_operand.vmem [shape: f32[16,32], index: 3, kind: input, shape index: {}]
  %s4 = inlined_call_operand.vmem [shape: f32[2,8,32], index: 4, kind: input, shape index: {}]
  %s5 = inlined_call_operand.hbm [shape: f32[32,32], index: 5, kind: input, shape index: {}]
  %s6 = inlined_call_operand.hbm [shape: f32[32,32], index: 6, kind: input, shape index: {}]
  %s7 = inlined_call_operand.hbm [shape: f32[32,32], index: 7, kind: input, shape index: {}]
  %s8 = inlined_call_operand.hbm [shape: f32[32,32], index: 8, kind: input, shape index: {}]
  %s9 = inlined_call_operand.hbm [shape: f32[1,32], index: 9, kind: input, shape index: {}]
  %s10 = inlined_call_operand.hbm [shape: f32[1,32], index: 10, kind: input, shape index: {}]
  %s11 = inlined_call_operand.vmem [shape: f32[2,8,32], index: 11, kind: output, shape index: {}]
  %s12 = sld [smem:[#allocation0]]
  $region78: #{transformer_forward.15} parent=0
    _
  %s14 = ssub.s32 1, %s12
  %s15 = scalar_select 0, %s14, %s12
  $region1: #{transformer_forward.15} parent=0
    #allocation2 [shape = 'u8[16384]{0}', space=vmem, size = 0x4000, scoped, tag = 'input window, operand 5, single buffered']
    #allocation3 [shape = 's32[1]{0}', space=sflag, size = 0x4, scoped, tag = 'scoped memory for transformer_forward.15']
    #allocation4 [shape = 'u8[16384]{0}', space=vmem, size = 0x4000, scoped, tag = 'input window, operand 6, single buffered']
    #allocation5 [shape = 's32[1]{0}', space=sflag, size = 0x4, scoped, tag = 'scoped memory for transformer_forward.15']
    #allocation6 [shape = 'u8[16384]{0}', space=vmem, size = 0x4000, scoped, tag = 'input window, operand 7, single buffered']
    #allocation7 [shape = 'u8[16384]{0}', space=vmem, size = 0x4000, scoped, tag = 'input window, operand 8, single buffered']
    #allocation8 [shape = 's32[1]{0}', space=sflag, size = 0x4, scoped, tag = 'scoped memory for transformer_forward.15']
    #allocation9 [shape = 'u8[512]{0}', space=vmem, size = 0x400, scoped, tag = 'input window, operand 9, single buffered']
    #allocation10 [shape = 'u8[512]{0}', space=vmem, size = 0x400, scoped, tag = 'input window, operand 10, single buffered']
    #allocation11 [shape = 's32[1]{0}', space=sflag, size = 0x4, scoped, tag = 'scoped memory for transformer_forward.15']
    %16 = vsyncpa [#allocation3], 0
    %17 = vsyncpa [#allocation5], 0
    %18 = vsyncpa [#allocation8], 0
    %19 = vsyncpa [#allocation11], 0
    // Predicated region
    $region2: #{transformer_forward.15} parent=1 // pred_check
      _
    $region3: #{transformer_forward.15} parent=1 // pred_check_branch
      %21 = sbr.rel (0) target = $region5
    $region4: #{transformer_forward.15} parent=1 // pred_region
      _
    $region5: #{transformer_forward.15} parent=1 // pred_fallthru
      _
    // Predicated region
    $region6: #{transformer_forward.15} parent=1 // pred_check
      _
    $region7: #{transformer_forward.15} parent=1 // pred_check_branch
      %23 = sbr.rel (0) target = $region9
    $region8: #{transformer_forward.15} parent=1 // pred_region
      _
    $region9: #{transformer_forward.15} parent=1 // pred_fallthru
      _
    // Predicated region
    $region10: #{transformer_forward.15} parent=1 // pred_check
      _
    $region11: #{transformer_forward.15} parent=1 // pred_check_branch
      %25 = sbr.rel (0) target = $region13
    $region12: #{transformer_forward.15} parent=1 // pred_region
      _
    $region13: #{transformer_forward.15} parent=1 // pred_fallthru
      _
    // Predicated region
    $region14: #{transformer_forward.15} parent=1 // pred_check
      _
    $region15: #{transformer_forward.15} parent=1 // pred_check_branch
      %27 = sbr.rel (0) target = $region17
    $region16: #{transformer_forward.15} parent=1 // pred_region
      _
    $region17: #{transformer_forward.15} parent=1 // pred_fallthru
      _
    // Predicated region
    $region18: #{transformer_forward.15} parent=1 // pred_check
      _
    $region19: #{transformer_forward.15} parent=1 // pred_check_branch
      %29 = sbr.rel (0) target = $region21
    $region20: #{transformer_forward.15} parent=1 // pred_region
      _
    $region21: #{transformer_forward.15} parent=1 // pred_fallthru
      _
    // Predicated region
    $region22: #{transformer_forward.15} parent=1 // pred_check
      _
    $region23: #{transformer_forward.15} parent=1 // pred_check_branch
      %31 = sbr.rel (0) target = $region25
    $region24: #{transformer_forward.15} parent=1 // pred_region
      %33 = vsyncadd [#allocation3], 0
      %s34 = sshll.u32 %s5, 4
      %s35 = int_to_ptr.hbm [resolvable:$true] %s34
      %s36 = sshll.u32 [#allocation2], 4
      %s37 = int_to_ptr.vmem [resolvable:$true] %s36
      %42 = dma.hbm_to_vmem [thread:$0]  %s35, 512, %s37, [#allocation3], 128, 128, 8
    $region25: #{transformer_forward.15} parent=1 // pred_fallthru
      _
    // Predicated region
    $region26: #{transformer_forward.15} parent=1 // pred_check
      _
    $region27: #{transformer_forward.15} parent=1 // pred_check_branch
      %44 = sbr.rel (0) target = $region29
    $region28: #{transformer_forward.15} parent=1 // pred_region
      %46 = vsyncadd [#allocation5], 0
      %s47 = sshll.u32 %s6, 4
      %s48 = int_to_ptr.hbm [resolvable:$true] %s47
      %s49 = sshll.u32 [#allocation4], 4
      %s50 = int_to_ptr.vmem [resolvable:$true] %s49
      %55 = dma.hbm_to_vmem [thread:$0]  %s48, 512, %s50, [#allocation5], 128, 128, 8
    $region29: #{transformer_forward.15} parent=1 // pred_fallthru
      _
    // Predicated region
    $region30: #{transformer_forward.15} parent=1 // pred_check
      _
    $region31: #{transformer_forward.15} parent=1 // pred_check_branch
      %57 = sbr.rel (0) target = $region33
    $region32: #{transformer_forward.15} parent=1 // pred_region
      %59 = vsyncadd [#allocation5], 0
      %s60 = sshll.u32 %s7, 4
      %s61 = int_to_ptr.hbm [resolvable:$true] %s60
      %s62 = sshll.u32 [#allocation6], 4
      %s63 = int_to_ptr.vmem [resolvable:$true] %s62
      %68 = dma.hbm_to_vmem [thread:$0]  %s61, 512, %s63, [#allocation5], 128, 128, 8
    $region33: #{transformer_forward.15} parent=1 // pred_fallthru
      _
    // Predicated region
    $region34: #{transformer_forward.15} parent=1 // pred_check
      _
    $region35: #{transformer_forward.15} parent=1 // pred_check_branch
      %70 = sbr.rel (0) target = $region37
    $region36: #{transformer_forward.15} parent=1 // pred_region
      %72 = vsyncadd [#allocation8], 0
      %s73 = sshll.u32 %s8, 4
      %s74 = int_to_ptr.hbm [resolvable:$true] %s73
      %s75 = sshll.u32 [#allocation7], 4
      %s76 = int_to_ptr.vmem [resolvable:$true] %s75
      %81 = dma.hbm_to_vmem [thread:$0]  %s74, 512, %s76, [#allocation8], 128, 128, 8
    $region37: #{transformer_forward.15} parent=1 // pred_fallthru
      _
    // Predicated region
    $region38: #{transformer_forward.15} parent=1 // pred_check
      _
    $region39: #{transformer_forward.15} parent=1 // pred_check_branch
      %83 = sbr.rel (0) target = $region41
    $region40: #{transformer_forward.15} parent=1 // pred_region
      %85 = vsyncadd [#allocation8], 0
      %s87 = sshll.u32 %s9, 4
      %s88 = int_to_ptr.hbm [resolvable:$true] %s87
      %s89 = sshll.u32 [#allocation9], 4
      %s90 = int_to_ptr.vmem [resolvable:$true] %s89
      %92 = dma.hbm_to_vmem [thread:$0]  %s88, 16, %s90, [#allocation8]
    $region41: #{transformer_forward.15} parent=1 // pred_fallthru
      _
    // Predicated region
    $region42: #{transformer_forward.15} parent=1 // pred_check
      _
    $region43: #{transformer_forward.15} parent=1 // pred_check_branch
      %94 = sbr.rel (0) target = $region45
    $region44: #{transformer_forward.15} parent=1 // pred_region
      %96 = vsyncadd [#allocation11], 0
      %s98 = sshll.u32 %s10, 4
      %s99 = int_to_ptr.hbm [resolvable:$true] %s98
      %s100 = sshll.u32 [#allocation10], 4
      %s101 = int_to_ptr.vmem [resolvable:$true] %s100
      %103 = dma.hbm_to_vmem [thread:$0]  %s99, 16, %s101, [#allocation11]
    $region45: #{transformer_forward.15} parent=1 // pred_fallthru
      _
    // Predicated region
    $region46: #{transformer_forward.15} parent=1 // pred_check
      _
    $region47: #{transformer_forward.15} parent=1 // pred_check_branch
      %105 = sbr.rel (0) target = $region49
    $region48: #{transformer_forward.15} parent=1 // pred_region
      %107 = dma.done [#allocation3], 512
    $region49: #{transformer_forward.15} parent=1 // pred_fallthru
      _
    // Predicated region
    $region50: #{transformer_forward.15} parent=1 // pred_check
      _
    $region51: #{transformer_forward.15} parent=1 // pred_check_branch
      %109 = sbr.rel (0) target = $region53
    $region52: #{transformer_forward.15} parent=1 // pred_region
      %111 = dma.done [#allocation5], 512
    $region53: #{transformer_forward.15} parent=1 // pred_fallthru
      _
    // Predicated region
    $region54: #{transformer_forward.15} parent=1 // pred_check
      _
    $region55: #{transformer_forward.15} parent=1 // pred_check_branch
      %113 = sbr.rel (0) target = $region57
    $region56: #{transformer_forward.15} parent=1 // pred_region
      %115 = dma.done [#allocation5], 512
    $region57: #{transformer_forward.15} parent=1 // pred_fallthru
      _
    // Predicated region
    $region58: #{transformer_forward.15} parent=1 // pred_check
      _
    $region59: #{transformer_forward.15} parent=1 // pred_check_branch
      %117 = sbr.rel (0) target = $region61
    $region60: #{transformer_forward.15} parent=1 // pred_region
      %119 = dma.done [#allocation8], 512
    $region61: #{transformer_forward.15} parent=1 // pred_fallthru
      _
    // Predicated region
    $region62: #{transformer_forward.15} parent=1 // pred_check
      _
    $region63: #{transformer_forward.15} parent=1 // pred_check_branch
      %121 = sbr.rel (0) target = $region65
    $region64: #{transformer_forward.15} parent=1 // pred_region
      %123 = dma.done [#allocation8], 16
    $region65: #{transformer_forward.15} parent=1 // pred_fallthru
      _
    // Predicated region
    $region66: #{transformer_forward.15} parent=1 // pred_check
      _
    $region67: #{transformer_forward.15} parent=1 // pred_check_branch
      %125 = sbr.rel (0) target = $region69
    $region68: #{transformer_forward.15} parent=1 // pred_region
      %127 = dma.done [#allocation11], 16
    $region69: #{transformer_forward.15} parent=1 // pred_fallthru
      _
    %v128 = vld [vmem:[%s0] sm:$0xff]
    %v129 = vld [vmem:[%s1] sm:$0xff]
    %v130 = vadd.f32 %v128, %v129
    %v131 = vld [vmem:[%s2] sm:$0xff]
    %v132 = vld [vmem:[%s2 + $0x8] sm:$0xff]
    %v133 = vld [vmem:[%s3] sm:$0xff]
    %v134 = vld [vmem:[%s3 + $0x8] sm:$0xff]
    %v135 = vadd.f32 %v131, %v133
    %v136 = vadd.f32 %v132, %v134
    %v137 = vld [vmem:[#allocation2] sm:$0xff]
    %v138 = vld [vmem:[#allocation2 + $0x8] sm:$0xff]
    %v139 = vld [vmem:[#allocation2 + $0x10] sm:$0xff]
    %v140 = vld [vmem:[#allocation2 + $0x18] sm:$0xff]
    %vm141 = vcmask 261120
    %v143 = vsel %vm141, %v130, 0
    %145 = vmatpush.msra.mxu0 0.0
    %146 = vmatpush.msra.mxu0 0.0
    %147 = vmatpush.msra.mxu0 0.0
    %148 = vmatpush.msra.mxu0 0.0
    %149 = vmatpush.msra.mxu0 0.0
    %150 = vmatpush.msra.mxu0 0.0
    %151 = vmatpush.msra.mxu0 0.0
    %152 = vmatpush.msra.mxu0 0.0
    %153 = vmatpush.msra.mxu0 0.0
    %154 = vmatpush.msra.mxu0 0.0
    %155 = vmatpush.msra.mxu0 0.0
    %156 = vmatpush.msra.mxu0 0.0
    %157 = vmatpush.msra.mxu0 %v140
    %158 = vmatpush.msra.mxu0 %v139
    %159 = vmatpush.msra.mxu0 %v138
    %160 = vmatpush.msra.mxu0 %v137
    %161 = vmatmul.f32.gmra.mxu0 %v143
    %v162 = vpop.f32.mrf.mxu0
    %v163 = vadd.f32 0.0, %v162
    %164 = vdwg.mxu0
    %v165 = vmul.f32 %v163, 0.35355338
    %v166 = vld [vmem:[#allocation4] sm:$0xff]
    %v167 = vld [vmem:[#allocation4 + $0x8] sm:$0xff]
    %v168 = vld [vmem:[#allocation4 + $0x10] sm:$0xff]
    %v169 = vld [vmem:[#allocation4 + $0x18] sm:$0xff]
    %v171 = vsel %vm141, %v135, 0
    %v174 = vsel %vm141, %v136, 0
    %176 = vmatpush.msra.mxu0 0.0
    %177 = vmatpush.msra.mxu0 0.0
    %178 = vmatpush.msra.mxu0 0.0
    %179 = vmatpush.msra.mxu0 0.0
    %180 = vmatpush.msra.mxu0 0.0
    %181 = vmatpush.msra.mxu0 0.0
    %182 = vmatpush.msra.mxu0 0.0
    %183 = vmatpush.msra.mxu0 0.0
    %184 = vmatpush.msra.mxu0 0.0
    %185 = vmatpush.msra.mxu0 0.0
    %186 = vmatpush.msra.mxu0 0.0
    %187 = vmatpush.msra.mxu0 0.0
    %188 = vmatpush.msra.mxu0 %v169
    %189 = vmatpush.msra.mxu0 %v168
    %190 = vmatpush.msra.mxu0 %v167
    %191 = vmatpush.msra.mxu0 %v166
    %192 = vmatmul.f32.gmra.mxu0 %v171
    %v193 = vpop.f32.mrf.mxu0
    %v194 = vadd.f32 0.0, %v193
    %195 = vmatmul.f32.gmra.mxu0 %v174
    %v196 = vpop.f32.mrf.mxu0
    %v197 = vadd.f32 0.0, %v196
    %198 = vdwg.mxu0
    %v199 = vld [vmem:[#allocation6] sm:$0xff]
    %v200 = vld [vmem:[#allocation6 + $0x8] sm:$0xff]
    %v201 = vld [vmem:[#allocation6 + $0x10] sm:$0xff]
    %v202 = vld [vmem:[#allocation6 + $0x18] sm:$0xff]
    %v204 = vsel %vm141, %v131, 0
    %v207 = vsel %vm141, %v132, 0
    %209 = vmatpush.msra.mxu0 0.0
    %210 = vmatpush.msra.mxu0 0.0
    %211 = vmatpush.msra.mxu0 0.0
    %212 = vmatpush.msra.mxu0 0.0
    %213 = vmatpush.msra.mxu0 0.0
    %214 = vmatpush.msra.mxu0 0.0
    %215 = vmatpush.msra.mxu0 0.0
    %216 = vmatpush.msra.mxu0 0.0
    %217 = vmatpush.msra.mxu0 0.0
    %218 = vmatpush.msra.mxu0 0.0
    %219 = vmatpush.msra.mxu0 0.0
    %220 = vmatpush.msra.mxu0 0.0
    %221 = vmatpush.msra.mxu0 %v202
    %222 = vmatpush.msra.mxu0 %v201
    %223 = vmatpush.msra.mxu0 %v200
    %224 = vmatpush.msra.mxu0 %v199
    %225 = vmatmul.f32.gmra.mxu0 %v204
    %v226 = vpop.f32.mrf.mxu0
    %v227 = vadd.f32 0.0, %v226
    %228 = vmatmul.f32.gmra.mxu0 %v207
    %v229 = vpop.f32.mrf.mxu0
    %v230 = vadd.f32 0.0, %v229
    %231 = vdwg.mxu0
    %vm232 = vcmask 64512
    %v234 = vsel %vm232, %v165, 0
    %v237 = vsel %vm232, %v194, 0
    %v240 = vsel %vm232, %v197, 0
    %242 = vmatpush.xpose.msra.mxu0 0.0
    %243 = vmatpush.xpose.msra.mxu0 0.0
    %244 = vmatpush.xpose.msra.mxu0 0.0
    %245 = vmatpush.xpose.msra.mxu0 0.0
    %246 = vmatpush.xpose.msra.mxu0 0.0
    %247 = vmatpush.xpose.msra.mxu0 0.0
    %248 = vmatpush.xpose.msra.mxu0 0.0
    %249 = vmatpush.xpose.msra.mxu0 0.0
    %250 = vmatpush.xpose.msra.mxu0 0.0
    %251 = vmatpush.xpose.msra.mxu0 0.0
    %252 = vmatpush.xpose.msra.mxu0 0.0
    %253 = vmatpush.xpose.msra.mxu0 0.0
    %254 = vmatpush.xpose.msra.mxu0 0.0
    %255 = vmatpush.xpose.msra.mxu0 0.0
    %256 = vmatpush.xpose.msra.mxu0 %v240
    %257 = vmatpush.xpose.msra.mxu0 %v237
    %258 = vmatmul.f32.gmra.mxu0 %v234
    %v259 = vpop.f32.mrf.mxu0
    %v260 = vadd.f32 0.0, %v259
    %261 = vdwg.mxu0
    %vm262 = vcmask 130048
    %v263 = vsel %vm262, %v260, -inf
    %264 = vmax.xlane.f32.xlu0 %v263
    %v265 = vpop.xlane.xlu0 %264
    %v266 = vsub.f32 %v260, %v265
    %v267 = vmul.f32 %v266, 1.442695
    %v268 = vpow.pop %v267
    %v269 = vsel %vm262, %v268, 0.0
    %270 = vadd.xlane.f32.xlu0 %v269
    %v271 = vpop.xlane.xlu0 %270
    %v272 = vrcp.pop %v271
    %v273 = vmul.f32 %v268, %v272
    %v275 = vsel %vm262, %v273, 0
    %277 = vmatpush.msra.mxu0 0.0
    %278 = vmatpush.msra.mxu0 0.0
    %279 = vmatpush.msra.mxu0 0.0
    %280 = vmatpush.msra.mxu0 0.0
    %281 = vmatpush.msra.mxu0 0.0
    %282 = vmatpush.msra.mxu0 0.0
    %283 = vmatpush.msra.mxu0 0.0
    %284 = vmatpush.msra.mxu0 0.0
    %285 = vmatpush.msra.mxu0 0.0
    %286 = vmatpush.msra.mxu0 0.0
    %287 = vmatpush.msra.mxu0 0.0
    %288 = vmatpush.msra.mxu0 0.0
    %289 = vmatpush.msra.mxu0 0.0
    %290 = vmatpush.msra.mxu0 0.0
    %291 = vmatpush.msra.mxu0 %v230
    %292 = vmatpush.msra.mxu0 %v227
    %293 = vmatmul.f32.gmra.mxu0 %v275
    %v294 = vpop.f32.mrf.mxu0
    %v295 = vadd.f32 0.0, %v294
    %296 = vdwg.mxu0
    %297 = vrot.lane.b32.xlu0 %v165, 120
    %v298 = vpop.permute.xlu0 %297
    %299 = vrot.lane.b32.xlu0 %v194, 120
    %v300 = vpop.permute.xlu0 %299
    %301 = vrot.lane.b32.xlu0 %v197, 120
    %v302 = vpop.permute.xlu0 %301
    %v303 = vsel %vm232, %v298, 0
    %v305 = vsel %vm232, %v300, 0
    %v307 = vsel %vm232, %v302, 0
    %309 = vmatpush.xpose.msra.mxu0 0.0
    %310 = vmatpush.xpose.msra.mxu0 0.0
    %311 = vmatpush.xpose.msra.mxu0 0.0
    %312 = vmatpush.xpose.msra.mxu0 0.0
    %313 = vmatpush.xpose.msra.mxu0 0.0
    %314 = vmatpush.xpose.msra.mxu0 0.0
    %315 = vmatpush.xpose.msra.mxu0 0.0
    %316 = vmatpush.xpose.msra.mxu0 0.0
    %317 = vmatpush.xpose.msra.mxu0 0.0
    %318 = vmatpush.xpose.msra.mxu0 0.0
    %319 = vmatpush.xpose.msra.mxu0 0.0
    %320 = vmatpush.xpose.msra.mxu0 0.0
    %321 = vmatpush.xpose.msra.mxu0 0.0
    %322 = vmatpush.xpose.msra.mxu0 0.0
    %323 = vmatpush.xpose.msra.mxu0 %v307
    %324 = vmatpush.xpose.msra.mxu0 %v305
    %325 = vmatmul.f32.gmra.mxu0 %v303
    %v326 = vpop.f32.mrf.mxu0
    %v327 = vadd.f32 0.0, %v326
    %328 = vdwg.mxu0
    %v329 = vsel %vm262, %v327, -inf
    %330 = vmax.xlane.f32.xlu0 %v329
    %v331 = vpop.xlane.xlu0 %330
    %v332 = vsub.f32 %v327, %v331
    %v333 = vmul.f32 %v332, 1.442695
    %v334 = vpow.pop %v333
    %v335 = vsel %vm262, %v334, 0.0
    %336 = vadd.xlane.f32.xlu0 %v335
    %v337 = vpop.xlane.xlu0 %336
    %v338 = vrcp.pop %v337
    %v339 = vmul.f32 %v334, %v338
    %342 = vrot.lane.b32.xlu0 %v227, 120
    %v343 = vpop.permute.xlu0 %342
    %344 = vrot.lane.b32.xlu0 %v230, 120
    %v345 = vpop.permute.xlu0 %344
    %v349 = vsel %vm262, %v339, 0
    %351 = vmatpush.msra.mxu0 0.0
    %352 = vmatpush.msra.mxu0 0.0
    %353 = vmatpush.msra.mxu0 0.0
    %354 = vmatpush.msra.mxu0 0.0
    %355 = vmatpush.msra.mxu0 0.0
    %356 = vmatpush.msra.mxu0 0.0
    %357 = vmatpush.msra.mxu0 0.0
    %358 = vmatpush.msra.mxu0 0.0
    %359 = vmatpush.msra.mxu0 0.0
    %360 = vmatpush.msra.mxu0 0.0
    %361 = vmatpush.msra.mxu0 0.0
    %362 = vmatpush.msra.mxu0 0.0
    %363 = vmatpush.msra.mxu0 0.0
    %364 = vmatpush.msra.mxu0 0.0
    %365 = vmatpush.msra.mxu0 %v345
    %366 = vmatpush.msra.mxu0 %v343
    %367 = vmatmul.f32.gmra.mxu0 %v349
    %v368 = vpop.f32.mrf.mxu0
    %v369 = vadd.f32 0.0, %v368
    %370 = vdwg.mxu0
    %371 = vrot.lane.b32.xlu0 %v165, 112
    %v372 = vpop.permute.xlu0 %371
    %373 = vrot.lane.b32.xlu0 %v194, 112
    %v374 = vpop.permute.xlu0 %373
    %375 = vrot.lane.b32.xlu0 %v197, 112
    %v376 = vpop.permute.xlu0 %375
    %v377 = vsel %vm232, %v372, 0
    %v379 = vsel %vm232, %v374, 0
    %v381 = vsel %vm232, %v376, 0
    %383 = vmatpush.xpose.msra.mxu0 0.0
    %384 = vmatpush.xpose.msra.mxu0 0.0
    %385 = vmatpush.xpose.msra.mxu0 0.0
    %386 = vmatpush.xpose.msra.mxu0 0.0
    %387 = vmatpush.xpose.msra.mxu0 0.0
    %388 = vmatpush.xpose.msra.mxu0 0.0
    %389 = vmatpush.xpose.msra.mxu0 0.0
    %390 = vmatpush.xpose.msra.mxu0 0.0
    %391 = vmatpush.xpose.msra.mxu0 0.0
    %392 = vmatpush.xpose.msra.mxu0 0.0
    %393 = vmatpush.xpose.msra.mxu0 0.0
    %394 = vmatpush.xpose.msra.mxu0 0.0
    %395 = vmatpush.xpose.msra.mxu0 0.0
    %396 = vmatpush.xpose.msra.mxu0 0.0
    %397 = vmatpush.xpose.msra.mxu0 %v381
    %398 = vmatpush.xpose.msra.mxu0 %v379
    %399 = vmatmul.f32.gmra.mxu0 %v377
    %v400 = vpop.f32.mrf.mxu0
    %v401 = vadd.f32 0.0, %v400
    %402 = vdwg.mxu0
    %v403 = vsel %vm262, %v401, -inf
    %404 = vmax.xlane.f32.xlu0 %v403
    %v405 = vpop.xlane.xlu0 %404
    %v406 = vsub.f32 %v401, %v405
    %v407 = vmul.f32 %v406, 1.442695
    %v408 = vpow.pop %v407
    %v409 = vsel %vm262, %v408, 0.0
    %410 = vadd.xlane.f32.xlu0 %v409
    %v411 = vpop.xlane.xlu0 %410
    %v412 = vrcp.pop %v411
    %v413 = vmul.f32 %v408, %v412
    %414 = vrot.lane.b32.xlu0 %v227, 112
    %v415 = vpop.permute.xlu0 %414
    %416 = vrot.lane.b32.xlu0 %v230, 112
    %v417 = vpop.permute.xlu0 %416
    %v421 = vsel %vm262, %v413, 0
    %423 = vmatpush.msra.mxu0 0.0
    %424 = vmatpush.msra.mxu0 0.0
    %425 = vmatpush.msra.mxu0 0.0
    %426 = vmatpush.msra.mxu0 0.0
    %427 = vmatpush.msra.mxu0 0.0
    %428 = vmatpush.msra.mxu0 0.0
    %429 = vmatpush.msra.mxu0 0.0
    %430 = vmatpush.msra.mxu0 0.0
    %431 = vmatpush.msra.mxu0 0.0
    %432 = vmatpush.msra.mxu0 0.0
    %433 = vmatpush.msra.mxu0 0.0
    %434 = vmatpush.msra.mxu0 0.0
    %435 = vmatpush.msra.mxu0 0.0
    %436 = vmatpush.msra.mxu0 0.0
    %437 = vmatpush.msra.mxu0 %v417
    %438 = vmatpush.msra.mxu0 %v415
    %439 = vmatmul.f32.gmra.mxu0 %v421
    %v440 = vpop.f32.mrf.mxu0
    %v441 = vadd.f32 0.0, %v440
    %442 = vdwg.mxu0
    %443 = vrot.lane.b32.xlu0 %v165, 104
    %v444 = vpop.permute.xlu0 %443
    %445 = vrot.lane.b32.xlu0 %v194, 104
    %v446 = vpop.permute.xlu0 %445
    %447 = vrot.lane.b32.xlu0 %v197, 104
    %v448 = vpop.permute.xlu0 %447
    %v449 = vsel %vm232, %v444, 0
    %v451 = vsel %vm232, %v446, 0
    %v453 = vsel %vm232, %v448, 0
    %455 = vmatpush.xpose.msra.mxu0 0.0
    %456 = vmatpush.xpose.msra.mxu0 0.0
    %457 = vmatpush.xpose.msra.mxu0 0.0
    %458 = vmatpush.xpose.msra.mxu0 0.0
    %459 = vmatpush.xpose.msra.mxu0 0.0
    %460 = vmatpush.xpose.msra.mxu0 0.0
    %461 = vmatpush.xpose.msra.mxu0 0.0
    %462 = vmatpush.xpose.msra.mxu0 0.0
    %463 = vmatpush.xpose.msra.mxu0 0.0
    %464 = vmatpush.xpose.msra.mxu0 0.0
    %465 = vmatpush.xpose.msra.mxu0 0.0
    %466 = vmatpush.xpose.msra.mxu0 0.0
    %467 = vmatpush.xpose.msra.mxu0 0.0
    %468 = vmatpush.xpose.msra.mxu0 0.0
    %469 = vmatpush.xpose.msra.mxu0 %v453
    %470 = vmatpush.xpose.msra.mxu0 %v451
    %471 = vmatmul.f32.gmra.mxu0 %v449
    %v472 = vpop.f32.mrf.mxu0
    %v473 = vadd.f32 0.0, %v472
    %474 = vdwg.mxu0
    %v475 = vsel %vm262, %v473, -inf
    %476 = vmax.xlane.f32.xlu0 %v475
    %v477 = vpop.xlane.xlu0 %476
    %v478 = vsub.f32 %v473, %v477
    %v479 = vmul.f32 %v478, 1.442695
    %v480 = vpow.pop %v479
    %v481 = vsel %vm262, %v480, 0.0
    %482 = vadd.xlane.f32.xlu0 %v481
    %v483 = vpop.xlane.xlu0 %482
    %v484 = vrcp.pop %v483
    %v485 = vmul.f32 %v480, %v484
    %486 = vrot.lane.b32.xlu0 %v227, 104
    %v487 = vpop.permute.xlu0 %486
    %488 = vrot.lane.b32.xlu0 %v230, 104
    %v489 = vpop.permute.xlu0 %488
    %v493 = vsel %vm262, %v485, 0
    %495 = vmatpush.msra.mxu0 0.0
    %496 = vmatpush.msra.mxu0 0.0
    %497 = vmatpush.msra.mxu0 0.0
    %498 = vmatpush.msra.mxu0 0.0
    %499 = vmatpush.msra.mxu0 0.0
    %500 = vmatpush.msra.mxu0 0.0
    %501 = vmatpush.msra.mxu0 0.0
    %502 = vmatpush.msra.mxu0 0.0
    %503 = vmatpush.msra.mxu0 0.0
    %504 = vmatpush.msra.mxu0 0.0
    %505 = vmatpush.msra.mxu0 0.0
    %506 = vmatpush.msra.mxu0 0.0
    %507 = vmatpush.msra.mxu0 0.0
    %508 = vmatpush.msra.mxu0 0.0
    %509 = vmatpush.msra.mxu0 %v489
    %510 = vmatpush.msra.mxu0 %v487
    %511 = vmatmul.f32.gmra.mxu0 %v493
    %v512 = vpop.f32.mrf.mxu0
    %v513 = vadd.f32 0.0, %v512
    %514 = vdwg.mxu0
    %516 = vrot.lane.b32.xlu0 %v369, 8
    %v517 = vpop.permute.xlu0 %516
    %520 = vrot.lane.b32.xlu0 %v441, 16
    %v521 = vpop.permute.xlu0 %520
    %524 = vrot.lane.b32.xlu0 %v513, 24
    %v525 = vpop.permute.xlu0 %524
    %v527 = vsel %vm232, %v295, %v517
    %v528 = vsel %vm262, %v527, %v521
    %vm529 = vcmask 195584
    %v530 = vsel %vm529, %v528, %v525
    %v531 = vld [vmem:[#allocation7] sm:$0xff]
    %v532 = vld [vmem:[#allocation7 + $0x8] sm:$0xff]
    %v533 = vld [vmem:[#allocation7 + $0x10] sm:$0xff]
    %v534 = vld [vmem:[#allocation7 + $0x18] sm:$0xff]
    %v536 = vsel %vm141, %v530, 0
    %538 = vmatpush.msra.mxu0 0.0
    %539 = vmatpush.msra.mxu0 0.0
    %540 = vmatpush.msra.mxu0 0.0
    %541 = vmatpush.msra.mxu0 0.0
    %542 = vmatpush.msra.mxu0 0.0
    %543 = vmatpush.msra.mxu0 0.0
    %544 = vmatpush.msra.mxu0 0.0
    %545 = vmatpush.msra.mxu0 0.0
    %546 = vmatpush.msra.mxu0 0.0
    %547 = vmatpush.msra.mxu0 0.0
    %548 = vmatpush.msra.mxu0 0.0
    %549 = vmatpush.msra.mxu0 0.0
    %550 = vmatpush.msra.mxu0 %v534
    %551 = vmatpush.msra.mxu0 %v533
    %552 = vmatpush.msra.mxu0 %v532
    %553 = vmatpush.msra.mxu0 %v531
    %554 = vmatmul.f32.gmra.mxu0 %v536
    %v555 = vpop.f32.mrf.mxu0
    %v556 = vadd.f32 0.0, %v555
    %557 = vdwg.mxu0
    %v558 = vld [vmem:[%s4] sm:$0xff]
    %v559 = vld [vmem:[%s4 + $0x8] sm:$0xff]
    %v560 = vadd.f32 %v556, %v558
    %v561 = vadd.f32 %v556, %v559
    %v562 = vsel %vm141, %v560, 0.0
    %563 = vadd.xlane.f32.xlu0 %v562
    %v564 = vpop.xlane.xlu0 %563
    %v565 = vsel %vm141, %v561, 0.0
    %566 = vadd.xlane.f32.xlu0 %v565
    %v567 = vpop.xlane.xlu0 %566
    %v568 = vrcp.pop 32.0
    %v569 = vmul.f32 32.0, %v568
    %v570 = vsub.f32 1.0, %v569
    %v571 = vmul.f32 %v568, %v570
    %v572 = vadd.f32 %v568, %v571
    %vm573 = vweird.f32 %v568
    %v574 = vsel %vm573, %v568, %v572
    %v575 = vmul.f32 %v564, %v574
    %v576 = vmul.f32 %v567, %v574
    %v577 = vsub.f32 %v560, %v575
    %v578 = vsub.f32 %v561, %v576
    %v579 = vmul.f32 %v577, %v577
    %v580 = vmul.f32 %v578, %v578
    %v581 = vsel %vm141, %v579, 0.0
    %582 = vadd.xlane.f32.xlu0 %v581
    %v583 = vpop.xlane.xlu0 %582
    %v584 = vsel %vm141, %v580, 0.0
    %585 = vadd.xlane.f32.xlu0 %v584
    %v586 = vpop.xlane.xlu0 %585
    %v587 = vmul.f32 %v583, %v574
    %v588 = vmul.f32 %v586, %v574
    %v589 = vadd.f32 %v587, 1e-05
    %v590 = vadd.f32 %v588, 1e-05
    %v591 = vrsqrt.pop %v589
    %v592 = vmul.f32 %v591, %v589
    %v593 = vmul.f32 %v592, %v591
    %v594 = vmul.f32 0.5, %v593
    %v595 = vsub.f32 1.5, %v594
    %v596 = vmul.f32 %v591, %v595
    %vm597 = vweird.f32 %v589
    %vm598 = vweird.f32 %v591
    %vm599 = vmor %vm597, %vm598
    %v600 = vsel %vm599, %v591, %v596
    %v601 = vrsqrt.pop %v590
    %v602 = vmul.f32 %v601, %v590
    %v603 = vmul.f32 %v602, %v601
    %v604 = vmul.f32 0.5, %v603
    %v605 = vsub.f32 1.5, %v604
    %v606 = vmul.f32 %v601, %v605
    %vm607 = vweird.f32 %v590
    %vm608 = vweird.f32 %v601
    %vm609 = vmor %vm607, %vm608
    %v610 = vsel %vm609, %v601, %v606
    %v611 = vmul.f32 %v577, %v600
    %v612 = vmul.f32 %v578, %v610
    %v613 = vld [vmem:[#allocation9] sm:$0x1]
    %v615 = vperm.slane %v613, 0
    %v617 = vmul.f32 %v611, %v615
    %v618 = vmul.f32 %v612, %v615
    %v619 = vld [vmem:[#allocation10] sm:$0x1]
    %v621 = vperm.slane %v619, 0
    %v623 = vadd.f32 %v617, %v621
    %v624 = vadd.f32 %v618, %v621
    %625 = vst.msk [vmem:[%s11] sm:$0xff] %vm141, %v623
    %626 = vst.msk [vmem:[%s11 + $0x8] sm:$0xff] %vm141, %v624
    // Predicated region
    $region70: #{transformer_forward.15} parent=1 // pred_check
      _
    $region71: #{transformer_forward.15} parent=1 // pred_check_branch
      %628 = sbr.rel (0) target = $region73
    $region72: #{transformer_forward.15} parent=1 // pred_region
      _
    $region73: #{transformer_forward.15} parent=1 // pred_fallthru
      _
    // Predicated region
    $region74: #{transformer_forward.15} parent=1 // pred_check
      _
    $region75: #{transformer_forward.15} parent=1 // pred_check_branch
      %630 = sbr.rel (0) target = $region77
    $region76: #{transformer_forward.15} parent=1 // pred_region
      _
    $region77: #{transformer_forward.15} parent=1 // pred_fallthru
      _
    %631 = vsyncpa [#allocation3], 1
    %632 = vsyncpa [#allocation5], 1
    %633 = vsyncpa [#allocation8], 1
    %634 = vsyncpa [#allocation11], 1

// kernel: transformer_forward.16
$region0: #{transformer_forward.16}
  #allocation0 [shape = 'u32[]', space=smem, size = 0x4, offset = 0x4, fixed_abs, tag = 'smem constant byte address 0x4 - core index']
  #allocation1 [shape = 'u32[72,128]{1,0:T(1,128)}', space=vmem, size = 0x9000, scoped, tag = 'internal scratch']
  %s0 = inlined_call_operand.vmem [shape: f32[16,32], index: 0, kind: input, shape index: {}]
  %s1 = inlined_call_operand.vmem [shape: f32[32,128], index: 1, kind: input, shape index: {}]
  %s2 = inlined_call_operand.hbm [shape: f32[1,128], index: 2, kind: input, shape index: {}]
  %s3 = inlined_call_operand.vmem [shape: f32[128,32], index: 3, kind: input, shape index: {}]
  %s4 = inlined_call_operand.hbm [shape: f32[1,32], index: 4, kind: input, shape index: {}]
  %s5 = inlined_call_operand.hbm [shape: f32[1,32], index: 5, kind: input, shape index: {}]
  %s6 = inlined_call_operand.hbm [shape: f32[1,32], index: 6, kind: input, shape index: {}]
  %s7 = inlined_call_operand.vmem [shape: f32[16,32], index: 7, kind: output, shape index: {}]
  %s8 = sld [smem:[#allocation0]]
  $region54: #{transformer_forward.16} parent=0
    _
  %s10 = ssub.s32 1, %s8
  %s11 = scalar_select 0, %s10, %s8
  $region1: #{transformer_forward.16} parent=0
    #allocation2 [shape = 'u8[512]{0}', space=vmem, size = 0x400, scoped, tag = 'input window, operand 2, single buffered']
    #allocation3 [shape = 's32[1]{0}', space=sflag, size = 0x4, scoped, tag = 'scoped memory for transformer_forward.16']
    #allocation4 [shape = 'u8[512]{0}', space=vmem, size = 0x400, scoped, tag = 'input window, operand 4, single buffered']
    #allocation5 [shape = 's32[1]{0}', space=sflag, size = 0x4, scoped, tag = 'scoped memory for transformer_forward.16']
    #allocation6 [shape = 'u8[512]{0}', space=vmem, size = 0x400, scoped, tag = 'input window, operand 5, single buffered']
    #allocation7 [shape = 'u8[512]{0}', space=vmem, size = 0x400, scoped, tag = 'input window, operand 6, single buffered']
    #allocation8 [shape = 's32[1]{0}', space=sflag, size = 0x4, scoped, tag = 'scoped memory for transformer_forward.16']
    %12 = vsyncpa [#allocation3], 0
    %13 = vsyncpa [#allocation5], 0
    %14 = vsyncpa [#allocation8], 0
    // Predicated region
    $region2: #{transformer_forward.16} parent=1 // pred_check
      _
    $region3: #{transformer_forward.16} parent=1 // pred_check_branch
      %16 = sbr.rel (0) target = $region5
    $region4: #{transformer_forward.16} parent=1 // pred_region
      _
    $region5: #{transformer_forward.16} parent=1 // pred_fallthru
      _
    // Predicated region
    $region6: #{transformer_forward.16} parent=1 // pred_check
      _
    $region7: #{transformer_forward.16} parent=1 // pred_check_branch
      %18 = sbr.rel (0) target = $region9
    $region8: #{transformer_forward.16} parent=1 // pred_region
      _
    $region9: #{transformer_forward.16} parent=1 // pred_fallthru
      _
    // Predicated region
    $region10: #{transformer_forward.16} parent=1 // pred_check
      _
    $region11: #{transformer_forward.16} parent=1 // pred_check_branch
      %20 = sbr.rel (0) target = $region13
    $region12: #{transformer_forward.16} parent=1 // pred_region
      %22 = vsyncadd [#allocation3], 0
      %s24 = sshll.u32 %s2, 4
      %s25 = int_to_ptr.hbm [resolvable:$true] %s24
      %s26 = sshll.u32 [#allocation2], 4
      %s27 = int_to_ptr.vmem [resolvable:$true] %s26
      %29 = dma.hbm_to_vmem [thread:$0]  %s25, 16, %s27, [#allocation3]
    $region13: #{transformer_forward.16} parent=1 // pred_fallthru
      _
    // Predicated region
    $region14: #{transformer_forward.16} parent=1 // pred_check
      _
    $region15: #{transformer_forward.16} parent=1 // pred_check_branch
      %31 = sbr.rel (0) target = $region17
    $region16: #{transformer_forward.16} parent=1 // pred_region
      _
    $region17: #{transformer_forward.16} parent=1 // pred_fallthru
      _
    // Predicated region
    $region18: #{transformer_forward.16} parent=1 // pred_check
      _
    $region19: #{transformer_forward.16} parent=1 // pred_check_branch
      %33 = sbr.rel (0) target = $region21
    $region20: #{transformer_forward.16} parent=1 // pred_region
      %35 = vsyncadd [#allocation5], 0
      %s37 = sshll.u32 %s4, 4
      %s38 = int_to_ptr.hbm [resolvable:$true] %s37
      %s39 = sshll.u32 [#allocation4], 4
      %s40 = int_to_ptr.vmem [resolvable:$true] %s39
      %42 = dma.hbm_to_vmem [thread:$0]  %s38, 16, %s40, [#allocation5]
    $region21: #{transformer_forward.16} parent=1 // pred_fallthru
      _
    // Predicated region
    $region22: #{transformer_forward.16} parent=1 // pred_check
      _
    $region23: #{transformer_forward.16} parent=1 // pred_check_branch
      %44 = sbr.rel (0) target = $region25
    $region24: #{transformer_forward.16} parent=1 // pred_region
      %46 = vsyncadd [#allocation5], 0
      %s48 = sshll.u32 %s5, 4
      %s49 = int_to_ptr.hbm [resolvable:$true] %s48
      %s50 = sshll.u32 [#allocation6], 4
      %s51 = int_to_ptr.vmem [resolvable:$true] %s50
      %53 = dma.hbm_to_vmem [thread:$0]  %s49, 16, %s51, [#allocation5]
    $region25: #{transformer_forward.16} parent=1 // pred_fallthru
      _
    // Predicated region
    $region26: #{transformer_forward.16} parent=1 // pred_check
      _
    $region27: #{transformer_forward.16} parent=1 // pred_check_branch
      %55 = sbr.rel (0) target = $region29
    $region28: #{transformer_forward.16} parent=1 // pred_region
      %57 = vsyncadd [#allocation8], 0
      %s59 = sshll.u32 %s6, 4
      %s60 = int_to_ptr.hbm [resolvable:$true] %s59
      %s61 = sshll.u32 [#allocation7], 4
      %s62 = int_to_ptr.vmem [resolvable:$true] %s61
      %64 = dma.hbm_to_vmem [thread:$0]  %s60, 16, %s62, [#allocation8]
    $region29: #{transformer_forward.16} parent=1 // pred_fallthru
      _
    // Predicated region
    $region30: #{transformer_forward.16} parent=1 // pred_check
      _
    $region31: #{transformer_forward.16} parent=1 // pred_check_branch
      %66 = sbr.rel (0) target = $region33
    $region32: #{transformer_forward.16} parent=1 // pred_region
      %68 = dma.done [#allocation3], 16
    $region33: #{transformer_forward.16} parent=1 // pred_fallthru
      _
    // Predicated region
    $region34: #{transformer_forward.16} parent=1 // pred_check
      _
    $region35: #{transformer_forward.16} parent=1 // pred_check_branch
      %70 = sbr.rel (0) target = $region37
    $region36: #{transformer_forward.16} parent=1 // pred_region
      %72 = dma.done [#allocation5], 16
    $region37: #{transformer_forward.16} parent=1 // pred_fallthru
      _
    // Predicated region
    $region38: #{transformer_forward.16} parent=1 // pred_check
      _
    $region39: #{transformer_forward.16} parent=1 // pred_check_branch
      %74 = sbr.rel (0) target = $region41
    $region40: #{transformer_forward.16} parent=1 // pred_region
      %76 = dma.done [#allocation5], 16
    $region41: #{transformer_forward.16} parent=1 // pred_fallthru
      _
    // Predicated region
    $region42: #{transformer_forward.16} parent=1 // pred_check
      _
    $region43: #{transformer_forward.16} parent=1 // pred_check_branch
      %78 = sbr.rel (0) target = $region45
    $region44: #{transformer_forward.16} parent=1 // pred_region
      %80 = dma.done [#allocation8], 16
    $region45: #{transformer_forward.16} parent=1 // pred_fallthru
      _
    %v81 = vld [vmem:[%s0] sm:$0xff]
    %v82 = vld [vmem:[%s0 + $0x8] sm:$0xff]
    %v83 = vld [vmem:[%s1] sm:$0xff]
    %v84 = vld [vmem:[%s1 + $0x8] sm:$0xff]
    %v85 = vld [vmem:[%s1 + $0x10] sm:$0xff]
    %v86 = vld [vmem:[%s1 + $0x18] sm:$0xff]
    %v87 = vld [vmem:[#allocation2] sm:$0x1]
    %v89 = vperm.slane %v87, 0
    %vm91 = vcmask 261120
    %v93 = vsel %vm91, %v81, 0
    %v96 = vsel %vm91, %v82, 0
    %98 = vmatpush.msra.mxu0 0.0
    %99 = vmatpush.msra.mxu0 0.0
    %100 = vmatpush.msra.mxu0 0.0
    %101 = vmatpush.msra.mxu0 0.0
    %102 = vmatpush.msra.mxu0 0.0
    %103 = vmatpush.msra.mxu0 0.0
    %104 = vmatpush.msra.mxu0 0.0
    %105 = vmatpush.msra.mxu0 0.0
    %106 = vmatpush.msra.mxu0 0.0
    %107 = vmatpush.msra.mxu0 0.0
    %108 = vmatpush.msra.mxu0 0.0
    %109 = vmatpush.msra.mxu0 0.0
    %110 = vmatpush.msra.mxu0 %v86
    %111 = vmatpush.msra.mxu0 %v85
    %112 = vmatpush.msra.mxu0 %v84
    %113 = vmatpush.msra.mxu0 %v83
    %114 = vmatmul.f32.gmra.mxu0 %v93
    %v115 = vpop.f32.mrf.mxu0
    %v116 = vadd.f32 %v89, %v115
    %117 = vmatmul.f32.gmra.mxu0 %v96
    %v118 = vpop.f32.mrf.mxu0
    %v119 = vadd.f32 %v89, %v118
    %120 = vdwg.mxu0
    %v121 = vmax.f32 %v116, 0.0
    %v122 = vmax.f32 %v119, 0.0
    %v123 = vld [vmem:[%s3] sm:$0xff]
    %v124 = vld [vmem:[%s3 + $0x8] sm:$0xff]
    %v125 = vld [vmem:[%s3 + $0x10] sm:$0xff]
    %v126 = vld [vmem:[%s3 + $0x18] sm:$0xff]
    %v127 = vld [vmem:[%s3 + $0x20] sm:$0xff]
    %v128 = vld [vmem:[%s3 + $0x28] sm:$0xff]
    %v129 = vld [vmem:[%s3 + $0x30] sm:$0xff]
    %v130 = vld [vmem:[%s3 + $0x38] sm:$0xff]
    %v131 = vld [vmem:[%s3 + $0x40] sm:$0xff]
    %v132 = vld [vmem:[%s3 + $0x48] sm:$0xff]
    %v133 = vld [vmem:[%s3 + $0x50] sm:$0xff]
    %v134 = vld [vmem:[%s3 + $0x58] sm:$0xff]
    %v135 = vld [vmem:[%s3 + $0x60] sm:$0xff]
    %v136 = vld [vmem:[%s3 + $0x68] sm:$0xff]
    %v137 = vld [vmem:[%s3 + $0x70] sm:$0xff]
    %v138 = vld [vmem:[%s3 + $0x78] sm:$0xff]
    %v139 = vld [vmem:[#allocation4] sm:$0x1]
    %v141 = vperm.slane %v139, 0
    %143 = vmatpush.msra.mxu0 %v138
    %144 = vmatpush.msra.mxu0 %v137
    %145 = vmatpush.msra.mxu0 %v136
    %146 = vmatpush.msra.mxu0 %v135
    %147 = vmatpush.msra.mxu0 %v134
    %148 = vmatpush.msra.mxu0 %v133
    %149 = vmatpush.msra.mxu0 %v132
    %150 = vmatpush.msra.mxu0 %v131
    %151 = vmatpush.msra.mxu0 %v130
    %152 = vmatpush.msra.mxu0 %v129
    %153 = vmatpush.msra.mxu0 %v128
    %154 = vmatpush.msra.mxu0 %v127
    %155 = vmatpush.msra.mxu0 %v126
    %156 = vmatpush.msra.mxu0 %v125
    %157 = vmatpush.msra.mxu0 %v124
    %158 = vmatpush.msra.mxu0 %v123
    %159 = vmatmul.f32.gmra.mxu0 %v121
    %v160 = vpop.f32.mrf.mxu0
    %v161 = vadd.f32 %v141, %v160
    %162 = vmatmul.f32.gmra.mxu0 %v122
    %v163 = vpop.f32.mrf.mxu0
    %v164 = vadd.f32 %v141, %v163
    %165 = vdwg.mxu0
    %v166 = vadd.f32 %v161, %v81
    %v167 = vadd.f32 %v164, %v82
    %v168 = vsel %vm91, %v166, 0.0
    %169 = vadd.xlane.f32.xlu0 %v168
    %v170 = vpop.xlane.xlu0 %169
    %v171 = vsel %vm91, %v167, 0.0
    %172 = vadd.xlane.f32.xlu0 %v171
    %v173 = vpop.xlane.xlu0 %172
    %v174 = vrcp.pop 32.0
    %v175 = vmul.f32 32.0, %v174
    %v176 = vsub.f32 1.0, %v175
    %v177 = vmul.f32 %v174, %v176
    %v178 = vadd.f32 %v174, %v177
    %vm179 = vweird.f32 %v174
    %v180 = vsel %vm179, %v174, %v178
    %v181 = vmul.f32 %v170, %v180
    %v182 = vmul.f32 %v173, %v180
    %v183 = vsub.f32 %v166, %v181
    %v184 = vsub.f32 %v167, %v182
    %v185 = vmul.f32 %v183, %v183
    %v186 = vmul.f32 %v184, %v184
    %v187 = vsel %vm91, %v185, 0.0
    %188 = vadd.xlane.f32.xlu0 %v187
    %v189 = vpop.xlane.xlu0 %188
    %v190 = vsel %vm91, %v186, 0.0
    %191 = vadd.xlane.f32.xlu0 %v190
    %v192 = vpop.xlane.xlu0 %191
    %v193 = vmul.f32 %v189, %v180
    %v194 = vmul.f32 %v192, %v180
    %v195 = vadd.f32 %v193, 1e-05
    %v196 = vadd.f32 %v194, 1e-05
    %v197 = vrsqrt.pop %v195
    %v198 = vmul.f32 %v197, %v195
    %v199 = vmul.f32 %v198, %v197
    %v200 = vmul.f32 0.5, %v199
    %v201 = vsub.f32 1.5, %v200
    %v202 = vmul.f32 %v197, %v201
    %vm203 = vweird.f32 %v195
    %vm204 = vweird.f32 %v197
    %vm205 = vmor %vm203, %vm204
    %v206 = vsel %vm205, %v197, %v202
    %v207 = vrsqrt.pop %v196
    %v208 = vmul.f32 %v207, %v196
    %v209 = vmul.f32 %v208, %v207
    %v210 = vmul.f32 0.5, %v209
    %v211 = vsub.f32 1.5, %v210
    %v212 = vmul.f32 %v207, %v211
    %vm213 = vweird.f32 %v196
    %vm214 = vweird.f32 %v207
    %vm215 = vmor %vm213, %vm214
    %v216 = vsel %vm215, %v207, %v212
    %v217 = vmul.f32 %v183, %v206
    %v218 = vmul.f32 %v184, %v216
    %v219 = vld [vmem:[#allocation6] sm:$0x1]
    %v221 = vperm.slane %v219, 0
    %v223 = vmul.f32 %v217, %v221
    %v224 = vmul.f32 %v218, %v221
    %v225 = vld [vmem:[#allocation7] sm:$0x1]
    %v227 = vperm.slane %v225, 0
    %v229 = vadd.f32 %v223, %v227
    %v230 = vadd.f32 %v224, %v227
    %231 = vst.msk [vmem:[%s7] sm:$0xff] %vm91, %v229
    %232 = vst.msk [vmem:[%s7 + $0x8] sm:$0xff] %vm91, %v230
    // Predicated region
    $region46: #{transformer_forward.16} parent=1 // pred_check
      _
    $region47: #{transformer_forward.16} parent=1 // pred_check_branch
      %234 = sbr.rel (0) target = $region49
    $region48: #{transformer_forward.16} parent=1 // pred_region
      _
    $region49: #{transformer_forward.16} parent=1 // pred_fallthru
      _
    // Predicated region
    $region50: #{transformer_forward.16} parent=1 // pred_check
      _
    $region51: #{transformer_forward.16} parent=1 // pred_check_branch
      %236 = sbr.rel (0) target = $region53
    $region52: #{transformer_forward.16} parent=1 // pred_region
      _
    $region53: #{transformer_forward.16} parent=1 // pred_fallthru
      _
    %237 = vsyncpa [#allocation3], 1
    %238 = vsyncpa [#allocation5], 1
    %239 = vsyncpa [#allocation8], 1

// kernel: transformer_forward.17
$region0: #{transformer_forward.17}
  #allocation0 [shape = 'u32[]', space=smem, size = 0x4, offset = 0x4, fixed_abs, tag = 'smem constant byte address 0x4 - core index']
  #allocation1 [shape = 'u32[72,128]{1,0:T(1,128)}', space=vmem, size = 0x9000, scoped, tag = 'internal scratch']
  %s0 = inlined_call_operand.vmem [shape: f32[8,32], index: 0, kind: input, shape index: {}, may-alias: {0,2}]
  %s1 = inlined_call_operand.vmem [shape: f32[8,32], index: 1, kind: input, shape index: {}, may-alias: {1,3}]
  %s2 = inlined_call_operand.vmem [shape: f32[8,32], index: 2, kind: input, shape index: {}, may-alias: {0,2}]
  %s3 = inlined_call_operand.vmem [shape: f32[8,32], index: 3, kind: input, shape index: {}, may-alias: {1,3}]
  %s4 = inlined_call_operand.vmem [shape: f32[2,8,32], index: 4, kind: input, shape index: {}]
  %s5 = inlined_call_operand.vmem [shape: f32[32,32], index: 5, kind: input, shape index: {}]
  %s6 = inlined_call_operand.vmem [shape: f32[32,32], index: 6, kind: input, shape index: {}]
  %s7 = inlined_call_operand.vmem [shape: f32[32,32], index: 7, kind: input, shape index: {}]
  %s8 = inlined_call_operand.vmem [shape: f32[32,32], index: 8, kind: input, shape index: {}]
  %s9 = inlined_call_operand.hbm [shape: f32[1,32], index: 9, kind: input, shape index: {}]
  %s10 = inlined_call_operand.hbm [shape: f32[1,32], index: 10, kind: input, shape index: {}]
  %s11 = inlined_call_operand.vmem [shape: f32[2,8,32], index: 11, kind: output, shape index: {}]
  %s12 = sld [smem:[#allocation0]]
  $region62: #{transformer_forward.17} parent=0
    _
  %s14 = ssub.s32 1, %s12
  %s15 = scalar_select 0, %s14, %s12
  $region1: #{transformer_forward.17} parent=0
    #allocation2 [shape = 'u8[512]{0}', space=vmem, size = 0x400, scoped, tag = 'input window, operand 9, single buffered']
    #allocation3 [shape = 's32[1]{0}', space=sflag, size = 0x4, scoped, tag = 'scoped memory for transformer_forward.17']
    #allocation4 [shape = 'u8[512]{0}', space=vmem, size = 0x400, scoped, tag = 'input window, operand 10, single buffered']
    #allocation5 [shape = 's32[1]{0}', space=sflag, size = 0x4, scoped, tag = 'scoped memory for transformer_forward.17']
    %16 = vsyncpa [#allocation3], 0
    %17 = vsyncpa [#allocation5], 0
    // Predicated region
    $region2: #{transformer_forward.17} parent=1 // pred_check
      _
    $region3: #{transformer_forward.17} parent=1 // pred_check_branch
      %19 = sbr.rel (0) target = $region5
    $region4: #{transformer_forward.17} parent=1 // pred_region
      _
    $region5: #{transformer_forward.17} parent=1 // pred_fallthru
      _
    // Predicated region
    $region6: #{transformer_forward.17} parent=1 // pred_check
      _
    $region7: #{transformer_forward.17} parent=1 // pred_check_branch
      %21 = sbr.rel (0) target = $region9
    $region8: #{transformer_forward.17} parent=1 // pred_region
      _
    $region9: #{transformer_forward.17} parent=1 // pred_fallthru
      _
    // Predicated region
    $region10: #{transformer_forward.17} parent=1 // pred_check
      _
    $region11: #{transformer_forward.17} parent=1 // pred_check_branch
      %23 = sbr.rel (0) target = $region13
    $region12: #{transformer_forward.17} parent=1 // pred_region
      _
    $region13: #{transformer_forward.17} parent=1 // pred_fallthru
      _
    // Predicated region
    $region14: #{transformer_forward.17} parent=1 // pred_check
      _
    $region15: #{transformer_forward.17} parent=1 // pred_check_branch
      %25 = sbr.rel (0) target = $region17
    $region16: #{transformer_forward.17} parent=1 // pred_region
      _
    $region17: #{transformer_forward.17} parent=1 // pred_fallthru
      _
    // Predicated region
    $region18: #{transformer_forward.17} parent=1 // pred_check
      _
    $region19: #{transformer_forward.17} parent=1 // pred_check_branch
      %27 = sbr.rel (0) target = $region21
    $region20: #{transformer_forward.17} parent=1 // pred_region
      _
    $region21: #{transformer_forward.17} parent=1 // pred_fallthru
      _
    // Predicated region
    $region22: #{transformer_forward.17} parent=1 // pred_check
      _
    $region23: #{transformer_forward.17} parent=1 // pred_check_branch
      %29 = sbr.rel (0) target = $region25
    $region24: #{transformer_forward.17} parent=1 // pred_region
      _
    $region25: #{transformer_forward.17} parent=1 // pred_fallthru
      _
    // Predicated region
    $region26: #{transformer_forward.17} parent=1 // pred_check
      _
    $region27: #{transformer_forward.17} parent=1 // pred_check_branch
      %31 = sbr.rel (0) target = $region29
    $region28: #{transformer_forward.17} parent=1 // pred_region
      _
    $region29: #{transformer_forward.17} parent=1 // pred_fallthru
      _
    // Predicated region
    $region30: #{transformer_forward.17} parent=1 // pred_check
      _
    $region31: #{transformer_forward.17} parent=1 // pred_check_branch
      %33 = sbr.rel (0) target = $region33
    $region32: #{transformer_forward.17} parent=1 // pred_region
      _
    $region33: #{transformer_forward.17} parent=1 // pred_fallthru
      _
    // Predicated region
    $region34: #{transformer_forward.17} parent=1 // pred_check
      _
    $region35: #{transformer_forward.17} parent=1 // pred_check_branch
      %35 = sbr.rel (0) target = $region37
    $region36: #{transformer_forward.17} parent=1 // pred_region
      _
    $region37: #{transformer_forward.17} parent=1 // pred_fallthru
      _
    // Predicated region
    $region38: #{transformer_forward.17} parent=1 // pred_check
      _
    $region39: #{transformer_forward.17} parent=1 // pred_check_branch
      %37 = sbr.rel (0) target = $region41
    $region40: #{transformer_forward.17} parent=1 // pred_region
      %39 = vsyncadd [#allocation3], 0
      %s41 = sshll.u32 %s9, 4
      %s42 = int_to_ptr.hbm [resolvable:$true] %s41
      %s43 = sshll.u32 [#allocation2], 4
      %s44 = int_to_ptr.vmem [resolvable:$true] %s43
      %46 = dma.hbm_to_vmem [thread:$0]  %s42, 16, %s44, [#allocation3]
    $region41: #{transformer_forward.17} parent=1 // pred_fallthru
      _
    // Predicated region
    $region42: #{transformer_forward.17} parent=1 // pred_check
      _
    $region43: #{transformer_forward.17} parent=1 // pred_check_branch
      %48 = sbr.rel (0) target = $region45
    $region44: #{transformer_forward.17} parent=1 // pred_region
      %50 = vsyncadd [#allocation5], 0
      %s52 = sshll.u32 %s10, 4
      %s53 = int_to_ptr.hbm [resolvable:$true] %s52
      %s54 = sshll.u32 [#allocation4], 4
      %s55 = int_to_ptr.vmem [resolvable:$true] %s54
      %57 = dma.hbm_to_vmem [thread:$0]  %s53, 16, %s55, [#allocation5]
    $region45: #{transformer_forward.17} parent=1 // pred_fallthru
      _
    // Predicated region
    $region46: #{transformer_forward.17} parent=1 // pred_check
      _
    $region47: #{transformer_forward.17} parent=1 // pred_check_branch
      %59 = sbr.rel (0) target = $region49
    $region48: #{transformer_forward.17} parent=1 // pred_region
      %61 = dma.done [#allocation3], 16
    $region49: #{transformer_forward.17} parent=1 // pred_fallthru
      _
    // Predicated region
    $region50: #{transformer_forward.17} parent=1 // pred_check
      _
    $region51: #{transformer_forward.17} parent=1 // pred_check_branch
      %63 = sbr.rel (0) target = $region53
    $region52: #{transformer_forward.17} parent=1 // pred_region
      %65 = dma.done [#allocation5], 16
    $region53: #{transformer_forward.17} parent=1 // pred_fallthru
      _
    %v66 = vld [vmem:[%s0] sm:$0xff]
    %v67 = vld [vmem:[%s1] sm:$0xff]
    %v68 = vadd.f32 %v66, %v67
    %v69 = vld [vmem:[%s2] sm:$0xff]
    %v70 = vld [vmem:[%s3] sm:$0xff]
    %v71 = vadd.f32 %v69, %v70
    %v72 = vld [vmem:[%s5] sm:$0xff]
    %v73 = vld [vmem:[%s5 + $0x8] sm:$0xff]
    %v74 = vld [vmem:[%s5 + $0x10] sm:$0xff]
    %v75 = vld [vmem:[%s5 + $0x18] sm:$0xff]
    %vm76 = vcmask 261120
    %v78 = vsel %vm76, %v68, 0
    %80 = vmatpush.msra.mxu0 0.0
    %81 = vmatpush.msra.mxu0 0.0
    %82 = vmatpush.msra.mxu0 0.0
    %83 = vmatpush.msra.mxu0 0.0
    %84 = vmatpush.msra.mxu0 0.0
    %85 = vmatpush.msra.mxu0 0.0
    %86 = vmatpush.msra.mxu0 0.0
    %87 = vmatpush.msra.mxu0 0.0
    %88 = vmatpush.msra.mxu0 0.0
    %89 = vmatpush.msra.mxu0 0.0
    %90 = vmatpush.msra.mxu0 0.0
    %91 = vmatpush.msra.mxu0 0.0
    %92 = vmatpush.msra.mxu0 %v75
    %93 = vmatpush.msra.mxu0 %v74
    %94 = vmatpush.msra.mxu0 %v73
    %95 = vmatpush.msra.mxu0 %v72
    %96 = vmatmul.f32.gmra.mxu0 %v78
    %v97 = vpop.f32.mrf.mxu0
    %v98 = vadd.f32 0.0, %v97
    %99 = vdwg.mxu0
    %v100 = vmul.f32 %v98, 0.35355338
    %v101 = vld [vmem:[%s6] sm:$0xff]
    %v102 = vld [vmem:[%s6 + $0x8] sm:$0xff]
    %v103 = vld [vmem:[%s6 + $0x10] sm:$0xff]
    %v104 = vld [vmem:[%s6 + $0x18] sm:$0xff]
    %v106 = vsel %vm76, %v71, 0
    %108 = vmatpush.msra.mxu0 0.0
    %109 = vmatpush.msra.mxu0 0.0
    %110 = vmatpush.msra.mxu0 0.0
    %111 = vmatpush.msra.mxu0 0.0
    %112 = vmatpush.msra.mxu0 0.0
    %113 = vmatpush.msra.mxu0 0.0
    %114 = vmatpush.msra.mxu0 0.0
    %115 = vmatpush.msra.mxu0 0.0
    %116 = vmatpush.msra.mxu0 0.0
    %117 = vmatpush.msra.mxu0 0.0
    %118 = vmatpush.msra.mxu0 0.0
    %119 = vmatpush.msra.mxu0 0.0
    %120 = vmatpush.msra.mxu0 %v104
    %121 = vmatpush.msra.mxu0 %v103
    %122 = vmatpush.msra.mxu0 %v102
    %123 = vmatpush.msra.mxu0 %v101
    %124 = vmatmul.f32.gmra.mxu0 %v106
    %v125 = vpop.f32.mrf.mxu0
    %v126 = vadd.f32 0.0, %v125
    %127 = vdwg.mxu0
    %v128 = vld [vmem:[%s7] sm:$0xff]
    %v129 = vld [vmem:[%s7 + $0x8] sm:$0xff]
    %v130 = vld [vmem:[%s7 + $0x10] sm:$0xff]
    %v131 = vld [vmem:[%s7 + $0x18] sm:$0xff]
    %v133 = vsel %vm76, %v69, 0
    %135 = vmatpush.msra.mxu0 0.0
    %136 = vmatpush.msra.mxu0 0.0
    %137 = vmatpush.msra.mxu0 0.0
    %138 = vmatpush.msra.mxu0 0.0
    %139 = vmatpush.msra.mxu0 0.0
    %140 = vmatpush.msra.mxu0 0.0
    %141 = vmatpush.msra.mxu0 0.0
    %142 = vmatpush.msra.mxu0 0.0
    %143 = vmatpush.msra.mxu0 0.0
    %144 = vmatpush.msra.mxu0 0.0
    %145 = vmatpush.msra.mxu0 0.0
    %146 = vmatpush.msra.mxu0 0.0
    %147 = vmatpush.msra.mxu0 %v131
    %148 = vmatpush.msra.mxu0 %v130
    %149 = vmatpush.msra.mxu0 %v129
    %150 = vmatpush.msra.mxu0 %v128
    %151 = vmatmul.f32.gmra.mxu0 %v133
    %v152 = vpop.f32.mrf.mxu0
    %v153 = vadd.f32 0.0, %v152
    %154 = vdwg.mxu0
    %vm155 = vcmask 64512
    %v157 = vsel %vm155, %v100, 0
    %v160 = vsel %vm155, %v126, 0
    %162 = vmatpush.xpose.msra.mxu0 0.0
    %163 = vmatpush.xpose.msra.mxu0 0.0
    %164 = vmatpush.xpose.msra.mxu0 0.0
    %165 = vmatpush.xpose.msra.mxu0 0.0
    %166 = vmatpush.xpose.msra.mxu0 0.0
    %167 = vmatpush.xpose.msra.mxu0 0.0
    %168 = vmatpush.xpose.msra.mxu0 0.0
    %169 = vmatpush.xpose.msra.mxu0 0.0
    %170 = vmatpush.xpose.msra.mxu0 0.0
    %171 = vmatpush.xpose.msra.mxu0 0.0
    %172 = vmatpush.xpose.msra.mxu0 0.0
    %173 = vmatpush.xpose.msra.mxu0 0.0
    %174 = vmatpush.xpose.msra.mxu0 0.0
    %175 = vmatpush.xpose.msra.mxu0 0.0
    %176 = vmatpush.xpose.msra.mxu0 0.0
    %177 = vmatpush.xpose.msra.mxu0 %v160
    %178 = vmatmul.f32.gmra.mxu0 %v157
    %v179 = vpop.f32.mrf.mxu0
    %v180 = vadd.f32 0.0, %v179
    %181 = vdwg.mxu0
    %v182 = vsel %vm155, %v180, -inf
    %183 = vmax.xlane.f32.xlu0 %v182
    %v184 = vpop.xlane.xlu0 %183
    %v185 = vsub.f32 %v180, %v184
    %v186 = vmul.f32 %v185, 1.442695
    %v187 = vpow.pop %v186
    %v188 = vsel %vm155, %v187, 0.0
    %189 = vadd.xlane.f32.xlu0 %v188
    %v190 = vpop.xlane.xlu0 %189
    %v191 = vrcp.pop %v190
    %v192 = vmul.f32 %v187, %v191
    %v194 = vsel %vm155, %v192, 0
    %196 = vmatpush.msra.mxu0 0.0
    %197 = vmatpush.msra.mxu0 0.0
    %198 = vmatpush.msra.mxu0 0.0
    %199 = vmatpush.msra.mxu0 0.0
    %200 = vmatpush.msra.mxu0 0.0
    %201 = vmatpush.msra.mxu0 0.0
    %202 = vmatpush.msra.mxu0 0.0
    %203 = vmatpush.msra.mxu0 0.0
    %204 = vmatpush.msra.mxu0 0.0
    %205 = vmatpush.msra.mxu0 0.0
    %206 = vmatpush.msra.mxu0 0.0
    %207 = vmatpush.msra.mxu0 0.0
    %208 = vmatpush.msra.mxu0 0.0
    %209 = vmatpush.msra.mxu0 0.0
    %210 = vmatpush.msra.mxu0 0.0
    %211 = vmatpush.msra.mxu0 %v153
    %212 = vmatmul.f32.gmra.mxu0 %v194
    %v213 = vpop.f32.mrf.mxu0
    %v214 = vadd.f32 0.0, %v213
    %215 = vdwg.mxu0
    %216 = vrot.lane.b32.xlu0 %v100, 120
    %v217 = vpop.permute.xlu0 %216
    %218 = vrot.lane.b32.xlu0 %v126, 120
    %v219 = vpop.permute.xlu0 %218
    %v220 = vsel %vm155, %v217, 0
    %v222 = vsel %vm155, %v219, 0
    %224 = vmatpush.xpose.msra.mxu0 0.0
    %225 = vmatpush.xpose.msra.mxu0 0.0
    %226 = vmatpush.xpose.msra.mxu0 0.0
    %227 = vmatpush.xpose.msra.mxu0 0.0
    %228 = vmatpush.xpose.msra.mxu0 0.0
    %229 = vmatpush.xpose.msra.mxu0 0.0
    %230 = vmatpush.xpose.msra.mxu0 0.0
    %231 = vmatpush.xpose.msra.mxu0 0.0
    %232 = vmatpush.xpose.msra.mxu0 0.0
    %233 = vmatpush.xpose.msra.mxu0 0.0
    %234 = vmatpush.xpose.msra.mxu0 0.0
    %235 = vmatpush.xpose.msra.mxu0 0.0
    %236 = vmatpush.xpose.msra.mxu0 0.0
    %237 = vmatpush.xpose.msra.mxu0 0.0
    %238 = vmatpush.xpose.msra.mxu0 0.0
    %239 = vmatpush.xpose.msra.mxu0 %v222
    %240 = vmatmul.f32.gmra.mxu0 %v220
    %v241 = vpop.f32.mrf.mxu0
    %v242 = vadd.f32 0.0, %v241
    %243 = vdwg.mxu0
    %v244 = vsel %vm155, %v242, -inf
    %245 = vmax.xlane.f32.xlu0 %v244
    %v246 = vpop.xlane.xlu0 %245
    %v247 = vsub.f32 %v242, %v246
    %v248 = vmul.f32 %v247, 1.442695
    %v249 = vpow.pop %v248
    %v250 = vsel %vm155, %v249, 0.0
    %251 = vadd.xlane.f32.xlu0 %v250
    %v252 = vpop.xlane.xlu0 %251
    %v253 = vrcp.pop %v252
    %v254 = vmul.f32 %v249, %v253
    %256 = vrot.lane.b32.xlu0 %v153, 120
    %v257 = vpop.permute.xlu0 %256
    %v260 = vsel %vm155, %v254, 0
    %262 = vmatpush.msra.mxu0 0.0
    %263 = vmatpush.msra.mxu0 0.0
    %264 = vmatpush.msra.mxu0 0.0
    %265 = vmatpush.msra.mxu0 0.0
    %266 = vmatpush.msra.mxu0 0.0
    %267 = vmatpush.msra.mxu0 0.0
    %268 = vmatpush.msra.mxu0 0.0
    %269 = vmatpush.msra.mxu0 0.0
    %270 = vmatpush.msra.mxu0 0.0
    %271 = vmatpush.msra.mxu0 0.0
    %272 = vmatpush.msra.mxu0 0.0
    %273 = vmatpush.msra.mxu0 0.0
    %274 = vmatpush.msra.mxu0 0.0
    %275 = vmatpush.msra.mxu0 0.0
    %276 = vmatpush.msra.mxu0 0.0
    %277 = vmatpush.msra.mxu0 %v257
    %278 = vmatmul.f32.gmra.mxu0 %v260
    %v279 = vpop.f32.mrf.mxu0
    %v280 = vadd.f32 0.0, %v279
    %281 = vdwg.mxu0
    %282 = vrot.lane.b32.xlu0 %v100, 112
    %v283 = vpop.permute.xlu0 %282
    %284 = vrot.lane.b32.xlu0 %v126, 112
    %v285 = vpop.permute.xlu0 %284
    %v286 = vsel %vm155, %v283, 0
    %v288 = vsel %vm155, %v285, 0
    %290 = vmatpush.xpose.msra.mxu0 0.0
    %291 = vmatpush.xpose.msra.mxu0 0.0
    %292 = vmatpush.xpose.msra.mxu0 0.0
    %293 = vmatpush.xpose.msra.mxu0 0.0
    %294 = vmatpush.xpose.msra.mxu0 0.0
    %295 = vmatpush.xpose.msra.mxu0 0.0
    %296 = vmatpush.xpose.msra.mxu0 0.0
    %297 = vmatpush.xpose.msra.mxu0 0.0
    %298 = vmatpush.xpose.msra.mxu0 0.0
    %299 = vmatpush.xpose.msra.mxu0 0.0
    %300 = vmatpush.xpose.msra.mxu0 0.0
    %301 = vmatpush.xpose.msra.mxu0 0.0
    %302 = vmatpush.xpose.msra.mxu0 0.0
    %303 = vmatpush.xpose.msra.mxu0 0.0
    %304 = vmatpush.xpose.msra.mxu0 0.0
    %305 = vmatpush.xpose.msra.mxu0 %v288
    %306 = vmatmul.f32.gmra.mxu0 %v286
    %v307 = vpop.f32.mrf.mxu0
    %v308 = vadd.f32 0.0, %v307
    %309 = vdwg.mxu0
    %v310 = vsel %vm155, %v308, -inf
    %311 = vmax.xlane.f32.xlu0 %v310
    %v312 = vpop.xlane.xlu0 %311
    %v313 = vsub.f32 %v308, %v312
    %v314 = vmul.f32 %v313, 1.442695
    %v315 = vpow.pop %v314
    %v316 = vsel %vm155, %v315, 0.0
    %317 = vadd.xlane.f32.xlu0 %v316
    %v318 = vpop.xlane.xlu0 %317
    %v319 = vrcp.pop %v318
    %v320 = vmul.f32 %v315, %v319
    %321 = vrot.lane.b32.xlu0 %v153, 112
    %v322 = vpop.permute.xlu0 %321
    %v325 = vsel %vm155, %v320, 0
    %327 = vmatpush.msra.mxu0 0.0
    %328 = vmatpush.msra.mxu0 0.0
    %329 = vmatpush.msra.mxu0 0.0
    %330 = vmatpush.msra.mxu0 0.0
    %331 = vmatpush.msra.mxu0 0.0
    %332 = vmatpush.msra.mxu0 0.0
    %333 = vmatpush.msra.mxu0 0.0
    %334 = vmatpush.msra.mxu0 0.0
    %335 = vmatpush.msra.mxu0 0.0
    %336 = vmatpush.msra.mxu0 0.0
    %337 = vmatpush.msra.mxu0 0.0
    %338 = vmatpush.msra.mxu0 0.0
    %339 = vmatpush.msra.mxu0 0.0
    %340 = vmatpush.msra.mxu0 0.0
    %341 = vmatpush.msra.mxu0 0.0
    %342 = vmatpush.msra.mxu0 %v322
    %343 = vmatmul.f32.gmra.mxu0 %v325
    %v344 = vpop.f32.mrf.mxu0
    %v345 = vadd.f32 0.0, %v344
    %346 = vdwg.mxu0
    %347 = vrot.lane.b32.xlu0 %v100, 104
    %v348 = vpop.permute.xlu0 %347
    %349 = vrot.lane.b32.xlu0 %v126, 104
    %v350 = vpop.permute.xlu0 %349
    %v351 = vsel %vm155, %v348, 0
    %v353 = vsel %vm155, %v350, 0
    %355 = vmatpush.xpose.msra.mxu0 0.0
    %356 = vmatpush.xpose.msra.mxu0 0.0
    %357 = vmatpush.xpose.msra.mxu0 0.0
    %358 = vmatpush.xpose.msra.mxu0 0.0
    %359 = vmatpush.xpose.msra.mxu0 0.0
    %360 = vmatpush.xpose.msra.mxu0 0.0
    %361 = vmatpush.xpose.msra.mxu0 0.0
    %362 = vmatpush.xpose.msra.mxu0 0.0
    %363 = vmatpush.xpose.msra.mxu0 0.0
    %364 = vmatpush.xpose.msra.mxu0 0.0
    %365 = vmatpush.xpose.msra.mxu0 0.0
    %366 = vmatpush.xpose.msra.mxu0 0.0
    %367 = vmatpush.xpose.msra.mxu0 0.0
    %368 = vmatpush.xpose.msra.mxu0 0.0
    %369 = vmatpush.xpose.msra.mxu0 0.0
    %370 = vmatpush.xpose.msra.mxu0 %v353
    %371 = vmatmul.f32.gmra.mxu0 %v351
    %v372 = vpop.f32.mrf.mxu0
    %v373 = vadd.f32 0.0, %v372
    %374 = vdwg.mxu0
    %v375 = vsel %vm155, %v373, -inf
    %376 = vmax.xlane.f32.xlu0 %v375
    %v377 = vpop.xlane.xlu0 %376
    %v378 = vsub.f32 %v373, %v377
    %v379 = vmul.f32 %v378, 1.442695
    %v380 = vpow.pop %v379
    %v381 = vsel %vm155, %v380, 0.0
    %382 = vadd.xlane.f32.xlu0 %v381
    %v383 = vpop.xlane.xlu0 %382
    %v384 = vrcp.pop %v383
    %v385 = vmul.f32 %v380, %v384
    %386 = vrot.lane.b32.xlu0 %v153, 104
    %v387 = vpop.permute.xlu0 %386
    %v390 = vsel %vm155, %v385, 0
    %392 = vmatpush.msra.mxu0 0.0
    %393 = vmatpush.msra.mxu0 0.0
    %394 = vmatpush.msra.mxu0 0.0
    %395 = vmatpush.msra.mxu0 0.0
    %396 = vmatpush.msra.mxu0 0.0
    %397 = vmatpush.msra.mxu0 0.0
    %398 = vmatpush.msra.mxu0 0.0
    %399 = vmatpush.msra.mxu0 0.0
    %400 = vmatpush.msra.mxu0 0.0
    %401 = vmatpush.msra.mxu0 0.0
    %402 = vmatpush.msra.mxu0 0.0
    %403 = vmatpush.msra.mxu0 0.0
    %404 = vmatpush.msra.mxu0 0.0
    %405 = vmatpush.msra.mxu0 0.0
    %406 = vmatpush.msra.mxu0 0.0
    %407 = vmatpush.msra.mxu0 %v387
    %408 = vmatmul.f32.gmra.mxu0 %v390
    %v409 = vpop.f32.mrf.mxu0
    %v410 = vadd.f32 0.0, %v409
    %411 = vdwg.mxu0
    %413 = vrot.lane.b32.xlu0 %v280, 8
    %v414 = vpop.permute.xlu0 %413
    %417 = vrot.lane.b32.xlu0 %v345, 16
    %v418 = vpop.permute.xlu0 %417
    %421 = vrot.lane.b32.xlu0 %v410, 24
    %v422 = vpop.permute.xlu0 %421
    %v424 = vsel %vm155, %v214, %v414
    %vm425 = vcmask 130048
    %v426 = vsel %vm425, %v424, %v418
    %vm427 = vcmask 195584
    %v428 = vsel %vm427, %v426, %v422
    %v429 = vld [vmem:[%s8] sm:$0xff]
    %v430 = vld [vmem:[%s8 + $0x8] sm:$0xff]
    %v431 = vld [vmem:[%s8 + $0x10] sm:$0xff]
    %v432 = vld [vmem:[%s8 + $0x18] sm:$0xff]
    %v434 = vsel %vm76, %v428, 0
    %436 = vmatpush.msra.mxu0 0.0
    %437 = vmatpush.msra.mxu0 0.0
    %438 = vmatpush.msra.mxu0 0.0
    %439 = vmatpush.msra.mxu0 0.0
    %440 = vmatpush.msra.mxu0 0.0
    %441 = vmatpush.msra.mxu0 0.0
    %442 = vmatpush.msra.mxu0 0.0
    %443 = vmatpush.msra.mxu0 0.0
    %444 = vmatpush.msra.mxu0 0.0
    %445 = vmatpush.msra.mxu0 0.0
    %446 = vmatpush.msra.mxu0 0.0
    %447 = vmatpush.msra.mxu0 0.0
    %448 = vmatpush.msra.mxu0 %v432
    %449 = vmatpush.msra.mxu0 %v431
    %450 = vmatpush.msra.mxu0 %v430
    %451 = vmatpush.msra.mxu0 %v429
    %452 = vmatmul.f32.gmra.mxu0 %v434
    %v453 = vpop.f32.mrf.mxu0
    %v454 = vadd.f32 0.0, %v453
    %455 = vdwg.mxu0
    %v456 = vld [vmem:[%s4] sm:$0xff]
    %v457 = vld [vmem:[%s4 + $0x8] sm:$0xff]
    %v458 = vadd.f32 %v454, %v456
    %v459 = vadd.f32 %v454, %v457
    %v460 = vsel %vm76, %v458, 0.0
    %461 = vadd.xlane.f32.xlu0 %v460
    %v462 = vpop.xlane.xlu0 %461
    %v463 = vsel %vm76, %v459, 0.0
    %464 = vadd.xlane.f32.xlu0 %v463
    %v465 = vpop.xlane.xlu0 %464
    %v466 = vrcp.pop 32.0
    %v467 = vmul.f32 32.0, %v466
    %v468 = vsub.f32 1.0, %v467
    %v469 = vmul.f32 %v466, %v468
    %v470 = vadd.f32 %v466, %v469
    %vm471 = vweird.f32 %v466
    %v472 = vsel %vm471, %v466, %v470
    %v473 = vmul.f32 %v462, %v472
    %v474 = vmul.f32 %v465, %v472
    %v475 = vsub.f32 %v458, %v473
    %v476 = vsub.f32 %v459, %v474
    %v477 = vmul.f32 %v475, %v475
    %v478 = vmul.f32 %v476, %v476
    %v479 = vsel %vm76, %v477, 0.0
    %480 = vadd.xlane.f32.xlu0 %v479
    %v481 = vpop.xlane.xlu0 %480
    %v482 = vsel %vm76, %v478, 0.0
    %483 = vadd.xlane.f32.xlu0 %v482
    %v484 = vpop.xlane.xlu0 %483
    %v485 = vmul.f32 %v481, %v472
    %v486 = vmul.f32 %v484, %v472
    %v487 = vadd.f32 %v485, 1e-05
    %v488 = vadd.f32 %v486, 1e-05
    %v489 = vrsqrt.pop %v487
    %v490 = vmul.f32 %v489, %v487
    %v491 = vmul.f32 %v490, %v489
    %v492 = vmul.f32 0.5, %v491
    %v493 = vsub.f32 1.5, %v492
    %v494 = vmul.f32 %v489, %v493
    %vm495 = vweird.f32 %v487
    %vm496 = vweird.f32 %v489
    %vm497 = vmor %vm495, %vm496
    %v498 = vsel %vm497, %v489, %v494
    %v499 = vrsqrt.pop %v488
    %v500 = vmul.f32 %v499, %v488
    %v501 = vmul.f32 %v500, %v499
    %v502 = vmul.f32 0.5, %v501
    %v503 = vsub.f32 1.5, %v502
    %v504 = vmul.f32 %v499, %v503
    %vm505 = vweird.f32 %v488
    %vm506 = vweird.f32 %v499
    %vm507 = vmor %vm505, %vm506
    %v508 = vsel %vm507, %v499, %v504
    %v509 = vmul.f32 %v475, %v498
    %v510 = vmul.f32 %v476, %v508
    %v511 = vld [vmem:[#allocation2] sm:$0x1]
    %v513 = vperm.slane %v511, 0
    %v515 = vmul.f32 %v509, %v513
    %v516 = vmul.f32 %v510, %v513
    %v517 = vld [vmem:[#allocation4] sm:$0x1]
    %v519 = vperm.slane %v517, 0
    %v521 = vadd.f32 %v515, %v519
    %v522 = vadd.f32 %v516, %v519
    %523 = vst.msk [vmem:[%s11] sm:$0xff] %vm76, %v521
    %524 = vst.msk [vmem:[%s11 + $0x8] sm:$0xff] %vm76, %v522
    // Predicated region
    $region54: #{transformer_forward.17} parent=1 // pred_check
      _
    $region55: #{transformer_forward.17} parent=1 // pred_check_branch
      %526 = sbr.rel (0) target = $region57
    $region56: #{transformer_forward.17} parent=1 // pred_region
      _
    $region57: #{transformer_forward.17} parent=1 // pred_fallthru
      _
    // Predicated region
    $region58: #{transformer_forward.17} parent=1 // pred_check
      _
    $region59: #{transformer_forward.17} parent=1 // pred_check_branch
      %528 = sbr.rel (0) target = $region61
    $region60: #{transformer_forward.17} parent=1 // pred_region
      _
    $region61: #{transformer_forward.17} parent=1 // pred_fallthru
      _
    %529 = vsyncpa [#allocation3], 1
    %530 = vsyncpa [#allocation5], 1

// kernel: transformer_forward.18
$region0: #{transformer_forward.18}
  #allocation0 [shape = 'u32[]', space=smem, size = 0x4, offset = 0x4, fixed_abs, tag = 'smem constant byte address 0x4 - core index']
  #allocation1 [shape = 'u32[72,128]{1,0:T(1,128)}', space=vmem, size = 0x9000, scoped, tag = 'internal scratch']
  %s0 = inlined_call_operand.vmem [shape: f32[8,32], index: 0, kind: input, shape index: {}]
  %s1 = inlined_call_operand.vmem [shape: f32[8,32], index: 1, kind: input, shape index: {}]
  %s2 = inlined_call_operand.vmem [shape: f32[16,32], index: 2, kind: input, shape index: {}]
  %s3 = inlined_call_operand.vmem [shape: f32[16,32], index: 3, kind: input, shape index: {}]
  %s4 = inlined_call_operand.vmem [shape: f32[2,8,32], index: 4, kind: input, shape index: {}]
  %s5 = inlined_call_operand.vmem [shape: f32[32,32], index: 5, kind: input, shape index: {}]
  %s6 = inlined_call_operand.hbm [shape: f32[32,32], index: 6, kind: input, shape index: {}]
  %s7 = inlined_call_operand.hbm [shape: f32[32,32], index: 7, kind: input, shape index: {}]
  %s8 = inlined_call_operand.hbm [shape: f32[32,32], index: 8, kind: input, shape index: {}]
  %s9 = inlined_call_operand.hbm [shape: f32[1,32], index: 9, kind: input, shape index: {}]
  %s10 = inlined_call_operand.hbm [shape: f32[1,32], index: 10, kind: input, shape index: {}]
  %s11 = inlined_call_operand.vmem [shape: f32[2,8,32], index: 11, kind: output, shape index: {}]
  %s12 = sld [smem:[#allocation0]]
  $region74: #{transformer_forward.18} parent=0
    _
  %s14 = ssub.s32 1, %s12
  %s15 = scalar_select 0, %s14, %s12
  $region1: #{transformer_forward.18} parent=0
    #allocation2 [shape = 'u8[16384]{0}', space=vmem, size = 0x4000, scoped, tag = 'input window, operand 6, single buffered']
    #allocation3 [shape = 's32[1]{0}', space=sflag, size = 0x4, scoped, tag = 'scoped memory for transformer_forward.18']
    #allocation4 [shape = 'u8[16384]{0}', space=vmem, size = 0x4000, scoped, tag = 'input window, operand 7, single buffered']
    #allocation5 [shape = 's32[1]{0}', space=sflag, size = 0x4, scoped, tag = 'scoped memory for transformer_forward.18']
    #allocation6 [shape = 'u8[16384]{0}', space=vmem, size = 0x4000, scoped, tag = 'input window, operand 8, single buffered']
    #allocation7 [shape = 'u8[512]{0}', space=vmem, size = 0x400, scoped, tag = 'input window, operand 9, single buffered']
    #allocation8 [shape = 's32[1]{0}', space=sflag, size = 0x4, scoped, tag = 'scoped memory for transformer_forward.18']
    #allocation9 [shape = 'u8[512]{0}', space=vmem, size = 0x400, scoped, tag = 'input window, operand 10, single buffered']
    %16 = vsyncpa [#allocation3], 0
    %17 = vsyncpa [#allocation5], 0
    %18 = vsyncpa [#allocation8], 0
    // Predicated region
    $region2: #{transformer_forward.18} parent=1 // pred_check
      _
    $region3: #{transformer_forward.18} parent=1 // pred_check_branch
      %20 = sbr.rel (0) target = $region5
    $region4: #{transformer_forward.18} parent=1 // pred_region
      _
    $region5: #{transformer_forward.18} parent=1 // pred_fallthru
      _
    // Predicated region
    $region6: #{transformer_forward.18} parent=1 // pred_check
      _
    $region7: #{transformer_forward.18} parent=1 // pred_check_branch
      %22 = sbr.rel (0) target = $region9
    $region8: #{transformer_forward.18} parent=1 // pred_region
      _
    $region9: #{transformer_forward.18} parent=1 // pred_fallthru
      _
    // Predicated region
    $region10: #{transformer_forward.18} parent=1 // pred_check
      _
    $region11: #{transformer_forward.18} parent=1 // pred_check_branch
      %24 = sbr.rel (0) target = $region13
    $region12: #{transformer_forward.18} parent=1 // pred_region
      _
    $region13: #{transformer_forward.18} parent=1 // pred_fallthru
      _
    // Predicated region
    $region14: #{transformer_forward.18} parent=1 // pred_check
      _
    $region15: #{transformer_forward.18} parent=1 // pred_check_branch
      %26 = sbr.rel (0) target = $region17
    $region16: #{transformer_forward.18} parent=1 // pred_region
      _
    $region17: #{transformer_forward.18} parent=1 // pred_fallthru
      _
    // Predicated region
    $region18: #{transformer_forward.18} parent=1 // pred_check
      _
    $region19: #{transformer_forward.18} parent=1 // pred_check_branch
      %28 = sbr.rel (0) target = $region21
    $region20: #{transformer_forward.18} parent=1 // pred_region
      _
    $region21: #{transformer_forward.18} parent=1 // pred_fallthru
      _
    // Predicated region
    $region22: #{transformer_forward.18} parent=1 // pred_check
      _
    $region23: #{transformer_forward.18} parent=1 // pred_check_branch
      %30 = sbr.rel (0) target = $region25
    $region24: #{transformer_forward.18} parent=1 // pred_region
      _
    $region25: #{transformer_forward.18} parent=1 // pred_fallthru
      _
    // Predicated region
    $region26: #{transformer_forward.18} parent=1 // pred_check
      _
    $region27: #{transformer_forward.18} parent=1 // pred_check_branch
      %32 = sbr.rel (0) target = $region29
    $region28: #{transformer_forward.18} parent=1 // pred_region
      %34 = vsyncadd [#allocation3], 0
      %s35 = sshll.u32 %s6, 4
      %s36 = int_to_ptr.hbm [resolvable:$true] %s35
      %s37 = sshll.u32 [#allocation2], 4
      %s38 = int_to_ptr.vmem [resolvable:$true] %s37
      %43 = dma.hbm_to_vmem [thread:$0]  %s36, 512, %s38, [#allocation3], 128, 128, 8
    $region29: #{transformer_forward.18} parent=1 // pred_fallthru
      _
    // Predicated region
    $region30: #{transformer_forward.18} parent=1 // pred_check
      _
    $region31: #{transformer_forward.18} parent=1 // pred_check_branch
      %45 = sbr.rel (0) target = $region33
    $region32: #{transformer_forward.18} parent=1 // pred_region
      %47 = vsyncadd [#allocation5], 0
      %s48 = sshll.u32 %s7, 4
      %s49 = int_to_ptr.hbm [resolvable:$true] %s48
      %s50 = sshll.u32 [#allocation4], 4
      %s51 = int_to_ptr.vmem [resolvable:$true] %s50
      %56 = dma.hbm_to_vmem [thread:$0]  %s49, 512, %s51, [#allocation5], 128, 128, 8
    $region33: #{transformer_forward.18} parent=1 // pred_fallthru
      _
    // Predicated region
    $region34: #{transformer_forward.18} parent=1 // pred_check
      _
    $region35: #{transformer_forward.18} parent=1 // pred_check_branch
      %58 = sbr.rel (0) target = $region37
    $region36: #{transformer_forward.18} parent=1 // pred_region
      %60 = vsyncadd [#allocation5], 0
      %s61 = sshll.u32 %s8, 4
      %s62 = int_to_ptr.hbm [resolvable:$true] %s61
      %s63 = sshll.u32 [#allocation6], 4
      %s64 = int_to_ptr.vmem [resolvable:$true] %s63
      %69 = dma.hbm_to_vmem [thread:$0]  %s62, 512, %s64, [#allocation5], 128, 128, 8
    $region37: #{transformer_forward.18} parent=1 // pred_fallthru
      _
    // Predicated region
    $region38: #{transformer_forward.18} parent=1 // pred_check
      _
    $region39: #{transformer_forward.18} parent=1 // pred_check_branch
      %71 = sbr.rel (0) target = $region41
    $region40: #{transformer_forward.18} parent=1 // pred_region
      %73 = vsyncadd [#allocation8], 0
      %s75 = sshll.u32 %s9, 4
      %s76 = int_to_ptr.hbm [resolvable:$true] %s75
      %s77 = sshll.u32 [#allocation7], 4
      %s78 = int_to_ptr.vmem [resolvable:$true] %s77
      %80 = dma.hbm_to_vmem [thread:$0]  %s76, 16, %s78, [#allocation8]
    $region41: #{transformer_forward.18} parent=1 // pred_fallthru
      _
    // Predicated region
    $region42: #{transformer_forward.18} parent=1 // pred_check
      _
    $region43: #{transformer_forward.18} parent=1 // pred_check_branch
      %82 = sbr.rel (0) target = $region45
    $region44: #{transformer_forward.18} parent=1 // pred_region
      %84 = vsyncadd [#allocation8], 0
      %s86 = sshll.u32 %s10, 4
      %s87 = int_to_ptr.hbm [resolvable:$true] %s86
      %s88 = sshll.u32 [#allocation9], 4
      %s89 = int_to_ptr.vmem [resolvable:$true] %s88
      %91 = dma.hbm_to_vmem [thread:$0]  %s87, 16, %s89, [#allocation8]
    $region45: #{transformer_forward.18} parent=1 // pred_fallthru
      _
    // Predicated region
    $region46: #{transformer_forward.18} parent=1 // pred_check
      _
    $region47: #{transformer_forward.18} parent=1 // pred_check_branch
      %93 = sbr.rel (0) target = $region49
    $region48: #{transformer_forward.18} parent=1 // pred_region
      %95 = dma.done [#allocation3], 512
    $region49: #{transformer_forward.18} parent=1 // pred_fallthru
      _
    // Predicated region
    $region50: #{transformer_forward.18} parent=1 // pred_check
      _
    $region51: #{transformer_forward.18} parent=1 // pred_check_branch
      %97 = sbr.rel (0) target = $region53
    $region52: #{transformer_forward.18} parent=1 // pred_region
      %99 = dma.done [#allocation5], 512
    $region53: #{transformer_forward.18} parent=1 // pred_fallthru
      _
    // Predicated region
    $region54: #{transformer_forward.18} parent=1 // pred_check
      _
    $region55: #{transformer_forward.18} parent=1 // pred_check_branch
      %101 = sbr.rel (0) target = $region57
    $region56: #{transformer_forward.18} parent=1 // pred_region
      %103 = dma.done [#allocation5], 512
    $region57: #{transformer_forward.18} parent=1 // pred_fallthru
      _
    // Predicated region
    $region58: #{transformer_forward.18} parent=1 // pred_check
      _
    $region59: #{transformer_forward.18} parent=1 // pred_check_branch
      %105 = sbr.rel (0) target = $region61
    $region60: #{transformer_forward.18} parent=1 // pred_region
      %107 = dma.done [#allocation8], 16
    $region61: #{transformer_forward.18} parent=1 // pred_fallthru
      _
    // Predicated region
    $region62: #{transformer_forward.18} parent=1 // pred_check
      _
    $region63: #{transformer_forward.18} parent=1 // pred_check_branch
      %109 = sbr.rel (0) target = $region65
    $region64: #{transformer_forward.18} parent=1 // pred_region
      %111 = dma.done [#allocation8], 16
    $region65: #{transformer_forward.18} parent=1 // pred_fallthru
      _
    %v112 = vld [vmem:[%s0] sm:$0xff]
    %v113 = vld [vmem:[%s1] sm:$0xff]
    %v114 = vadd.f32 %v112, %v113
    %v115 = vld [vmem:[%s2] sm:$0xff]
    %v116 = vld [vmem:[%s2 + $0x8] sm:$0xff]
    %v117 = vld [vmem:[%s3] sm:$0xff]
    %v118 = vld [vmem:[%s3 + $0x8] sm:$0xff]
    %v119 = vadd.f32 %v115, %v117
    %v120 = vadd.f32 %v116, %v118
    %v121 = vld [vmem:[%s5] sm:$0xff]
    %v122 = vld [vmem:[%s5 + $0x8] sm:$0xff]
    %v123 = vld [vmem:[%s5 + $0x10] sm:$0xff]
    %v124 = vld [vmem:[%s5 + $0x18] sm:$0xff]
    %vm125 = vcmask 261120
    %v127 = vsel %vm125, %v114, 0
    %129 = vmatpush.msra.mxu0 0.0
    %130 = vmatpush.msra.mxu0 0.0
    %131 = vmatpush.msra.mxu0 0.0
    %132 = vmatpush.msra.mxu0 0.0
    %133 = vmatpush.msra.mxu0 0.0
    %134 = vmatpush.msra.mxu0 0.0
    %135 = vmatpush.msra.mxu0 0.0
    %136 = vmatpush.msra.mxu0 0.0
    %137 = vmatpush.msra.mxu0 0.0
    %138 = vmatpush.msra.mxu0 0.0
    %139 = vmatpush.msra.mxu0 0.0
    %140 = vmatpush.msra.mxu0 0.0
    %141 = vmatpush.msra.mxu0 %v124
    %142 = vmatpush.msra.mxu0 %v123
    %143 = vmatpush.msra.mxu0 %v122
    %144 = vmatpush.msra.mxu0 %v121
    %145 = vmatmul.f32.gmra.mxu0 %v127
    %v146 = vpop.f32.mrf.mxu0
    %v147 = vadd.f32 0.0, %v146
    %148 = vdwg.mxu0
    %v149 = vmul.f32 %v147, 0.35355338
    %v150 = vld [vmem:[#allocation2] sm:$0xff]
    %v151 = vld [vmem:[#allocation2 + $0x8] sm:$0xff]
    %v152 = vld [vmem:[#allocation2 + $0x10] sm:$0xff]
    %v153 = vld [vmem:[#allocation2 + $0x18] sm:$0xff]
    %v155 = vsel %vm125, %v119, 0
    %v158 = vsel %vm125, %v120, 0
    %160 = vmatpush.msra.mxu0 0.0
    %161 = vmatpush.msra.mxu0 0.0
    %162 = vmatpush.msra.mxu0 0.0
    %163 = vmatpush.msra.mxu0 0.0
    %164 = vmatpush.msra.mxu0 0.0
    %165 = vmatpush.msra.mxu0 0.0
    %166 = vmatpush.msra.mxu0 0.0
    %167 = vmatpush.msra.mxu0 0.0
    %168 = vmatpush.msra.mxu0 0.0
    %169 = vmatpush.msra.mxu0 0.0
    %170 = vmatpush.msra.mxu0 0.0
    %171 = vmatpush.msra.mxu0 0.0
    %172 = vmatpush.msra.mxu0 %v153
    %173 = vmatpush.msra.mxu0 %v152
    %174 = vmatpush.msra.mxu0 %v151
    %175 = vmatpush.msra.mxu0 %v150
    %176 = vmatmul.f32.gmra.mxu0 %v155
    %v177 = vpop.f32.mrf.mxu0
    %v178 = vadd.f32 0.0, %v177
    %179 = vmatmul.f32.gmra.mxu0 %v158
    %v180 = vpop.f32.mrf.mxu0
    %v181 = vadd.f32 0.0, %v180
    %182 = vdwg.mxu0
    %v183 = vld [vmem:[#allocation4] sm:$0xff]
    %v184 = vld [vmem:[#allocation4 + $0x8] sm:$0xff]
    %v185 = vld [vmem:[#allocation4 + $0x10] sm:$0xff]
    %v186 = vld [vmem:[#allocation4 + $0x18] sm:$0xff]
    %v188 = vsel %vm125, %v115, 0
    %v191 = vsel %vm125, %v116, 0
    %193 = vmatpush.msra.mxu0 0.0
    %194 = vmatpush.msra.mxu0 0.0
    %195 = vmatpush.msra.mxu0 0.0
    %196 = vmatpush.msra.mxu0 0.0
    %197 = vmatpush.msra.mxu0 0.0
    %198 = vmatpush.msra.mxu0 0.0
    %199 = vmatpush.msra.mxu0 0.0
    %200 = vmatpush.msra.mxu0 0.0
    %201 = vmatpush.msra.mxu0 0.0
    %202 = vmatpush.msra.mxu0 0.0
    %203 = vmatpush.msra.mxu0 0.0
    %204 = vmatpush.msra.mxu0 0.0
    %205 = vmatpush.msra.mxu0 %v186
    %206 = vmatpush.msra.mxu0 %v185
    %207 = vmatpush.msra.mxu0 %v184
    %208 = vmatpush.msra.mxu0 %v183
    %209 = vmatmul.f32.gmra.mxu0 %v188
    %v210 = vpop.f32.mrf.mxu0
    %v211 = vadd.f32 0.0, %v210
    %212 = vmatmul.f32.gmra.mxu0 %v191
    %v213 = vpop.f32.mrf.mxu0
    %v214 = vadd.f32 0.0, %v213
    %215 = vdwg.mxu0
    %vm216 = vcmask 64512
    %v218 = vsel %vm216, %v149, 0
    %v221 = vsel %vm216, %v178, 0
    %v224 = vsel %vm216, %v181, 0
    %226 = vmatpush.xpose.msra.mxu0 0.0
    %227 = vmatpush.xpose.msra.mxu0 0.0
    %228 = vmatpush.xpose.msra.mxu0 0.0
    %229 = vmatpush.xpose.msra.mxu0 0.0
    %230 = vmatpush.xpose.msra.mxu0 0.0
    %231 = vmatpush.xpose.msra.mxu0 0.0
    %232 = vmatpush.xpose.msra.mxu0 0.0
    %233 = vmatpush.xpose.msra.mxu0 0.0
    %234 = vmatpush.xpose.msra.mxu0 0.0
    %235 = vmatpush.xpose.msra.mxu0 0.0
    %236 = vmatpush.xpose.msra.mxu0 0.0
    %237 = vmatpush.xpose.msra.mxu0 0.0
    %238 = vmatpush.xpose.msra.mxu0 0.0
    %239 = vmatpush.xpose.msra.mxu0 0.0
    %240 = vmatpush.xpose.msra.mxu0 %v224
    %241 = vmatpush.xpose.msra.mxu0 %v221
    %242 = vmatmul.f32.gmra.mxu0 %v218
    %v243 = vpop.f32.mrf.mxu0
    %v244 = vadd.f32 0.0, %v243
    %245 = vdwg.mxu0
    %vm246 = vcmask 130048
    %v247 = vsel %vm246, %v244, -inf
    %248 = vmax.xlane.f32.xlu0 %v247
    %v249 = vpop.xlane.xlu0 %248
    %v250 = vsub.f32 %v244, %v249
    %v251 = vmul.f32 %v250, 1.442695
    %v252 = vpow.pop %v251
    %v253 = vsel %vm246, %v252, 0.0
    %254 = vadd.xlane.f32.xlu0 %v253
    %v255 = vpop.xlane.xlu0 %254
    %v256 = vrcp.pop %v255
    %v257 = vmul.f32 %v252, %v256
    %v259 = vsel %vm246, %v257, 0
    %261 = vmatpush.msra.mxu0 0.0
    %262 = vmatpush.msra.mxu0 0.0
    %263 = vmatpush.msra.mxu0 0.0
    %264 = vmatpush.msra.mxu0 0.0
    %265 = vmatpush.msra.mxu0 0.0
    %266 = vmatpush.msra.mxu0 0.0
    %267 = vmatpush.msra.mxu0 0.0
    %268 = vmatpush.msra.mxu0 0.0
    %269 = vmatpush.msra.mxu0 0.0
    %270 = vmatpush.msra.mxu0 0.0
    %271 = vmatpush.msra.mxu0 0.0
    %272 = vmatpush.msra.mxu0 0.0
    %273 = vmatpush.msra.mxu0 0.0
    %274 = vmatpush.msra.mxu0 0.0
    %275 = vmatpush.msra.mxu0 %v214
    %276 = vmatpush.msra.mxu0 %v211
    %277 = vmatmul.f32.gmra.mxu0 %v259
    %v278 = vpop.f32.mrf.mxu0
    %v279 = vadd.f32 0.0, %v278
    %280 = vdwg.mxu0
    %281 = vrot.lane.b32.xlu0 %v149, 120
    %v282 = vpop.permute.xlu0 %281
    %283 = vrot.lane.b32.xlu0 %v178, 120
    %v284 = vpop.permute.xlu0 %283
    %285 = vrot.lane.b32.xlu0 %v181, 120
    %v286 = vpop.permute.xlu0 %285
    %v287 = vsel %vm216, %v282, 0
    %v289 = vsel %vm216, %v284, 0
    %v291 = vsel %vm216, %v286, 0
    %293 = vmatpush.xpose.msra.mxu0 0.0
    %294 = vmatpush.xpose.msra.mxu0 0.0
    %295 = vmatpush.xpose.msra.mxu0 0.0
    %296 = vmatpush.xpose.msra.mxu0 0.0
    %297 = vmatpush.xpose.msra.mxu0 0.0
    %298 = vmatpush.xpose.msra.mxu0 0.0
    %299 = vmatpush.xpose.msra.mxu0 0.0
    %300 = vmatpush.xpose.msra.mxu0 0.0
    %301 = vmatpush.xpose.msra.mxu0 0.0
    %302 = vmatpush.xpose.msra.mxu0 0.0
    %303 = vmatpush.xpose.msra.mxu0 0.0
    %304 = vmatpush.xpose.msra.mxu0 0.0
    %305 = vmatpush.xpose.msra.mxu0 0.0
    %306 = vmatpush.xpose.msra.mxu0 0.0
    %307 = vmatpush.xpose.msra.mxu0 %v291
    %308 = vmatpush.xpose.msra.mxu0 %v289
    %309 = vmatmul.f32.gmra.mxu0 %v287
    %v310 = vpop.f32.mrf.mxu0
    %v311 = vadd.f32 0.0, %v310
    %312 = vdwg.mxu0
    %v313 = vsel %vm246, %v311, -inf
    %314 = vmax.xlane.f32.xlu0 %v313
    %v315 = vpop.xlane.xlu0 %314
    %v316 = vsub.f32 %v311, %v315
    %v317 = vmul.f32 %v316, 1.442695
    %v318 = vpow.pop %v317
    %v319 = vsel %vm246, %v318, 0.0
    %320 = vadd.xlane.f32.xlu0 %v319
    %v321 = vpop.xlane.xlu0 %320
    %v322 = vrcp.pop %v321
    %v323 = vmul.f32 %v318, %v322
    %326 = vrot.lane.b32.xlu0 %v211, 120
    %v327 = vpop.permute.xlu0 %326
    %328 = vrot.lane.b32.xlu0 %v214, 120
    %v329 = vpop.permute.xlu0 %328
    %v333 = vsel %vm246, %v323, 0
    %335 = vmatpush.msra.mxu0 0.0
    %336 = vmatpush.msra.mxu0 0.0
    %337 = vmatpush.msra.mxu0 0.0
    %338 = vmatpush.msra.mxu0 0.0
    %339 = vmatpush.msra.mxu0 0.0
    %340 = vmatpush.msra.mxu0 0.0
    %341 = vmatpush.msra.mxu0 0.0
    %342 = vmatpush.msra.mxu0 0.0
    %343 = vmatpush.msra.mxu0 0.0
    %344 = vmatpush.msra.mxu0 0.0
    %345 = vmatpush.msra.mxu0 0.0
    %346 = vmatpush.msra.mxu0 0.0
    %347 = vmatpush.msra.mxu0 0.0
    %348 = vmatpush.msra.mxu0 0.0
    %349 = vmatpush.msra.mxu0 %v329
    %350 = vmatpush.msra.mxu0 %v327
    %351 = vmatmul.f32.gmra.mxu0 %v333
    %v352 = vpop.f32.mrf.mxu0
    %v353 = vadd.f32 0.0, %v352
    %354 = vdwg.mxu0
    %355 = vrot.lane.b32.xlu0 %v149, 112
    %v356 = vpop.permute.xlu0 %355
    %357 = vrot.lane.b32.xlu0 %v178, 112
    %v358 = vpop.permute.xlu0 %357
    %359 = vrot.lane.b32.xlu0 %v181, 112
    %v360 = vpop.permute.xlu0 %359
    %v361 = vsel %vm216, %v356, 0
    %v363 = vsel %vm216, %v358, 0
    %v365 = vsel %vm216, %v360, 0
    %367 = vmatpush.xpose.msra.mxu0 0.0
    %368 = vmatpush.xpose.msra.mxu0 0.0
    %369 = vmatpush.xpose.msra.mxu0 0.0
    %370 = vmatpush.xpose.msra.mxu0 0.0
    %371 = vmatpush.xpose.msra.mxu0 0.0
    %372 = vmatpush.xpose.msra.mxu0 0.0
    %373 = vmatpush.xpose.msra.mxu0 0.0
    %374 = vmatpush.xpose.msra.mxu0 0.0
    %375 = vmatpush.xpose.msra.mxu0 0.0
    %376 = vmatpush.xpose.msra.mxu0 0.0
    %377 = vmatpush.xpose.msra.mxu0 0.0
    %378 = vmatpush.xpose.msra.mxu0 0.0
    %379 = vmatpush.xpose.msra.mxu0 0.0
    %380 = vmatpush.xpose.msra.mxu0 0.0
    %381 = vmatpush.xpose.msra.mxu0 %v365
    %382 = vmatpush.xpose.msra.mxu0 %v363
    %383 = vmatmul.f32.gmra.mxu0 %v361
    %v384 = vpop.f32.mrf.mxu0
    %v385 = vadd.f32 0.0, %v384
    %386 = vdwg.mxu0
    %v387 = vsel %vm246, %v385, -inf
    %388 = vmax.xlane.f32.xlu0 %v387
    %v389 = vpop.xlane.xlu0 %388
    %v390 = vsub.f32 %v385, %v389
    %v391 = vmul.f32 %v390, 1.442695
    %v392 = vpow.pop %v391
    %v393 = vsel %vm246, %v392, 0.0
    %394 = vadd.xlane.f32.xlu0 %v393
    %v395 = vpop.xlane.xlu0 %394
    %v396 = vrcp.pop %v395
    %v397 = vmul.f32 %v392, %v396
    %398 = vrot.lane.b32.xlu0 %v211, 112
    %v399 = vpop.permute.xlu0 %398
    %400 = vrot.lane.b32.xlu0 %v214, 112
    %v401 = vpop.permute.xlu0 %400
    %v405 = vsel %vm246, %v397, 0
    %407 = vmatpush.msra.mxu0 0.0
    %408 = vmatpush.msra.mxu0 0.0
    %409 = vmatpush.msra.mxu0 0.0
    %410 = vmatpush.msra.mxu0 0.0
    %411 = vmatpush.msra.mxu0 0.0
    %412 = vmatpush.msra.mxu0 0.0
    %413 = vmatpush.msra.mxu0 0.0
    %414 = vmatpush.msra.mxu0 0.0
    %415 = vmatpush.msra.mxu0 0.0
    %416 = vmatpush.msra.mxu0 0.0
    %417 = vmatpush.msra.mxu0 0.0
    %418 = vmatpush.msra.mxu0 0.0
    %419 = vmatpush.msra.mxu0 0.0
    %420 = vmatpush.msra.mxu0 0.0
    %421 = vmatpush.msra.mxu0 %v401
    %422 = vmatpush.msra.mxu0 %v399
    %423 = vmatmul.f32.gmra.mxu0 %v405
    %v424 = vpop.f32.mrf.mxu0
    %v425 = vadd.f32 0.0, %v424
    %426 = vdwg.mxu0
    %427 = vrot.lane.b32.xlu0 %v149, 104
    %v428 = vpop.permute.xlu0 %427
    %429 = vrot.lane.b32.xlu0 %v178, 104
    %v430 = vpop.permute.xlu0 %429
    %431 = vrot.lane.b32.xlu0 %v181, 104
    %v432 = vpop.permute.xlu0 %431
    %v433 = vsel %vm216, %v428, 0
    %v435 = vsel %vm216, %v430, 0
    %v437 = vsel %vm216, %v432, 0
    %439 = vmatpush.xpose.msra.mxu0 0.0
    %440 = vmatpush.xpose.msra.mxu0 0.0
    %441 = vmatpush.xpose.msra.mxu0 0.0
    %442 = vmatpush.xpose.msra.mxu0 0.0
    %443 = vmatpush.xpose.msra.mxu0 0.0
    %444 = vmatpush.xpose.msra.mxu0 0.0
    %445 = vmatpush.xpose.msra.mxu0 0.0
    %446 = vmatpush.xpose.msra.mxu0 0.0
    %447 = vmatpush.xpose.msra.mxu0 0.0
    %448 = vmatpush.xpose.msra.mxu0 0.0
    %449 = vmatpush.xpose.msra.mxu0 0.0
    %450 = vmatpush.xpose.msra.mxu0 0.0
    %451 = vmatpush.xpose.msra.mxu0 0.0
    %452 = vmatpush.xpose.msra.mxu0 0.0
    %453 = vmatpush.xpose.msra.mxu0 %v437
    %454 = vmatpush.xpose.msra.mxu0 %v435
    %455 = vmatmul.f32.gmra.mxu0 %v433
    %v456 = vpop.f32.mrf.mxu0
    %v457 = vadd.f32 0.0, %v456
    %458 = vdwg.mxu0
    %v459 = vsel %vm246, %v457, -inf
    %460 = vmax.xlane.f32.xlu0 %v459
    %v461 = vpop.xlane.xlu0 %460
    %v462 = vsub.f32 %v457, %v461
    %v463 = vmul.f32 %v462, 1.442695
    %v464 = vpow.pop %v463
    %v465 = vsel %vm246, %v464, 0.0
    %466 = vadd.xlane.f32.xlu0 %v465
    %v467 = vpop.xlane.xlu0 %466
    %v468 = vrcp.pop %v467
    %v469 = vmul.f32 %v464, %v468
    %470 = vrot.lane.b32.xlu0 %v211, 104
    %v471 = vpop.permute.xlu0 %470
    %472 = vrot.lane.b32.xlu0 %v214, 104
    %v473 = vpop.permute.xlu0 %472
    %v477 = vsel %vm246, %v469, 0
    %479 = vmatpush.msra.mxu0 0.0
    %480 = vmatpush.msra.mxu0 0.0
    %481 = vmatpush.msra.mxu0 0.0
    %482 = vmatpush.msra.mxu0 0.0
    %483 = vmatpush.msra.mxu0 0.0
    %484 = vmatpush.msra.mxu0 0.0
    %485 = vmatpush.msra.mxu0 0.0
    %486 = vmatpush.msra.mxu0 0.0
    %487 = vmatpush.msra.mxu0 0.0
    %488 = vmatpush.msra.mxu0 0.0
    %489 = vmatpush.msra.mxu0 0.0
    %490 = vmatpush.msra.mxu0 0.0
    %491 = vmatpush.msra.mxu0 0.0
    %492 = vmatpush.msra.mxu0 0.0
    %493 = vmatpush.msra.mxu0 %v473
    %494 = vmatpush.msra.mxu0 %v471
    %495 = vmatmul.f32.gmra.mxu0 %v477
    %v496 = vpop.f32.mrf.mxu0
    %v497 = vadd.f32 0.0, %v496
    %498 = vdwg.mxu0
    %500 = vrot.lane.b32.xlu0 %v353, 8
    %v501 = vpop.permute.xlu0 %500
    %504 = vrot.lane.b32.xlu0 %v425, 16
    %v505 = vpop.permute.xlu0 %504
    %508 = vrot.lane.b32.xlu0 %v497, 24
    %v509 = vpop.permute.xlu0 %508
    %v511 = vsel %vm216, %v279, %v501
    %v512 = vsel %vm246, %v511, %v505
    %vm513 = vcmask 195584
    %v514 = vsel %vm513, %v512, %v509
    %v515 = vld [vmem:[#allocation6] sm:$0xff]
    %v516 = vld [vmem:[#allocation6 + $0x8] sm:$0xff]
    %v517 = vld [vmem:[#allocation6 + $0x10] sm:$0xff]
    %v518 = vld [vmem:[#allocation6 + $0x18] sm:$0xff]
    %v520 = vsel %vm125, %v514, 0
    %522 = vmatpush.msra.mxu0 0.0
    %523 = vmatpush.msra.mxu0 0.0
    %524 = vmatpush.msra.mxu0 0.0
    %525 = vmatpush.msra.mxu0 0.0
    %526 = vmatpush.msra.mxu0 0.0
    %527 = vmatpush.msra.mxu0 0.0
    %528 = vmatpush.msra.mxu0 0.0
    %529 = vmatpush.msra.mxu0 0.0
    %530 = vmatpush.msra.mxu0 0.0
    %531 = vmatpush.msra.mxu0 0.0
    %532 = vmatpush.msra.mxu0 0.0
    %533 = vmatpush.msra.mxu0 0.0
    %534 = vmatpush.msra.mxu0 %v518
    %535 = vmatpush.msra.mxu0 %v517
    %536 = vmatpush.msra.mxu0 %v516
    %537 = vmatpush.msra.mxu0 %v515
    %538 = vmatmul.f32.gmra.mxu0 %v520
    %v539 = vpop.f32.mrf.mxu0
    %v540 = vadd.f32 0.0, %v539
    %541 = vdwg.mxu0
    %v542 = vld [vmem:[%s4] sm:$0xff]
    %v543 = vld [vmem:[%s4 + $0x8] sm:$0xff]
    %v544 = vadd.f32 %v540, %v542
    %v545 = vadd.f32 %v540, %v543
    %v546 = vsel %vm125, %v544, 0.0
    %547 = vadd.xlane.f32.xlu0 %v546
    %v548 = vpop.xlane.xlu0 %547
    %v549 = vsel %vm125, %v545, 0.0
    %550 = vadd.xlane.f32.xlu0 %v549
    %v551 = vpop.xlane.xlu0 %550
    %v552 = vrcp.pop 32.0
    %v553 = vmul.f32 32.0, %v552
    %v554 = vsub.f32 1.0, %v553
    %v555 = vmul.f32 %v552, %v554
    %v556 = vadd.f32 %v552, %v555
    %vm557 = vweird.f32 %v552
    %v558 = vsel %vm557, %v552, %v556
    %v559 = vmul.f32 %v548, %v558
    %v560 = vmul.f32 %v551, %v558
    %v561 = vsub.f32 %v544, %v559
    %v562 = vsub.f32 %v545, %v560
    %v563 = vmul.f32 %v561, %v561
    %v564 = vmul.f32 %v562, %v562
    %v565 = vsel %vm125, %v563, 0.0
    %566 = vadd.xlane.f32.xlu0 %v565
    %v567 = vpop.xlane.xlu0 %566
    %v568 = vsel %vm125, %v564, 0.0
    %569 = vadd.xlane.f32.xlu0 %v568
    %v570 = vpop.xlane.xlu0 %569
    %v571 = vmul.f32 %v567, %v558
    %v572 = vmul.f32 %v570, %v558
    %v573 = vadd.f32 %v571, 1e-05
    %v574 = vadd.f32 %v572, 1e-05
    %v575 = vrsqrt.pop %v573
    %v576 = vmul.f32 %v575, %v573
    %v577 = vmul.f32 %v576, %v575
    %v578 = vmul.f32 0.5, %v577
    %v579 = vsub.f32 1.5, %v578
    %v580 = vmul.f32 %v575, %v579
    %vm581 = vweird.f32 %v573
    %vm582 = vweird.f32 %v575
    %vm583 = vmor %vm581, %vm582
    %v584 = vsel %vm583, %v575, %v580
    %v585 = vrsqrt.pop %v574
    %v586 = vmul.f32 %v585, %v574
    %v587 = vmul.f32 %v586, %v585
    %v588 = vmul.f32 0.5, %v587
    %v589 = vsub.f32 1.5, %v588
    %v590 = vmul.f32 %v585, %v589
    %vm591 = vweird.f32 %v574
    %vm592 = vweird.f32 %v585
    %vm593 = vmor %vm591, %vm592
    %v594 = vsel %vm593, %v585, %v590
    %v595 = vmul.f32 %v561, %v584
    %v596 = vmul.f32 %v562, %v594
    %v597 = vld [vmem:[#allocation7] sm:$0x1]
    %v599 = vperm.slane %v597, 0
    %v601 = vmul.f32 %v595, %v599
    %v602 = vmul.f32 %v596, %v599
    %v603 = vld [vmem:[#allocation9] sm:$0x1]
    %v605 = vperm.slane %v603, 0
    %v607 = vadd.f32 %v601, %v605
    %v608 = vadd.f32 %v602, %v605
    %609 = vst.msk [vmem:[%s11] sm:$0xff] %vm125, %v607
    %610 = vst.msk [vmem:[%s11 + $0x8] sm:$0xff] %vm125, %v608
    // Predicated region
    $region66: #{transformer_forward.18} parent=1 // pred_check
      _
    $region67: #{transformer_forward.18} parent=1 // pred_check_branch
      %612 = sbr.rel (0) target = $region69
    $region68: #{transformer_forward.18} parent=1 // pred_region
      _
    $region69: #{transformer_forward.18} parent=1 // pred_fallthru
      _
    // Predicated region
    $region70: #{transformer_forward.18} parent=1 // pred_check
      _
    $region71: #{transformer_forward.18} parent=1 // pred_check_branch
      %614 = sbr.rel (0) target = $region73
    $region72: #{transformer_forward.18} parent=1 // pred_region
      _
    $region73: #{transformer_forward.18} parent=1 // pred_fallthru
      _
    %615 = vsyncpa [#allocation3], 1
    %616 = vsyncpa [#allocation5], 1
    %617 = vsyncpa [#allocation8], 1

// kernel: transformer_forward.19
$region0: #{transformer_forward.19}
  #allocation0 [shape = 'u32[]', space=smem, size = 0x4, offset = 0x4, fixed_abs, tag = 'smem constant byte address 0x4 - core index']
  #allocation1 [shape = 'u32[72,128]{1,0:T(1,128)}', space=vmem, size = 0x9000, scoped, tag = 'internal scratch']
  %s0 = inlined_call_operand.vmem [shape: f32[16,32], index: 0, kind: input, shape index: {}]
  %s1 = inlined_call_operand.vmem [shape: f32[32,128], index: 1, kind: input, shape index: {}]
  %s2 = inlined_call_operand.vmem [shape: f32[1,128], index: 2, kind: input, shape index: {}]
  %s3 = inlined_call_operand.vmem [shape: f32[128,32], index: 3, kind: input, shape index: {}]
  %s4 = inlined_call_operand.vmem [shape: f32[1,32], index: 4, kind: input, shape index: {}]
  %s5 = inlined_call_operand.vmem [shape: f32[1,32], index: 5, kind: input, shape index: {}]
  %s6 = inlined_call_operand.vmem [shape: f32[1,32], index: 6, kind: input, shape index: {}]
  %s7 = inlined_call_operand.hbm [shape: f32[16,32], index: 7, kind: output, shape index: {}]
  %s8 = sld [smem:[#allocation0]]
  $region38: #{transformer_forward.19} parent=0
    _
  %s10 = ssub.s32 1, %s8
  %s11 = scalar_select 0, %s10, %s8
  $region1: #{transformer_forward.19} parent=0
    #allocation2 [shape = 'u8[8192]{0}', space=vmem, size = 0x2000, scoped, tag = 'output window, operand 0, single buffered']
    #allocation3 [shape = 's32[1]{0}', space=sflag, size = 0x4, scoped, tag = 'scoped memory for transformer_forward.19']
    %12 = vsyncpa [#allocation3], 0
    // Predicated region
    $region2: #{transformer_forward.19} parent=1 // pred_check
      _
    $region3: #{transformer_forward.19} parent=1 // pred_check_branch
      %14 = sbr.rel (0) target = $region5
    $region4: #{transformer_forward.19} parent=1 // pred_region
      _
    $region5: #{transformer_forward.19} parent=1 // pred_fallthru
      _
    // Predicated region
    $region6: #{transformer_forward.19} parent=1 // pred_check
      _
    $region7: #{transformer_forward.19} parent=1 // pred_check_branch
      %16 = sbr.rel (0) target = $region9
    $region8: #{transformer_forward.19} parent=1 // pred_region
      _
    $region9: #{transformer_forward.19} parent=1 // pred_fallthru
      _
    // Predicated region
    $region10: #{transformer_forward.19} parent=1 // pred_check
      _
    $region11: #{transformer_forward.19} parent=1 // pred_check_branch
      %18 = sbr.rel (0) target = $region13
    $region12: #{transformer_forward.19} parent=1 // pred_region
      _
    $region13: #{transformer_forward.19} parent=1 // pred_fallthru
      _
    // Predicated region
    $region14: #{transformer_forward.19} parent=1 // pred_check
      _
    $region15: #{transformer_forward.19} parent=1 // pred_check_branch
      %20 = sbr.rel (0) target = $region17
    $region16: #{transformer_forward.19} parent=1 // pred_region
      _
    $region17: #{transformer_forward.19} parent=1 // pred_fallthru
      _
    // Predicated region
    $region18: #{transformer_forward.19} parent=1 // pred_check
      _
    $region19: #{transformer_forward.19} parent=1 // pred_check_branch
      %22 = sbr.rel (0) target = $region21
    $region20: #{transformer_forward.19} parent=1 // pred_region
      _
    $region21: #{transformer_forward.19} parent=1 // pred_fallthru
      _
    // Predicated region
    $region22: #{transformer_forward.19} parent=1 // pred_check
      _
    $region23: #{transformer_forward.19} parent=1 // pred_check_branch
      %24 = sbr.rel (0) target = $region25
    $region24: #{transformer_forward.19} parent=1 // pred_region
      _
    $region25: #{transformer_forward.19} parent=1 // pred_fallthru
      _
    // Predicated region
    $region26: #{transformer_forward.19} parent=1 // pred_check
      _
    $region27: #{transformer_forward.19} parent=1 // pred_check_branch
      %26 = sbr.rel (0) target = $region29
    $region28: #{transformer_forward.19} parent=1 // pred_region
      _
    $region29: #{transformer_forward.19} parent=1 // pred_fallthru
      _
    %v27 = vld [vmem:[%s0] sm:$0xff]
    %v28 = vld [vmem:[%s0 + $0x8] sm:$0xff]
    %v29 = vld [vmem:[%s1] sm:$0xff]
    %v30 = vld [vmem:[%s1 + $0x8] sm:$0xff]
    %v31 = vld [vmem:[%s1 + $0x10] sm:$0xff]
    %v32 = vld [vmem:[%s1 + $0x18] sm:$0xff]
    %v33 = vld [vmem:[%s2] sm:$0x1]
    %v35 = vperm.slane %v33, 0
    %vm37 = vcmask 261120
    %v39 = vsel %vm37, %v27, 0
    %v42 = vsel %vm37, %v28, 0
    %44 = vmatpush.msra.mxu0 0.0
    %45 = vmatpush.msra.mxu0 0.0
    %46 = vmatpush.msra.mxu0 0.0
    %47 = vmatpush.msra.mxu0 0.0
    %48 = vmatpush.msra.mxu0 0.0
    %49 = vmatpush.msra.mxu0 0.0
    %50 = vmatpush.msra.mxu0 0.0
    %51 = vmatpush.msra.mxu0 0.0
    %52 = vmatpush.msra.mxu0 0.0
    %53 = vmatpush.msra.mxu0 0.0
    %54 = vmatpush.msra.mxu0 0.0
    %55 = vmatpush.msra.mxu0 0.0
    %56 = vmatpush.msra.mxu0 %v32
    %57 = vmatpush.msra.mxu0 %v31
    %58 = vmatpush.msra.mxu0 %v30
    %59 = vmatpush.msra.mxu0 %v29
    %60 = vmatmul.f32.gmra.mxu0 %v39
    %v61 = vpop.f32.mrf.mxu0
    %v62 = vadd.f32 %v35, %v61
    %63 = vmatmul.f32.gmra.mxu0 %v42
    %v64 = vpop.f32.mrf.mxu0
    %v65 = vadd.f32 %v35, %v64
    %66 = vdwg.mxu0
    %v67 = vmax.f32 %v62, 0.0
    %v68 = vmax.f32 %v65, 0.0
    %v69 = vld [vmem:[%s3] sm:$0xff]
    %v70 = vld [vmem:[%s3 + $0x8] sm:$0xff]
    %v71 = vld [vmem:[%s3 + $0x10] sm:$0xff]
    %v72 = vld [vmem:[%s3 + $0x18] sm:$0xff]
    %v73 = vld [vmem:[%s3 + $0x20] sm:$0xff]
    %v74 = vld [vmem:[%s3 + $0x28] sm:$0xff]
    %v75 = vld [vmem:[%s3 + $0x30] sm:$0xff]
    %v76 = vld [vmem:[%s3 + $0x38] sm:$0xff]
    %v77 = vld [vmem:[%s3 + $0x40] sm:$0xff]
    %v78 = vld [vmem:[%s3 + $0x48] sm:$0xff]
    %v79 = vld [vmem:[%s3 + $0x50] sm:$0xff]
    %v80 = vld [vmem:[%s3 + $0x58] sm:$0xff]
    %v81 = vld [vmem:[%s3 + $0x60] sm:$0xff]
    %v82 = vld [vmem:[%s3 + $0x68] sm:$0xff]
    %v83 = vld [vmem:[%s3 + $0x70] sm:$0xff]
    %v84 = vld [vmem:[%s3 + $0x78] sm:$0xff]
    %v85 = vld [vmem:[%s4] sm:$0x1]
    %v87 = vperm.slane %v85, 0
    %89 = vmatpush.msra.mxu0 %v84
    %90 = vmatpush.msra.mxu0 %v83
    %91 = vmatpush.msra.mxu0 %v82
    %92 = vmatpush.msra.mxu0 %v81
    %93 = vmatpush.msra.mxu0 %v80
    %94 = vmatpush.msra.mxu0 %v79
    %95 = vmatpush.msra.mxu0 %v78
    %96 = vmatpush.msra.mxu0 %v77
    %97 = vmatpush.msra.mxu0 %v76
    %98 = vmatpush.msra.mxu0 %v75
    %99 = vmatpush.msra.mxu0 %v74
    %100 = vmatpush.msra.mxu0 %v73
    %101 = vmatpush.msra.mxu0 %v72
    %102 = vmatpush.msra.mxu0 %v71
    %103 = vmatpush.msra.mxu0 %v70
    %104 = vmatpush.msra.mxu0 %v69
    %105 = vmatmul.f32.gmra.mxu0 %v67
    %v106 = vpop.f32.mrf.mxu0
    %v107 = vadd.f32 %v87, %v106
    %108 = vmatmul.f32.gmra.mxu0 %v68
    %v109 = vpop.f32.mrf.mxu0
    %v110 = vadd.f32 %v87, %v109
    %111 = vdwg.mxu0
    %v112 = vadd.f32 %v107, %v27
    %v113 = vadd.f32 %v110, %v28
    %v114 = vsel %vm37, %v112, 0.0
    %115 = vadd.xlane.f32.xlu0 %v114
    %v116 = vpop.xlane.xlu0 %115
    %v117 = vsel %vm37, %v113, 0.0
    %118 = vadd.xlane.f32.xlu0 %v117
    %v119 = vpop.xlane.xlu0 %118
    %v120 = vrcp.pop 32.0
    %v121 = vmul.f32 32.0, %v120
    %v122 = vsub.f32 1.0, %v121
    %v123 = vmul.f32 %v120, %v122
    %v124 = vadd.f32 %v120, %v123
    %vm125 = vweird.f32 %v120
    %v126 = vsel %vm125, %v120, %v124
    %v127 = vmul.f32 %v116, %v126
    %v128 = vmul.f32 %v119, %v126
    %v129 = vsub.f32 %v112, %v127
    %v130 = vsub.f32 %v113, %v128
    %v131 = vmul.f32 %v129, %v129
    %v132 = vmul.f32 %v130, %v130
    %v133 = vsel %vm37, %v131, 0.0
    %134 = vadd.xlane.f32.xlu0 %v133
    %v135 = vpop.xlane.xlu0 %134
    %v136 = vsel %vm37, %v132, 0.0
    %137 = vadd.xlane.f32.xlu0 %v136
    %v138 = vpop.xlane.xlu0 %137
    %v139 = vmul.f32 %v135, %v126
    %v140 = vmul.f32 %v138, %v126
    %v141 = vadd.f32 %v139, 1e-05
    %v142 = vadd.f32 %v140, 1e-05
    %v143 = vrsqrt.pop %v141
    %v144 = vmul.f32 %v143, %v141
    %v145 = vmul.f32 %v144, %v143
    %v146 = vmul.f32 0.5, %v145
    %v147 = vsub.f32 1.5, %v146
    %v148 = vmul.f32 %v143, %v147
    %vm149 = vweird.f32 %v141
    %vm150 = vweird.f32 %v143
    %vm151 = vmor %vm149, %vm150
    %v152 = vsel %vm151, %v143, %v148
    %v153 = vrsqrt.pop %v142
    %v154 = vmul.f32 %v153, %v142
    %v155 = vmul.f32 %v154, %v153
    %v156 = vmul.f32 0.5, %v155
    %v157 = vsub.f32 1.5, %v156
    %v158 = vmul.f32 %v153, %v157
    %vm159 = vweird.f32 %v142
    %vm160 = vweird.f32 %v153
    %vm161 = vmor %vm159, %vm160
    %v162 = vsel %vm161, %v153, %v158
    %v163 = vmul.f32 %v129, %v152
    %v164 = vmul.f32 %v130, %v162
    %v165 = vld [vmem:[%s5] sm:$0x1]
    %v167 = vperm.slane %v165, 0
    %v169 = vmul.f32 %v163, %v167
    %v170 = vmul.f32 %v164, %v167
    %v171 = vld [vmem:[%s6] sm:$0x1]
    %v173 = vperm.slane %v171, 0
    %v175 = vadd.f32 %v169, %v173
    %v176 = vadd.f32 %v170, %v173
    %177 = vst.msk [vmem:[#allocation2] sm:$0xff] %vm37, %v175
    %178 = vst.msk [vmem:[#allocation2 + $0x8] sm:$0xff] %vm37, %v176
    // Predicated region
    $region30: #{transformer_forward.19} parent=1 // pred_check
      _
    $region31: #{transformer_forward.19} parent=1 // pred_check_branch
      %180 = sbr.rel (0) target = $region33
    $region32: #{transformer_forward.19} parent=1 // pred_region
      %182 = vsyncadd [#allocation3], 0
      %s183 = sshll.u32 [#allocation2], 4
      %s184 = int_to_ptr.vmem [resolvable:$true] %s183
      %s185 = sshll.u32 %s7, 4
      %s186 = int_to_ptr.hbm [resolvable:$true] %s185
      %191 = dma.vmem_to_hbm [thread:$0]  %s184, 256, %s186, [#allocation3], 128, 128, 8
    $region33: #{transformer_forward.19} parent=1 // pred_fallthru
      _
    // Predicated region
    $region34: #{transformer_forward.19} parent=1 // pred_check
      _
    $region35: #{transformer_forward.19} parent=1 // pred_check_branch
      %193 = sbr.rel (0) target = $region37
    $region36: #{transformer_forward.19} parent=1 // pred_region
      %195 = dma.done [#allocation3], 256
    $region37: #{transformer_forward.19} parent=1 // pred_fallthru
      _
    %196 = vsyncpa [#allocation3], 1

</llo_original>
